<compile_context>
chip_gen: v7x
topology: tpu7x:2x2x1
jax: 0.10.0
libtpu: 0.0.40
codegen_flags: <defaults>
</compile_context>

<pallas_src>
import functools
import math

import jax
import jax.numpy as jnp
import numpy as np
from jax.experimental import pallas as pl
from jax.experimental.pallas import tpu as pltpu


def _round_up(x, m):
    return ((x + m - 1) // m) * m


_INV_SQRT2 = 1.0 / math.sqrt(2.0)


def _erf(x):
    # Abramowitz & Stegun 7.1.26, |abs err| <= ~1.5e-7 plus the approx-recip
    # noise (~2^-13 relative -> <~1e-3 abs on erf).  exp and the reciprocal
    # both go to the EUP slot; the polynomial is cheap VALU work.
    a1, a2, a3, a4, a5 = (0.254829592, -0.284496736, 1.421413741,
                          -1.453152027, 1.061405429)
    p = 0.3275911
    ax = jnp.abs(x)
    t = pl.reciprocal(1.0 + p * ax, approx=True)
    poly = ((((a5 * t + a4) * t + a3) * t + a2) * t + a1) * t
    y = 1.0 - poly * jnp.exp(-ax * ax)
    return jnp.where(x >= 0, y, -y)


def _gelu_exact(x):
    # Matches torch.nn.GELU() (exact-erf form) to within f32-ish noise.
    return 0.5 * x * (1.0 + _erf(x * _INV_SQRT2))


def _gelu_tanh(x):
    # Optional tanh approximation (torch.nn.GELU(approximate='tanh')).
    c = math.sqrt(2.0 / math.pi)
    return 0.5 * x * (1.0 + jnp.tanh(c * (x + 0.044715 * x * x * x)))


def _mlp_kernel(x_ref, w1_ref, b1_ref, w2_ref, b2_ref, o_ref, acc_ref, *,
                gelu_fn):
    # Grid: (token tiles, hidden chunks).  The hidden axis is a reduction:
    # fc1 produces a (tm, hk) chunk, GELU is applied to the chunk, and fc2's
    # partial product is accumulated into the f32 scratch, finalized on the
    # last chunk.
    k = pl.program_id(1)

    @pl.when(k == 0)
    def _init():
        acc_ref[...] = jnp.zeros_like(acc_ref)

    # MXU operands stay in the model dtype (bf16 -> full-rate MXU path);
    # accumulation is f32 via preferred_element_type.
    h = jnp.dot(x_ref[...], w1_ref[...], preferred_element_type=jnp.float32)
    h = gelu_fn(h + b1_ref[...].astype(jnp.float32))
    # TODO(synk): nn.Dropout with drop=0.0 is the identity; a nonzero-p
    # training-mode dropout would use pltpu.prng_seed / prng_random_bits here.
    acc_ref[...] += jnp.dot(h.astype(w2_ref.dtype), w2_ref[...],
                            preferred_element_type=jnp.float32)

    @pl.when(k == pl.num_programs(1) - 1)
    def _finalize():
        o_ref[...] = (acc_ref[...]
                      + b2_ref[...].astype(jnp.float32)).astype(o_ref.dtype)


def _spec(shape, index_map, n_buf=None):
    """BlockSpec, optionally with an explicit pipeline buffer count."""
    if n_buf is not None:
        try:
            return pl.BlockSpec(shape, index_map,
                                pipeline_mode=pl.Buffered(n_buf))
        except TypeError:   # older jax without pipeline_mode
            pass
    return pl.BlockSpec(shape, index_map)


def _pick_hidden_chunk(hidden, c_in, c_out, w_itemsize, budget_bytes):
    """Largest hidden chunk whose fc1/fc2 weight slabs fit the budget."""
    # Whole hidden dim resident (single-buffered weights) if it fits.
    if (c_in + c_out + 1) * hidden * w_itemsize <= budget_bytes:
        return hidden
    # Otherwise chunk along hidden: multiple of 128 (lane-dense) dividing
    # hidden evenly; chunks are double-buffered by the pipeline.
    if hidden % 128 == 0:
        for hk in range(((hidden - 128) // 128) * 128, 0, -128):
            if hidden % hk == 0 and \
               2 * (c_in + c_out + 1) * hk * w_itemsize <= budget_bytes:
                return hk
    return hidden   # fallback: whole-H residency


def mlp3d_forward(params, x, *, block_m=1024, approximate_gelu=False,
                  single_buffer_weights=True):
    """Mlp3D.forward: fc1 -> GELU -> (dropout p=0) -> fc2 over x's last axis."""
    orig_shape = x.shape
    c_in = orig_shape[-1]
    w1, b1 = params["fc1_w"], params["fc1_b"]      # (C_in, H) == torch w.T, (H,)
    w2, b2 = params["fc2_w"], params["fc2_b"]      # (H, C_out) == torch w.T, (C_out,)
    hidden, c_out = w1.shape[1], w2.shape[1]
    out_dtype = x.dtype
    gelu_fn = _gelu_tanh if approximate_gelu else _gelu_exact

    x2 = x.reshape(-1, c_in)
    m = x2.shape[0]

    # Generation-aware VMEM cap (~0.75x physical): ~96 MiB v5e/v6e, ~48 MiB v7x.
    try:
        vmem_cap = int(pltpu.get_tpu_info().vmem_capacity_bytes)
    except Exception:
        vmem_cap = 64 << 20
    vmem_cap = (vmem_cap * 3) // 4

    w_isz = jnp.dtype(w1.dtype).itemsize
    x_isz = jnp.dtype(x.dtype).itemsize
    o_isz = jnp.dtype(out_dtype).itemsize

    # Hidden-dim chunking (only kicks in when W1+W2 would blow the budget).
    hk = _pick_hidden_chunk(hidden, c_in, c_out, w_isz, vmem_cap // 2)
    n_k = max(1, hidden // hk)
    resident_weights = (n_k == 1)
    w_bufs = 1 if (resident_weights and single_buffer_weights) else 2

    # Token tile: as large as the budget allows (HBM roofline), multiple of 8,
    # and <= ceil(m/2) so the M grid has >= 2 steps (v7x has 2 TensorCores).
    tm = max(8, min(block_m, _round_up(pl.cdiv(m, 2), 8)))

    def _vmem_need(tm_):
        tiles = 2 * tm_ * c_in * x_isz + 2 * tm_ * c_out * o_isz   # x/out dbl-buf
        weights = (w_bufs * (c_in * hk + hk + hk * c_out) * w_isz
                   + c_out * w_isz)                                # counted once
        scratch = tm_ * c_out * 4                                  # f32 acc
        interm = 4 * tm_ * hk * 4                                  # h + GELU temps
        return tiles + weights + scratch + interm + (2 << 20)

    while _vmem_need(tm) > vmem_cap and tm > 64:
        tm = max(64, _round_up(tm // 2, 8))

    vmem_limit = int(min(vmem_cap, max(_vmem_need(tm), 32 << 20)))

    grid = (pl.cdiv(m, tm), n_k)   # reduction (hidden) axis last

    w_nbuf = 1 if (resident_weights and single_buffer_weights) else None
    b2_nbuf = 1 if single_buffer_weights else None

    out = pl.pallas_call(
        functools.partial(_mlp_kernel, gelu_fn=gelu_fn),
        out_shape=jax.ShapeDtypeStruct((m, c_out), out_dtype),
        grid_spec=pltpu.PrefetchScalarGridSpec(
            num_scalar_prefetch=0,
            grid=grid,
            in_specs=[
                _spec((tm, c_in), lambda i, k: (i, 0)),             # x tile
                _spec((c_in, hk), lambda i, k: (0, k), w_nbuf),     # w1 chunk
                _spec((1, hk), lambda i, k: (0, k), w_nbuf),        # b1 chunk
                _spec((hk, c_out), lambda i, k: (k, 0), w_nbuf),    # w2 chunk
                _spec((1, c_out), lambda i, k: (0, 0), b2_nbuf),    # b2
            ],
            out_specs=_spec((tm, c_out), lambda i, k: (i, 0)),
            scratch_shapes=[pltpu.VMEM((tm, c_out), jnp.float32)],
        ),
        compiler_params=pltpu.CompilerParams(
            dimension_semantics=("parallel", "arbitrary"),
            vmem_limit_bytes=vmem_limit,
        ),
    )(x2, w1, b1.reshape(1, -1), w2, b2.reshape(1, -1))

    return out.reshape(orig_shape[:-1] + (c_out,))


if __name__ == "__main__":
    # Tokens from a (2, 7, 8, 8) volume -> m = 896 (exercises the ragged last
    # tile at tm = 256, i.e. no pad/slice round-trip).  Feature dims are
    # lane-aligned (128 / 256 / 128) per the review.
    B, D, H, W = 2, 7, 8, 8
    in_features, hidden_features, out_features = 128, 256, 128

    key = jax.random.PRNGKey(0)
    k1, k2, k3, k4, k5 = jax.random.split(key, 5)
    s1 = 1.0 / math.sqrt(in_features)
    s2 = 1.0 / math.sqrt(hidden_features)
    params = dict(
        fc1_w=s1 * jax.random.normal(k1, (in_features, hidden_features),
                                     jnp.float32),
        fc1_b=s1 * jax.random.normal(k2, (hidden_features,), jnp.float32),
        fc2_w=s2 * jax.random.normal(k3, (hidden_features, out_features),
                                     jnp.float32),
        fc2_b=s2 * jax.random.normal(k4, (out_features,), jnp.float32),
    )
    x = jax.random.normal(k5, (B, D, H, W, in_features), jnp.float32)

    # block_m=256 -> 4 parallel grid steps at this toy size (keeps the
    # pipeline and both v7x TensorCores busy); defaults to 1024 for large M.
    fwd = jax.jit(functools.partial(mlp3d_forward, block_m=256))
    try:
        out = jax.block_until_ready(fwd(params, x))
    except Exception:
        # Defensive fallback for jax versions whose TPU lowering rejects
        # BlockSpec pipeline_mode (single-buffered weights are perf-only).
        fwd = jax.jit(functools.partial(mlp3d_forward, block_m=256,
                                        single_buffer_weights=False))
        out = jax.block_until_ready(fwd(params, x))

    assert out.shape == (B, D, H, W, out_features)
    assert bool(jnp.all(jnp.isfinite(out)))

    # Plain-JAX reference (dropout p=0 is identity); tolerance covers the
    # approx-reciprocal erf and MXU precision differences.
    ref = jnp.dot(x.reshape(-1, in_features), params["fc1_w"]) + params["fc1_b"]
    ref = jax.nn.gelu(ref, approximate=False)
    ref = (jnp.dot(ref, params["fc2_w"]) + params["fc2_b"]).reshape(out.shape)
    np.testing.assert_allclose(np.asarray(out), np.asarray(ref),
                               rtol=3e-2, atol=3e-2)

    print("KERNEL_OK")
</pallas_src>

<mosaic_0001>
module attributes {stable_mosaic.version = 11 : i64} {
  func.func @_mlp_kernel(%arg0: i32, %arg1: i32, %arg2: memref<256x128xf32, #tpu.memory_space<vmem>>, %arg3: memref<128x256xf32, #tpu.memory_space<vmem>>, %arg4: memref<1x256xf32, #tpu.memory_space<vmem>>, %arg5: memref<256x128xf32, #tpu.memory_space<vmem>>, %arg6: memref<1x128xf32, #tpu.memory_space<vmem>>, %arg7: memref<256x128xf32, #tpu.memory_space<vmem>>, %arg8: memref<256x128xf32, #tpu.memory_space<vmem>>) attributes {dimension_semantics = [#tpu.dimension_semantics<parallel>, #tpu.dimension_semantics<arbitrary>], iteration_bounds = array<i64: 4, 1>, scalar_prefetch = 0 : i64, scratch_operands = 1 : i64, tpu.core_type = #tpu.core_type<tc>, window_params = [{transform_indices = @transform_0, window_bounds = array<i64: 256, 128>}, {pipeline_mode = #tpu.pipeline_mode<synchronous>, transform_indices = @transform_1, window_bounds = array<i64: 128, 256>}, {pipeline_mode = #tpu.pipeline_mode<synchronous>, transform_indices = @transform_2, window_bounds = array<i64: 1, 256>}, {pipeline_mode = #tpu.pipeline_mode<synchronous>, transform_indices = @transform_3, window_bounds = array<i64: 256, 128>}, {pipeline_mode = #tpu.pipeline_mode<synchronous>, transform_indices = @transform_4, window_bounds = array<i64: 1, 128>}, {transform_indices = @transform_5, window_bounds = array<i64: 256, 128>}]} {
    %c0_i32 = arith.constant 0 : i32
    %0 = arith.cmpi eq, %arg1, %c0_i32 : i32
    %1 = arith.extui %0 : i1 to i32
    %c0_i32_0 = arith.constant 0 : i32
    %2 = arith.cmpi ne, %1, %c0_i32_0 : i32
    scf.if %2 {
      %cst_29 = arith.constant 0.000000e+00 : f32
      %56 = vector.broadcast %cst_29 : f32 to vector<256x128xf32>
      %c0_30 = arith.constant 0 : index
      %c0_31 = arith.constant 0 : index
      %57 = vector.load %arg8[%c0_30, %c0_31] : memref<256x128xf32, #tpu.memory_space<vmem>>, vector<256x128xf32>
      tpu.vector_store %arg8[%c0_30, %c0_31], %56 {strides = array<i32>} : memref<256x128xf32, #tpu.memory_space<vmem>>, vector<256x128xf32>,
    } else {
    }
    %c0 = arith.constant 0 : index
    %c0_1 = arith.constant 0 : index
    %3 = vector.load %arg2[%c0, %c0_1] : memref<256x128xf32, #tpu.memory_space<vmem>>, vector<256x128xf32>
    %c0_2 = arith.constant 0 : index
    %c0_3 = arith.constant 0 : index
    %4 = vector.load %arg3[%c0_2, %c0_3] : memref<128x256xf32, #tpu.memory_space<vmem>>, vector<128x256xf32>
    %cst = arith.constant dense<0.000000e+00> : vector<256x256xf32>
    %5 = tpu.matmul %3, %4, %cst {dimension_numbers = #tpu.dot_dimension_numbers<[1], [0], [0], [1], [0, 0, 1, 1], [], []>} : vector<256x128xf32>, vector<128x256xf32>, vector<256x256xf32> -> vector<256x256xf32>
    %c0_4 = arith.constant 0 : index
    %c0_5 = arith.constant 0 : index
    %6 = vector.load %arg4[%c0_4, %c0_5] : memref<1x256xf32, #tpu.memory_space<vmem>>, vector<1x256xf32>
    %7 = vector.broadcast %6 : vector<1x256xf32> to vector<256x256xf32>
    %8 = arith.addf %5, %7 : vector<256x256xf32>
    %cst_6 = arith.constant 5.000000e-01 : f32
    %9 = vector.broadcast %cst_6 : f32 to vector<256x256xf32>
    %10 = arith.mulf %9, %8 : vector<256x256xf32>
    %cst_7 = arith.constant 0.707106769 : f32
    %11 = vector.broadcast %cst_7 : f32 to vector<256x256xf32>
    %12 = arith.mulf %8, %11 : vector<256x256xf32>
    %13 = math.absf %12 : vector<256x256xf32>
    %cst_8 = arith.constant 0.327591091 : f32
    %14 = vector.broadcast %cst_8 : f32 to vector<256x256xf32>
    %15 = arith.mulf %14, %13 : vector<256x256xf32>
    %cst_9 = arith.constant 1.000000e+00 : f32
    %16 = vector.broadcast %cst_9 : f32 to vector<256x256xf32>
    %17 = arith.addf %16, %15 : vector<256x256xf32>
    %18 = tpu.reciprocal %17 {approx = true} : vector<256x256xf32> -> vector<256x256xf32>
    %cst_10 = arith.constant 1.06140542 : f32
    %19 = vector.broadcast %cst_10 : f32 to vector<256x256xf32>
    %20 = arith.mulf %19, %18 : vector<256x256xf32>
    %cst_11 = arith.constant -1.45315206 : f32
    %21 = vector.broadcast %cst_11 : f32 to vector<256x256xf32>
    %22 = arith.addf %20, %21 : vector<256x256xf32>
    %23 = arith.mulf %22, %18 : vector<256x256xf32>
    %cst_12 = arith.constant 1.42141378 : f32
    %24 = vector.broadcast %cst_12 : f32 to vector<256x256xf32>
    %25 = arith.addf %23, %24 : vector<256x256xf32>
    %26 = arith.mulf %25, %18 : vector<256x256xf32>
    %cst_13 = arith.constant -0.284496725 : f32
    %27 = vector.broadcast %cst_13 : f32 to vector<256x256xf32>
    %28 = arith.addf %26, %27 : vector<256x256xf32>
    %29 = arith.mulf %28, %18 : vector<256x256xf32>
    %cst_14 = arith.constant 0.254829586 : f32
    %30 = vector.broadcast %cst_14 : f32 to vector<256x256xf32>
    %31 = arith.addf %29, %30 : vector<256x256xf32>
    %32 = arith.mulf %31, %18 : vector<256x256xf32>
    %cst_15 = arith.constant 0.000000e+00 : f32
    %33 = vector.broadcast %cst_15 : f32 to vector<256x256xf32>
    %34 = arith.subf %33, %13 : vector<256x256xf32>
    %35 = arith.mulf %34, %13 : vector<256x256xf32>
    %36 = math.exp %35 : vector<256x256xf32>
    %37 = arith.mulf %32, %36 : vector<256x256xf32>
    %cst_16 = arith.constant 1.000000e+00 : f32
    %38 = vector.broadcast %cst_16 : f32 to vector<256x256xf32>
    %39 = arith.subf %38, %37 : vector<256x256xf32>
    %cst_17 = arith.constant 0.000000e+00 : f32
    %40 = vector.broadcast %cst_17 : f32 to vector<256x256xf32>
    %41 = arith.cmpf oge, %12, %40 : vector<256x256xf32>
    %cst_18 = arith.constant 0.000000e+00 : f32
    %42 = vector.broadcast %cst_18 : f32 to vector<256x256xf32>
    %43 = arith.subf %42, %39 : vector<256x256xf32>
    %44 = arith.select %41, %39, %43 : vector<256x256xi1>, vector<256x256xf32>
    %cst_19 = arith.constant 1.000000e+00 : f32
    %45 = vector.broadcast %cst_19 : f32 to vector<256x256xf32>
    %46 = arith.addf %45, %44 : vector<256x256xf32>
    %47 = arith.mulf %10, %46 : vector<256x256xf32>
    %c0_20 = arith.constant 0 : index
    %c0_21 = arith.constant 0 : index
    %48 = vector.load %arg8[%c0_20, %c0_21] : memref<256x128xf32, #tpu.memory_space<vmem>>, vector<256x128xf32>
    %c0_22 = arith.constant 0 : index
    %c0_23 = arith.constant 0 : index
    %49 = vector.load %arg5[%c0_22, %c0_23] : memref<256x128xf32, #tpu.memory_space<vmem>>, vector<256x128xf32>
    %cst_24 = arith.constant dense<0.000000e+00> : vector<256x128xf32>
    %50 = tpu.matmul %47, %49, %cst_24 {dimension_numbers = #tpu.dot_dimension_numbers<[1], [0], [0], [1], [0, 0, 1, 1], [], []>} : vector<256x256xf32>, vector<256x128xf32>, vector<256x128xf32> -> vector<256x128xf32>
    %51 = arith.addf %48, %50 : vector<256x128xf32>
    %c0_25 = arith.constant 0 : index
    %c0_26 = arith.constant 0 : index
    %52 = vector.load %arg8[%c0_25, %c0_26] : memref<256x128xf32, #tpu.memory_space<vmem>>, vector<256x128xf32>
    tpu.vector_store %arg8[%c0_25, %c0_26], %51 {strides = array<i32>} : memref<256x128xf32, #tpu.memory_space<vmem>>, vector<256x128xf32>,
    %c0_i32_27 = arith.constant 0 : i32
    %53 = arith.cmpi eq, %arg1, %c0_i32_27 : i32
    %54 = arith.extui %53 : i1 to i32
    %c0_i32_28 = arith.constant 0 : i32
    %55 = arith.cmpi ne, %54, %c0_i32_28 : i32
    scf.if %55 {
      %c0_29 = arith.constant 0 : index
      %c0_30 = arith.constant 0 : index
      %56 = vector.load %arg8[%c0_29, %c0_30] : memref<256x128xf32, #tpu.memory_space<vmem>>, vector<256x128xf32>
      %c0_31 = arith.constant 0 : index
      %c0_32 = arith.constant 0 : index
      %57 = vector.load %arg6[%c0_31, %c0_32] : memref<1x128xf32, #tpu.memory_space<vmem>>, vector<1x128xf32>
      %58 = vector.broadcast %57 : vector<1x128xf32> to vector<256x128xf32>
      %59 = arith.addf %56, %58 : vector<256x128xf32>
      %c0_33 = arith.constant 0 : index
      %c0_34 = arith.constant 0 : index
      %60 = vector.load %arg7[%c0_33, %c0_34] : memref<256x128xf32, #tpu.memory_space<vmem>>, vector<256x128xf32>
      tpu.vector_store %arg7[%c0_33, %c0_34], %59 {strides = array<i32>} : memref<256x128xf32, #tpu.memory_space<vmem>>, vector<256x128xf32>,
    } else {
    }
    return
  }
  func.func @transform_0(%arg0: i32, %arg1: i32) -> (i32, i32) {
    %c0_i32 = arith.constant 0 : i32
    %c0_i32_0 = arith.constant 0 : i32
    return %arg0, %c0_i32 : i32, i32
  }
  func.func @transform_1(%arg0: i32, %arg1: i32) -> (i32, i32) {
    %c0_i32 = arith.constant 0 : i32
    %c0_i32_0 = arith.constant 0 : i32
    return %c0_i32, %arg1 : i32, i32
  }
  func.func @transform_2(%arg0: i32, %arg1: i32) -> (i32, i32) {
    %c0_i32 = arith.constant 0 : i32
    %c0_i32_0 = arith.constant 0 : i32
    return %c0_i32, %arg1 : i32, i32
  }
  func.func @transform_3(%arg0: i32, %arg1: i32) -> (i32, i32) {
    %c0_i32 = arith.constant 0 : i32
    %c0_i32_0 = arith.constant 0 : i32
    return %arg1, %c0_i32 : i32, i32
  }
  func.func @transform_4(%arg0: i32, %arg1: i32) -> (i32, i32) {
    %c0_i32 = arith.constant 0 : i32
    %c0_i32_0 = arith.constant 0 : i32
    %c0_i32_1 = arith.constant 0 : i32
    return %c0_i32, %c0_i32_0 : i32, i32
  }
  func.func @transform_5(%arg0: i32, %arg1: i32) -> (i32, i32) {
    %c0_i32 = arith.constant 0 : i32
    %c0_i32_0 = arith.constant 0 : i32
    return %arg0, %c0_i32 : i32, i32
  }
}

module attributes {stable_mosaic.version = 11 : i64} {
  func.func @_mlp_kernel(%arg0: i32, %arg1: i32, %arg2: memref<256x128xf32, #tpu.memory_space<vmem>>, %arg3: memref<128x256xf32, #tpu.memory_space<vmem>>, %arg4: memref<1x256xf32, #tpu.memory_space<vmem>>, %arg5: memref<256x128xf32, #tpu.memory_space<vmem>>, %arg6: memref<1x128xf32, #tpu.memory_space<vmem>>, %arg7: memref<256x128xf32, #tpu.memory_space<vmem>>, %arg8: memref<256x128xf32, #tpu.memory_space<vmem>>) attributes {dimension_semantics = [#tpu.dimension_semantics<parallel>, #tpu.dimension_semantics<arbitrary>], iteration_bounds = array<i64: 4, 1>, scalar_prefetch = 0 : i64, scratch_operands = 1 : i64, tpu.core_type = #tpu.core_type<tc>, window_params = [{transform_indices = @transform_0, window_bounds = array<i64: 256, 128>}, {transform_indices = @transform_1, window_bounds = array<i64: 128, 256>}, {transform_indices = @transform_2, window_bounds = array<i64: 1, 256>}, {transform_indices = @transform_3, window_bounds = array<i64: 256, 128>}, {pipeline_mode = #tpu.pipeline_mode<synchronous>, transform_indices = @transform_4, window_bounds = array<i64: 1, 128>}, {transform_indices = @transform_5, window_bounds = array<i64: 256, 128>}]} {
    %c0_i32 = arith.constant 0 : i32
    %0 = arith.cmpi eq, %arg1, %c0_i32 : i32
    %1 = arith.extui %0 : i1 to i32
    %c0_i32_0 = arith.constant 0 : i32
    %2 = arith.cmpi ne, %1, %c0_i32_0 : i32
    scf.if %2 {
      %cst_29 = arith.constant 0.000000e+00 : f32
      %56 = vector.broadcast %cst_29 : f32 to vector<256x128xf32>
      %c0_30 = arith.constant 0 : index
      %c0_31 = arith.constant 0 : index
      %57 = vector.load %arg8[%c0_30, %c0_31] : memref<256x128xf32, #tpu.memory_space<vmem>>, vector<256x128xf32>
      tpu.vector_store %arg8[%c0_30, %c0_31], %56 {strides = array<i32>} : memref<256x128xf32, #tpu.memory_space<vmem>>, vector<256x128xf32>,
    } else {
    }
    %c0 = arith.constant 0 : index
    %c0_1 = arith.constant 0 : index
    %3 = vector.load %arg2[%c0, %c0_1] : memref<256x128xf32, #tpu.memory_space<vmem>>, vector<256x128xf32>
    %c0_2 = arith.constant 0 : index
    %c0_3 = arith.constant 0 : index
    %4 = vector.load %arg3[%c0_2, %c0_3] : memref<128x256xf32, #tpu.memory_space<vmem>>, vector<128x256xf32>
    %cst = arith.constant dense<0.000000e+00> : vector<256x256xf32>
    %5 = tpu.matmul %3, %4, %cst {dimension_numbers = #tpu.dot_dimension_numbers<[1], [0], [0], [1], [0, 0, 1, 1], [], []>} : vector<256x128xf32>, vector<128x256xf32>, vector<256x256xf32> -> vector<256x256xf32>
    %c0_4 = arith.constant 0 : index
    %c0_5 = arith.constant 0 : index
    %6 = vector.load %arg4[%c0_4, %c0_5] : memref<1x256xf32, #tpu.memory_space<vmem>>, vector<1x256xf32>
    %7 = vector.broadcast %6 : vector<1x256xf32> to vector<256x256xf32>
    %8 = arith.addf %5, %7 : vector<256x256xf32>
    %cst_6 = arith.constant 5.000000e-01 : f32
    %9 = vector.broadcast %cst_6 : f32 to vector<256x256xf32>
    %10 = arith.mulf %9, %8 : vector<256x256xf32>
    %cst_7 = arith.constant 0.707106769 : f32
    %11 = vector.broadcast %cst_7 : f32 to vector<256x256xf32>
    %12 = arith.mulf %8, %11 : vector<256x256xf32>
    %13 = math.absf %12 : vector<256x256xf32>
    %cst_8 = arith.constant 0.327591091 : f32
    %14 = vector.broadcast %cst_8 : f32 to vector<256x256xf32>
    %15 = arith.mulf %14, %13 : vector<256x256xf32>
    %cst_9 = arith.constant 1.000000e+00 : f32
    %16 = vector.broadcast %cst_9 : f32 to vector<256x256xf32>
    %17 = arith.addf %16, %15 : vector<256x256xf32>
    %18 = tpu.reciprocal %17 {approx = true} : vector<256x256xf32> -> vector<256x256xf32>
    %cst_10 = arith.constant 1.06140542 : f32
    %19 = vector.broadcast %cst_10 : f32 to vector<256x256xf32>
    %20 = arith.mulf %19, %18 : vector<256x256xf32>
    %cst_11 = arith.constant -1.45315206 : f32
    %21 = vector.broadcast %cst_11 : f32 to vector<256x256xf32>
    %22 = arith.addf %20, %21 : vector<256x256xf32>
    %23 = arith.mulf %22, %18 : vector<256x256xf32>
    %cst_12 = arith.constant 1.42141378 : f32
    %24 = vector.broadcast %cst_12 : f32 to vector<256x256xf32>
    %25 = arith.addf %23, %24 : vector<256x256xf32>
    %26 = arith.mulf %25, %18 : vector<256x256xf32>
    %cst_13 = arith.constant -0.284496725 : f32
    %27 = vector.broadcast %cst_13 : f32 to vector<256x256xf32>
    %28 = arith.addf %26, %27 : vector<256x256xf32>
    %29 = arith.mulf %28, %18 : vector<256x256xf32>
    %cst_14 = arith.constant 0.254829586 : f32
    %30 = vector.broadcast %cst_14 : f32 to vector<256x256xf32>
    %31 = arith.addf %29, %30 : vector<256x256xf32>
    %32 = arith.mulf %31, %18 : vector<256x256xf32>
    %cst_15 = arith.constant 0.000000e+00 : f32
    %33 = vector.broadcast %cst_15 : f32 to vector<256x256xf32>
    %34 = arith.subf %33, %13 : vector<256x256xf32>
    %35 = arith.mulf %34, %13 : vector<256x256xf32>
    %36 = math.exp %35 : vector<256x256xf32>
    %37 = arith.mulf %32, %36 : vector<256x256xf32>
    %cst_16 = arith.constant 1.000000e+00 : f32
    %38 = vector.broadcast %cst_16 : f32 to vector<256x256xf32>
    %39 = arith.subf %38, %37 : vector<256x256xf32>
    %cst_17 = arith.constant 0.000000e+00 : f32
    %40 = vector.broadcast %cst_17 : f32 to vector<256x256xf32>
    %41 = arith.cmpf oge, %12, %40 : vector<256x256xf32>
    %cst_18 = arith.constant 0.000000e+00 : f32
    %42 = vector.broadcast %cst_18 : f32 to vector<256x256xf32>
    %43 = arith.subf %42, %39 : vector<256x256xf32>
    %44 = arith.select %41, %39, %43 : vector<256x256xi1>, vector<256x256xf32>
    %cst_19 = arith.constant 1.000000e+00 : f32
    %45 = vector.broadcast %cst_19 : f32 to vector<256x256xf32>
    %46 = arith.addf %45, %44 : vector<256x256xf32>
    %47 = arith.mulf %10, %46 : vector<256x256xf32>
    %c0_20 = arith.constant 0 : index
    %c0_21 = arith.constant 0 : index
    %48 = vector.load %arg8[%c0_20, %c0_21] : memref<256x128xf32, #tpu.memory_space<vmem>>, vector<256x128xf32>
    %c0_22 = arith.constant 0 : index
    %c0_23 = arith.constant 0 : index
    %49 = vector.load %arg5[%c0_22, %c0_23] : memref<256x128xf32, #tpu.memory_space<vmem>>, vector<256x128xf32>
    %cst_24 = arith.constant dense<0.000000e+00> : vector<256x128xf32>
    %50 = tpu.matmul %47, %49, %cst_24 {dimension_numbers = #tpu.dot_dimension_numbers<[1], [0], [0], [1], [0, 0, 1, 1], [], []>} : vector<256x256xf32>, vector<256x128xf32>, vector<256x128xf32> -> vector<256x128xf32>
    %51 = arith.addf %48, %50 : vector<256x128xf32>
    %c0_25 = arith.constant 0 : index
    %c0_26 = arith.constant 0 : index
    %52 = vector.load %arg8[%c0_25, %c0_26] : memref<256x128xf32, #tpu.memory_space<vmem>>, vector<256x128xf32>
    tpu.vector_store %arg8[%c0_25, %c0_26], %51 {strides = array<i32>} : memref<256x128xf32, #tpu.memory_space<vmem>>, vector<256x128xf32>,
    %c0_i32_27 = arith.constant 0 : i32
    %53 = arith.cmpi eq, %arg1, %c0_i32_27 : i32
    %54 = arith.extui %53 : i1 to i32
    %c0_i32_28 = arith.constant 0 : i32
    %55 = arith.cmpi ne, %54, %c0_i32_28 : i32
    scf.if %55 {
      %c0_29 = arith.constant 0 : index
      %c0_30 = arith.constant 0 : index
      %56 = vector.load %arg8[%c0_29, %c0_30] : memref<256x128xf32, #tpu.memory_space<vmem>>, vector<256x128xf32>
      %c0_31 = arith.constant 0 : index
      %c0_32 = arith.constant 0 : index
      %57 = vector.load %arg6[%c0_31, %c0_32] : memref<1x128xf32, #tpu.memory_space<vmem>>, vector<1x128xf32>
      %58 = vector.broadcast %57 : vector<1x128xf32> to vector<256x128xf32>
      %59 = arith.addf %56, %58 : vector<256x128xf32>
      %c0_33 = arith.constant 0 : index
      %c0_34 = arith.constant 0 : index
      %60 = vector.load %arg7[%c0_33, %c0_34] : memref<256x128xf32, #tpu.memory_space<vmem>>, vector<256x128xf32>
      tpu.vector_store %arg7[%c0_33, %c0_34], %59 {strides = array<i32>} : memref<256x128xf32, #tpu.memory_space<vmem>>, vector<256x128xf32>,
    } else {
    }
    return
  }
  func.func @transform_0(%arg0: i32, %arg1: i32) -> (i32, i32) {
    %c0_i32 = arith.constant 0 : i32
    %c0_i32_0 = arith.constant 0 : i32
    return %arg0, %c0_i32 : i32, i32
  }
  func.func @transform_1(%arg0: i32, %arg1: i32) -> (i32, i32) {
    %c0_i32 = arith.constant 0 : i32
    %c0_i32_0 = arith.constant 0 : i32
    return %c0_i32, %arg1 : i32, i32
  }
  func.func @transform_2(%arg0: i32, %arg1: i32) -> (i32, i32) {
    %c0_i32 = arith.constant 0 : i32
    %c0_i32_0 = arith.constant 0 : i32
    return %c0_i32, %arg1 : i32, i32
  }
  func.func @transform_3(%arg0: i32, %arg1: i32) -> (i32, i32) {
    %c0_i32 = arith.constant 0 : i32
    %c0_i32_0 = arith.constant 0 : i32
    return %arg1, %c0_i32 : i32, i32
  }
  func.func @transform_4(%arg0: i32, %arg1: i32) -> (i32, i32) {
    %c0_i32 = arith.constant 0 : i32
    %c0_i32_0 = arith.constant 0 : i32
    %c0_i32_1 = arith.constant 0 : i32
    return %c0_i32, %c0_i32_0 : i32, i32
  }
  func.func @transform_5(%arg0: i32, %arg1: i32) -> (i32, i32) {
    %c0_i32 = arith.constant 0 : i32
    %c0_i32_0 = arith.constant 0 : i32
    return %arg0, %c0_i32 : i32, i32
  }
}

</mosaic_0001>

<llo_original>
// kernel: mlp3d_forward.1
$region0: #{mlp3d_forward.1}
  #allocation0 [shape = 'u32[]', space=smem, size = 0x4, offset = 0x4, fixed_abs, tag = 'smem constant byte address 0x4 - core index']
  #allocation1 [shape = 'u32[144,128]{1,0:T(1,128)}', space=vmem, size = 0x12000, scoped, tag = 'internal scratch']
  #allocation2 [shape = 'f32[256,128]{1,0:T(8,128)}', space=vmem, size = 0x20000, scoped, tag = 'scratch operand']
  %s0 = inlined_call_operand.hbm [shape: f32[896,128], index: 0, kind: input, shape index: {}]
  %s1 = inlined_call_operand.hbm [shape: f32[128,256], index: 1, kind: input, shape index: {}]
  %s2 = inlined_call_operand.vmem [shape: f32[1,256], index: 2, kind: input, shape index: {}]
  %s3 = inlined_call_operand.hbm [shape: f32[256,128], index: 3, kind: input, shape index: {}]
  %s4 = inlined_call_operand.vmem [shape: f32[1,128], index: 4, kind: input, shape index: {}]
  %s5 = inlined_call_operand.hbm [shape: f32[896,128], index: 5, kind: output, shape index: {}]
  %s6 = sld [smem:[#allocation0]]
  $region73: #{mlp3d_forward.1} parent=0
    _
  %s8 = ssub.s32 1, %s6
  %s9 = scalar_select 0, %s8, %s6
  $region1: #{mlp3d_forward.1} parent=0
    #allocation3 [shape = 'u8[262144]{0}', space=vmem, size = 0x40000, scoped, tag = 'input window, operand 0']
    #allocation4 [shape = 's32[2]{0}', space=sflag, size = 0x8, scoped, tag = 'scoped memory for mlp3d_forward.1']
    #allocation5 [shape = 's32[2]{0}', space=sflag, size = 0x8, scoped, tag = 'scoped memory for mlp3d_forward.1']
    #allocation6 [shape = 'u8[131072]{0}', space=vmem, size = 0x20000, scoped, tag = 'input window, operand 1, single buffered']
    #allocation7 [shape = 's32[1]{0}', space=sflag, size = 0x4, scoped, tag = 'scoped memory for mlp3d_forward.1']
    #allocation8 [shape = 'u8[131072]{0}', space=vmem, size = 0x20000, scoped, tag = 'input window, operand 3, single buffered']
    #allocation9 [shape = 'u8[262144]{0}', space=vmem, size = 0x40000, scoped, tag = 'output window, operand 0']
    %10 = vsyncpa [#allocation4], 0
    %s11 = scalar_lea.sflag [#allocation4], 1
    %12 = vsyncpa %s11, 0
    %13 = vsyncpa [#allocation7], 0
    %14 = vsyncpa [#allocation5], 0
    %s15 = scalar_lea.sflag [#allocation5], 1
    %16 = vsyncpa %s15, 0
    loop: start=0, step=1, limit=6
    $region2: #{mlp3d_forward.1} parent=1 // loop_pre_header
      _
    $region3: #{mlp3d_forward.1} parent=1 // loop_header
      %s18 = sphi 0, %s22
      %p19 = scmp.ge.s32.totalorder %s18, 6
      %s25 = sphi 0, %s37
      %s26 = sphi 0, %s33
      %s27 = sphi 0, %s25
      %s28 = sphi 0, %s26
      %s29 = sphi 0, %s27
      %s30 = sphi 0, %s28
      %s40 = sphi 0, %s42
      %s43 = sphi 0, %s40
      %s44 = sphi 0, %s43
      %s60 = sphi 0, %s44
      %s66 = sphi 0, %s68
      %s69 = sphi 0, %s66
      %s70 = sphi 0, %s69
      %s86 = sphi 0, %s70
      %s92 = sphi 0, %s94
      %s95 = sphi 0, %s92
      %s96 = sphi 0, %s95
      %s112 = sphi 0, %s96
      %s118 = sphi 0, %s120
      %s121 = sphi 0, %s118
      %s122 = sphi 0, %s121
      %s138 = sphi 0, %s122
      %s142 = sphi 0, %s142
      %s144 = sphi 0, %s142
      %s145 = sphi 0, %s144
      %s159 = sphi 0, %s145
      %s165 = sphi 0, %s167
      %s168 = sphi 0, %s165
      %s169 = sphi 0, %s168
      %s185 = sphi 0, %s169
    $region4: #{mlp3d_forward.1} parent=1 // loop_header_branch
      %21 = sbr.rel (%p19) target = $region8
    $region5: #{mlp3d_forward.1} parent=1 // loop_body
      %s23 = ssub.s32 %s18, 1
      %s24 = ssub.s32 %s18, 2
      %s31 = sadd.s32 1, %s26
      %p32 = scmp.ge.s32.totalorder %s31, 1
      %s33 = scalar_select %p32, 0, %s31
      %s34 = sadd.s32 1, %s25
      %s35 = scalar_select %p32, %s34, %s25
      %p36 = scmp.ge.s32.totalorder %s35, 4
      %s37 = scalar_select %p36, 0, %s35
      %s38 = ssub.s32 %s25, %s37
      %p39 = scmp.eq.s32.totalorder %s38, 0
      %s41 = sadd.s32 %s40, 1
      %s42 = scalar_select %p39, %s40, %s41
      %p45 = pneg %p39
      %p46 = scmp.eq.s32.totalorder %s18, 3
      %p47 = por %p45, %p46
      %p48 = scmp.ne.s32.totalorder %s40, %s43
      %p49 = scmp.eq.s32.totalorder %s18, 0
      %p50 = por %p48, %p49
      %p51 = scmp.ne.s32.totalorder %s40, %s43
      %p52 = scmp.eq.s32.totalorder %s23, 3
      %p53 = por %p51, %p52
      %p54 = scmp.ne.s32.totalorder %s43, %s44
      %p55 = scmp.eq.s32.totalorder %s23, 0
      %p56 = por %p54, %p55
      %p57 = scmp.ne.s32.totalorder %s43, %s44
      %p58 = scmp.eq.s32.totalorder %s24, 3
      %p59 = por %p57, %p58
      %p61 = scmp.ne.s32.totalorder %s44, %s60
      %p62 = scmp.eq.s32.totalorder %s24, 0
      %p63 = por %p61, %p62
      %s64 = ssub.s32 %s26, %s33
      %p65 = scmp.eq.s32.totalorder %s64, 0
      %s67 = sadd.s32 %s66, 1
      %s68 = scalar_select %p65, %s66, %s67
      %p71 = pneg %p65
      %p72 = scmp.eq.s32.totalorder %s18, 3
      %p73 = por %p71, %p72
      %p74 = scmp.ne.s32.totalorder %s66, %s69
      %p75 = scmp.eq.s32.totalorder %s18, 0
      %p76 = por %p74, %p75
      %p77 = scmp.ne.s32.totalorder %s66, %s69
      %p78 = scmp.eq.s32.totalorder %s23, 3
      %p79 = por %p77, %p78
      %p80 = scmp.ne.s32.totalorder %s69, %s70
      %p81 = scmp.eq.s32.totalorder %s23, 0
      %p82 = por %p80, %p81
      %p83 = scmp.ne.s32.totalorder %s69, %s70
      %p84 = scmp.eq.s32.totalorder %s24, 3
      %p85 = por %p83, %p84
      %p87 = scmp.ne.s32.totalorder %s70, %s86
      %p88 = scmp.eq.s32.totalorder %s24, 0
      %p89 = por %p87, %p88
      %s90 = ssub.s32 %s26, %s33
      %p91 = scmp.eq.s32.totalorder %s90, 0
      %s93 = sadd.s32 %s92, 1
      %s94 = scalar_select %p91, %s92, %s93
      %p97 = pneg %p91
      %p98 = scmp.eq.s32.totalorder %s18, 3
      %p99 = por %p97, %p98
      %p100 = scmp.ne.s32.totalorder %s92, %s95
      %p101 = scmp.eq.s32.totalorder %s18, 0
      %p102 = por %p100, %p101
      %p103 = scmp.ne.s32.totalorder %s92, %s95
      %p104 = scmp.eq.s32.totalorder %s23, 3
      %p105 = por %p103, %p104
      %p106 = scmp.ne.s32.totalorder %s95, %s96
      %p107 = scmp.eq.s32.totalorder %s23, 0
      %p108 = por %p106, %p107
      %p109 = scmp.ne.s32.totalorder %s95, %s96
      %p110 = scmp.eq.s32.totalorder %s24, 3
      %p111 = por %p109, %p110
      %p113 = scmp.ne.s32.totalorder %s96, %s112
      %p114 = scmp.eq.s32.totalorder %s24, 0
      %p115 = por %p113, %p114
      %s116 = ssub.s32 %s26, %s33
      %p117 = scmp.eq.s32.totalorder %s116, 0
      %s119 = sadd.s32 %s118, 1
      %s120 = scalar_select %p117, %s118, %s119
      %p123 = pneg %p117
      %p124 = scmp.eq.s32.totalorder %s18, 3
      %p125 = por %p123, %p124
      %p126 = scmp.ne.s32.totalorder %s118, %s121
      %p127 = scmp.eq.s32.totalorder %s18, 0
      %p128 = por %p126, %p127
      %p129 = scmp.ne.s32.totalorder %s118, %s121
      %p130 = scmp.eq.s32.totalorder %s23, 3
      %p131 = por %p129, %p130
      %p132 = scmp.ne.s32.totalorder %s121, %s122
      %p133 = scmp.eq.s32.totalorder %s23, 0
      %p134 = por %p132, %p133
      %p135 = scmp.ne.s32.totalorder %s121, %s122
      %p136 = scmp.eq.s32.totalorder %s24, 3
      %p137 = por %p135, %p136
      %p139 = scmp.ne.s32.totalorder %s122, %s138
      %p140 = scmp.eq.s32.totalorder %s24, 0
      %p141 = por %p139, %p140
      %s143 = sadd.s32 %s142, 1
      %p146 = scmp.eq.s32.totalorder %s18, 3
      %p147 = scmp.ne.s32.totalorder %s142, %s144
      %p148 = scmp.eq.s32.totalorder %s18, 0
      %p149 = por %p147, %p148
      %p150 = scmp.ne.s32.totalorder %s142, %s144
      %p151 = scmp.eq.s32.totalorder %s23, 3
      %p152 = por %p150, %p151
      %p153 = scmp.ne.s32.totalorder %s144, %s145
      %p154 = scmp.eq.s32.totalorder %s23, 0
      %p155 = por %p153, %p154
      %p156 = scmp.ne.s32.totalorder %s144, %s145
      %p157 = scmp.eq.s32.totalorder %s24, 3
      %p158 = por %p156, %p157
      %p160 = scmp.ne.s32.totalorder %s145, %s159
      %p161 = scmp.eq.s32.totalorder %s24, 0
      %p162 = por %p160, %p161
      %s163 = ssub.s32 %s25, %s37
      %p164 = scmp.eq.s32.totalorder %s163, 0
      %s166 = sadd.s32 %s165, 1
      %s167 = scalar_select %p164, %s165, %s166
      %p170 = pneg %p164
      %p171 = scmp.eq.s32.totalorder %s18, 3
      %p172 = por %p170, %p171
      %p173 = scmp.ne.s32.totalorder %s165, %s168
      %p174 = scmp.eq.s32.totalorder %s18, 0
      %p175 = por %p173, %p174
      %p176 = scmp.ne.s32.totalorder %s165, %s168
      %p177 = scmp.eq.s32.totalorder %s23, 3
      %p178 = por %p176, %p177
      %p179 = scmp.ne.s32.totalorder %s168, %s169
      %p180 = scmp.eq.s32.totalorder %s23, 0
      %p181 = por %p179, %p180
      %p182 = scmp.ne.s32.totalorder %s168, %s169
      %p183 = scmp.eq.s32.totalorder %s24, 3
      %p184 = por %p182, %p183
      %p186 = scmp.ne.s32.totalorder %s169, %s185
      %p187 = scmp.eq.s32.totalorder %s24, 0
      %p188 = por %p186, %p187
      %p189 = scmp.le.s32.totalorder 1, %s18
      %p190 = scmp.lt.s32.totalorder %s18, 5
      %p191 = pnand %p189, %p190
      %p192 = pneg %p191
      // Predicated region
      $region9: #{mlp3d_forward.1} parent=5 // pred_check
        _
      $region10: #{mlp3d_forward.1} parent=5 // pred_check_branch
        %194 = sbr.rel (%p191) target = $region12
      $region11: #{mlp3d_forward.1} parent=5 // pred_region
        %s195 = ssub.s32 %s18, 1
        // Predicated region
        $region13: #{mlp3d_forward.1} parent=11 // pred_check
          %p196 = pneg %p82
        $region14: #{mlp3d_forward.1} parent=11 // pred_check_branch
          %198 = sbr.rel (%p196) target = $region16
        $region15: #{mlp3d_forward.1} parent=11 // pred_region
          %s199 = smul.u32 2, %s28
          %s201 = ssub.s32 4096, 4096
          %202 = vsyncadd [#allocation7], %s201
          %s203 = smul.addr %s199, 128
          %s204 = scalar_lea.hbm %s1, %s203
          %s205 = sshll.u32 [#allocation6], 4
          %s206 = int_to_ptr.vmem [resolvable:$true] %s205
          %211 = dma.hbm_to_vmem [thread:$0]  %s204, 4096, %s206, [#allocation7], 256, 256, 16
        $region16: #{mlp3d_forward.1} parent=11 // pred_fallthru
          _
        // Predicated region
        $region17: #{mlp3d_forward.1} parent=11 // pred_check
          %p212 = pneg %p108
        $region18: #{mlp3d_forward.1} parent=11 // pred_check_branch
          %214 = sbr.rel (%p212) target = $region20
        $region19: #{mlp3d_forward.1} parent=11 // pred_region
          %s215 = smul.u32 2, %s28
          %p216 = scmp.lt.s32.totalorder %s215, 1
          %s217 = scalar_select %p216, %s215, 1
          %s218 = scalar_lea.vmem %s2, %s217
          %s219 = smul.u32 2, %s28
        $region20: #{mlp3d_forward.1} parent=11 // pred_fallthru
          _
        // Predicated region
        $region21: #{mlp3d_forward.1} parent=11 // pred_check
          %p220 = pneg %p134
        $region22: #{mlp3d_forward.1} parent=11 // pred_check_branch
          %222 = sbr.rel (%p220) target = $region24
        $region23: #{mlp3d_forward.1} parent=11 // pred_region
          %s223 = smul.u32 32, %s28
          %s225 = ssub.s32 4096, 4096
          %226 = vsyncadd [#allocation7], %s225
          %s227 = smul.addr %s223, 128
          %s228 = scalar_lea.hbm %s3, %s227
          %s229 = sshll.u32 [#allocation8], 4
          %s230 = int_to_ptr.vmem [resolvable:$true] %s229
          %235 = dma.hbm_to_vmem [thread:$0]  %s228, 4096, %s230, [#allocation7], 128, 128, 8
        $region24: #{mlp3d_forward.1} parent=11 // pred_fallthru
          _
        // Predicated region
        $region25: #{mlp3d_forward.1} parent=11 // pred_check
          %p236 = pneg %p155
        $region26: #{mlp3d_forward.1} parent=11 // pred_check_branch
          %238 = sbr.rel (%p236) target = $region28
        $region27: #{mlp3d_forward.1} parent=11 // pred_region
          _
        $region28: #{mlp3d_forward.1} parent=11 // pred_fallthru
          _
      $region12: #{mlp3d_forward.1} parent=5 // pred_fallthru
        _
      %p239 = scmp.lt.s32.totalorder %s18, 4
      // Predicated region
      $region29: #{mlp3d_forward.1} parent=5 // pred_check
        %p240 = pneg %p239
      $region30: #{mlp3d_forward.1} parent=5 // pred_check_branch
        %242 = sbr.rel (%p240) target = $region32
      $region31: #{mlp3d_forward.1} parent=5 // pred_region
        // Predicated region
        $region33: #{mlp3d_forward.1} parent=31 // pred_check
          %p243 = pneg %p50
        $region34: #{mlp3d_forward.1} parent=31 // pred_check_branch
          %245 = sbr.rel (%p243) target = $region36
        $region35: #{mlp3d_forward.1} parent=31 // pred_region
          %s246 = sand.u32 %s40, 1
          %s247 = scalar_lea.sflag [#allocation4], %s246
          %s248 = sand.u32 %s40, 1
          %s249 = smul.addr %s248, 256
          %s250 = scalar_lea.vmem [#allocation3], %s249
          %s251 = smul.u32 32, %s25
          %s252 = ssub.s32 112, %s251
          %p253 = scmp.lt.s32.totalorder %s252, 32
          %s254 = scalar_select %p253, %s252, 32
          %s255 = smul.u32 128, %s254
          %s257 = ssub.s32 4096, %s255
          %258 = vsyncadd %s247, %s257
          %p259 = scmp.ne.s32.totalorder 0, %s255
          %s260 = smul.addr %s251, 128
          %s261 = scalar_lea.hbm %s0, %s260
          %s262 = smul.u32 8, %s254
          %s263 = sshll.u32 %s250, 4
          %s264 = int_to_ptr.vmem [resolvable:$true] %s263
          %s265 = sshll.u32 %s262, 4
          %269 = dma.hbm_to_vmem [thread:$0]  (%p259), %s261, %s265, %s264, %s247, 128, 128, 8
        $region36: #{mlp3d_forward.1} parent=31 // pred_fallthru
          _
      $region32: #{mlp3d_forward.1} parent=5 // pred_fallthru
        _
      %p270 = scmp.le.s32.totalorder 1, %s18
      %p271 = scmp.lt.s32.totalorder %s18, 5
      %p272 = pnand %p270, %p271
      %p273 = pneg %p272
      // Predicated region
      $region37: #{mlp3d_forward.1} parent=5 // pred_check
        _
      $region38: #{mlp3d_forward.1} parent=5 // pred_check_branch
        %275 = sbr.rel (%p272) target = $region40
      $region39: #{mlp3d_forward.1} parent=5 // pred_region
        %s276 = ssub.s32 %s18, 1
        %s277 = sand.u32 %s43, 1
        %s278 = scalar_lea.sflag [#allocation4], %s277
        %s279 = sand.u32 %s43, 1
        %s280 = smul.addr %s279, 256
        %s281 = scalar_lea.vmem [#allocation3], %s280
        // Predicated region
        $region41: #{mlp3d_forward.1} parent=39 // pred_check
          %p282 = pneg %p56
        $region42: #{mlp3d_forward.1} parent=39 // pred_check_branch
          %284 = sbr.rel (%p282) target = $region44
        $region43: #{mlp3d_forward.1} parent=39 // pred_region
          %285 = dma.done %s278, 4096
        $region44: #{mlp3d_forward.1} parent=39 // pred_fallthru
          _
        // Predicated region
        $region45: #{mlp3d_forward.1} parent=39 // pred_check
          %p286 = pneg %p82
        $region46: #{mlp3d_forward.1} parent=39 // pred_check_branch
          %288 = sbr.rel (%p286) target = $region48
        $region47: #{mlp3d_forward.1} parent=39 // pred_region
          %289 = dma.done [#allocation7], 4096
        $region48: #{mlp3d_forward.1} parent=39 // pred_fallthru
          _
        // Predicated region
        $region49: #{mlp3d_forward.1} parent=39 // pred_check
          %p290 = pneg %p134
        $region50: #{mlp3d_forward.1} parent=39 // pred_check_branch
          %292 = sbr.rel (%p290) target = $region52
        $region51: #{mlp3d_forward.1} parent=39 // pred_region
          %293 = dma.done [#allocation7], 4096
        $region52: #{mlp3d_forward.1} parent=39 // pred_fallthru
          _
        %s294 = sand.u32 %s43, 1
        %s295 = scalar_lea.sflag [#allocation4], %s294
        %s296 = sand.u32 %s43, 1
        %s297 = smul.addr %s296, 256
        %s298 = scalar_lea.vmem [#allocation3], %s297
        %p299 = pneg %p56
        %p300 = pneg %p53
        %p301 = pneg %p82
        %p302 = pneg %p79
        %s303 = smul.u32 2, %s28
        %p304 = scmp.lt.s32.totalorder %s303, 1
        %s305 = scalar_select %p304, %s303, 1
        %s306 = scalar_lea.vmem %s2, %s305
        %p307 = pneg %p108
        %p308 = pneg %p105
        %p309 = pneg %p134
        %p310 = pneg %p131
        %p311 = pneg %p155
        %p312 = pneg %p152
        %p313 = pneg %p181
        %p314 = pneg %p178
        %s315 = sand.u32 %s168, 1
        %s316 = scalar_lea.sflag [#allocation5], %s315
        %s317 = sand.u32 %s168, 1
        %s318 = smul.addr %s317, 256
        %s319 = scalar_lea.vmem [#allocation9], %s318
        %s320 = smul.u32 32, %s27
        %s321 = ssub.s32 112, %s320
        %p322 = scmp.lt.s32.totalorder %s321, 32
        %s323 = scalar_select %p322, %s321, 32
        %s324 = smul.u32 128, %s323
        %s325 = smul.u32 2, %s28
        %s326 = smul.u32 2, %s28
        %p327 = scmp.lt.s32.totalorder %s326, 1
        %s328 = scalar_select %p327, %s326, 1
        %s329 = scalar_lea.vmem %s2, %s328
        %s330 = smul.u32 2, %s28
        %s331 = smul.u32 32, %s28
        %s332 = smul.u32 32, %s27
        %s333 = ssub.s32 112, %s332
        %p334 = scmp.lt.s32.totalorder %s333, 32
        %s335 = scalar_select %p334, %s333, 32
        %s336 = smul.u32 128, %s335
        %p337 = scmp.eq.s32.totalorder %s28, 0
        // Predicated region
        $region53: #{mlp3d_forward.1} parent=39 // pred_check
          %p338 = pneg %p337
        $region54: #{mlp3d_forward.1} parent=39 // pred_check_branch
          %340 = sbr.rel (%p338) target = $region56
        $region55: #{mlp3d_forward.1} parent=39 // pred_region
          %341 = vst [vmem:[#allocation2] sm:$0xff] 0.0
          %342 = vst [vmem:[#allocation2 + $0x8] sm:$0xff] 0.0
          %343 = vst [vmem:[#allocation2 + $0x10] sm:$0xff] 0.0
          %344 = vst [vmem:[#allocation2 + $0x18] sm:$0xff] 0.0
          %345 = vst [vmem:[#allocation2 + $0x20] sm:$0xff] 0.0
          %346 = vst [vmem:[#allocation2 + $0x28] sm:$0xff] 0.0
          %347 = vst [vmem:[#allocation2 + $0x30] sm:$0xff] 0.0
          %348 = vst [vmem:[#allocation2 + $0x38] sm:$0xff] 0.0
          %349 = vst [vmem:[#allocation2 + $0x40] sm:$0xff] 0.0
          %350 = vst [vmem:[#allocation2 + $0x48] sm:$0xff] 0.0
          %351 = vst [vmem:[#allocation2 + $0x50] sm:$0xff] 0.0
          %352 = vst [vmem:[#allocation2 + $0x58] sm:$0xff] 0.0
          %353 = vst [vmem:[#allocation2 + $0x60] sm:$0xff] 0.0
          %354 = vst [vmem:[#allocation2 + $0x68] sm:$0xff] 0.0
          %355 = vst [vmem:[#allocation2 + $0x70] sm:$0xff] 0.0
          %356 = vst [vmem:[#allocation2 + $0x78] sm:$0xff] 0.0
          %357 = vst [vmem:[#allocation2 + $0x80] sm:$0xff] 0.0
          %358 = vst [vmem:[#allocation2 + $0x88] sm:$0xff] 0.0
          %359 = vst [vmem:[#allocation2 + $0x90] sm:$0xff] 0.0
          %360 = vst [vmem:[#allocation2 + $0x98] sm:$0xff] 0.0
          %361 = vst [vmem:[#allocation2 + $0xa0] sm:$0xff] 0.0
          %362 = vst [vmem:[#allocation2 + $0xa8] sm:$0xff] 0.0
          %363 = vst [vmem:[#allocation2 + $0xb0] sm:$0xff] 0.0
          %364 = vst [vmem:[#allocation2 + $0xb8] sm:$0xff] 0.0
          %365 = vst [vmem:[#allocation2 + $0xc0] sm:$0xff] 0.0
          %366 = vst [vmem:[#allocation2 + $0xc8] sm:$0xff] 0.0
          %367 = vst [vmem:[#allocation2 + $0xd0] sm:$0xff] 0.0
          %368 = vst [vmem:[#allocation2 + $0xd8] sm:$0xff] 0.0
          %369 = vst [vmem:[#allocation2 + $0xe0] sm:$0xff] 0.0
          %370 = vst [vmem:[#allocation2 + $0xe8] sm:$0xff] 0.0
          %371 = vst [vmem:[#allocation2 + $0xf0] sm:$0xff] 0.0
          %372 = vst [vmem:[#allocation2 + $0xf8] sm:$0xff] 0.0
        $region56: #{mlp3d_forward.1} parent=39 // pred_fallthru
          _
        %v373 = vld [vmem:[%s281] sm:$0xff]
        %v374 = vld [vmem:[%s281 + $0x8] sm:$0xff]
        %v375 = vld [vmem:[%s281 + $0x10] sm:$0xff]
        %v376 = vld [vmem:[%s281 + $0x18] sm:$0xff]
        %v377 = vld [vmem:[%s281 + $0x20] sm:$0xff]
        %v378 = vld [vmem:[%s281 + $0x28] sm:$0xff]
        %v379 = vld [vmem:[%s281 + $0x30] sm:$0xff]
        %v380 = vld [vmem:[%s281 + $0x38] sm:$0xff]
        %v381 = vld [vmem:[%s281 + $0x40] sm:$0xff]
        %v382 = vld [vmem:[%s281 + $0x48] sm:$0xff]
        %v383 = vld [vmem:[%s281 + $0x50] sm:$0xff]
        %v384 = vld [vmem:[%s281 + $0x58] sm:$0xff]
        %v385 = vld [vmem:[%s281 + $0x60] sm:$0xff]
        %v386 = vld [vmem:[%s281 + $0x68] sm:$0xff]
        %v387 = vld [vmem:[%s281 + $0x70] sm:$0xff]
        %v388 = vld [vmem:[%s281 + $0x78] sm:$0xff]
        %v389 = vld [vmem:[%s281 + $0x80] sm:$0xff]
        %v390 = vld [vmem:[%s281 + $0x88] sm:$0xff]
        %v391 = vld [vmem:[%s281 + $0x90] sm:$0xff]
        %v392 = vld [vmem:[%s281 + $0x98] sm:$0xff]
        %v393 = vld [vmem:[%s281 + $0xa0] sm:$0xff]
        %v394 = vld [vmem:[%s281 + $0xa8] sm:$0xff]
        %v395 = vld [vmem:[%s281 + $0xb0] sm:$0xff]
        %v396 = vld [vmem:[%s281 + $0xb8] sm:$0xff]
        %v397 = vld [vmem:[%s281 + $0xc0] sm:$0xff]
        %v398 = vld [vmem:[%s281 + $0xc8] sm:$0xff]
        %v399 = vld [vmem:[%s281 + $0xd0] sm:$0xff]
        %v400 = vld [vmem:[%s281 + $0xd8] sm:$0xff]
        %v401 = vld [vmem:[%s281 + $0xe0] sm:$0xff]
        %v402 = vld [vmem:[%s281 + $0xe8] sm:$0xff]
        %v403 = vld [vmem:[%s281 + $0xf0] sm:$0xff]
        %v404 = vld [vmem:[%s281 + $0xf8] sm:$0xff]
        %v405 = vld [vmem:[#allocation6] sm:$0xff]
        %v406 = vld [vmem:[#allocation6 + $0x8] sm:$0xff]
        %v407 = vld [vmem:[#allocation6 + $0x10] sm:$0xff]
        %v408 = vld [vmem:[#allocation6 + $0x18] sm:$0xff]
        %v409 = vld [vmem:[#allocation6 + $0x20] sm:$0xff]
        %v410 = vld [vmem:[#allocation6 + $0x28] sm:$0xff]
        %v411 = vld [vmem:[#allocation6 + $0x30] sm:$0xff]
        %v412 = vld [vmem:[#allocation6 + $0x38] sm:$0xff]
        %v413 = vld [vmem:[#allocation6 + $0x40] sm:$0xff]
        %v414 = vld [vmem:[#allocation6 + $0x48] sm:$0xff]
        %v415 = vld [vmem:[#allocation6 + $0x50] sm:$0xff]
        %v416 = vld [vmem:[#allocation6 + $0x58] sm:$0xff]
        %v417 = vld [vmem:[#allocation6 + $0x60] sm:$0xff]
        %v418 = vld [vmem:[#allocation6 + $0x68] sm:$0xff]
        %v419 = vld [vmem:[#allocation6 + $0x70] sm:$0xff]
        %v420 = vld [vmem:[#allocation6 + $0x78] sm:$0xff]
        %v421 = vld [vmem:[#allocation6 + $0x80] sm:$0xff]
        %v422 = vld [vmem:[#allocation6 + $0x88] sm:$0xff]
        %v423 = vld [vmem:[#allocation6 + $0x90] sm:$0xff]
        %v424 = vld [vmem:[#allocation6 + $0x98] sm:$0xff]
        %v425 = vld [vmem:[#allocation6 + $0xa0] sm:$0xff]
        %v426 = vld [vmem:[#allocation6 + $0xa8] sm:$0xff]
        %v427 = vld [vmem:[#allocation6 + $0xb0] sm:$0xff]
        %v428 = vld [vmem:[#allocation6 + $0xb8] sm:$0xff]
        %v429 = vld [vmem:[#allocation6 + $0xc0] sm:$0xff]
        %v430 = vld [vmem:[#allocation6 + $0xc8] sm:$0xff]
        %v431 = vld [vmem:[#allocation6 + $0xd0] sm:$0xff]
        %v432 = vld [vmem:[#allocation6 + $0xd8] sm:$0xff]
        %v433 = vld [vmem:[#allocation6 + $0xe0] sm:$0xff]
        %v434 = vld [vmem:[#allocation6 + $0xe8] sm:$0xff]
        %v435 = vld [vmem:[#allocation6 + $0xf0] sm:$0xff]
        %v436 = vld [vmem:[#allocation6 + $0xf8] sm:$0xff]
        %v437 = vld [vmem:[%s329] sm:$0x3]
        %v439 = vlaneseq
        %v440 = vshrl.u32 %v439, 7
        %v441 = vsub.s32 0, %v440
        %v442 = vrot.slane %v437, %v441
        %v443 = vlaneseq
        %v444 = vshrl.u32 %v443, 7
        %v445 = vsub.s32 1, %v444
        %v446 = vrot.slane %v437, %v445
        %449 = vmatprep.subr.mxu0 %v406
        %450 = vmatpush1.msra.mxu0 %v405
        %451 = vmatprep.subr.mxu0 %v408
        %452 = vmatpush1.msra.mxu0 %v407
        %453 = vmatprep.subr.mxu0 %v410
        %454 = vmatpush1.msra.mxu0 %v409
        %455 = vmatprep.subr.mxu0 %v412
        %456 = vmatpush1.msra.mxu0 %v411
        %457 = vmatprep.subr.mxu0 %v414
        %458 = vmatpush1.msra.mxu0 %v413
        %459 = vmatprep.subr.mxu0 %v416
        %460 = vmatpush1.msra.mxu0 %v415
        %461 = vmatprep.subr.mxu0 %v418
        %462 = vmatpush1.msra.mxu0 %v417
        %463 = vmatprep.subr.mxu0 %v420
        %464 = vmatpush1.msra.mxu0 %v419
        %465 = vmatprep.subr.mxu0 %v422
        %466 = vmatpush1.msra.mxu0 %v421
        %467 = vmatprep.subr.mxu0 %v424
        %468 = vmatpush1.msra.mxu0 %v423
        %469 = vmatprep.subr.mxu0 %v426
        %470 = vmatpush1.msra.mxu0 %v425
        %471 = vmatprep.subr.mxu0 %v428
        %472 = vmatpush1.msra.mxu0 %v427
        %473 = vmatprep.subr.mxu0 %v430
        %474 = vmatpush1.msra.mxu0 %v429
        %475 = vmatprep.subr.mxu0 %v432
        %476 = vmatpush1.msra.mxu0 %v431
        %477 = vmatprep.subr.mxu0 %v434
        %478 = vmatpush1.msra.mxu0 %v433
        %479 = vmatprep.subr.mxu0 %v436
        %480 = vmatpush1.msra.mxu0 %v435
        %481 = vmatprep.subr.mxu0 0.0
        %482 = vmatpush1.msra.mxu0 0.0
        %483 = vmatprep.subr.mxu0 0.0
        %484 = vmatpush1.msra.mxu0 0.0
        %485 = vmatprep.subr.mxu0 0.0
        %486 = vmatpush1.msra.mxu0 0.0
        %487 = vmatprep.subr.mxu0 0.0
        %488 = vmatpush1.msra.mxu0 0.0
        %489 = vmatprep.subr.mxu0 0.0
        %490 = vmatpush1.msra.mxu0 0.0
        %491 = vmatprep.subr.mxu0 0.0
        %492 = vmatpush1.msra.mxu0 0.0
        %493 = vmatprep.subr.mxu0 0.0
        %494 = vmatpush1.msra.mxu0 0.0
        %495 = vmatprep.subr.mxu0 0.0
        %496 = vmatpush1.msra.mxu0 0.0
        %497 = vmatprep.subr.mxu0 0.0
        %498 = vmatpush1.msra.mxu0 0.0
        %499 = vmatprep.subr.mxu0 0.0
        %500 = vmatpush1.msra.mxu0 0.0
        %501 = vmatprep.subr.mxu0 0.0
        %502 = vmatpush1.msra.mxu0 0.0
        %503 = vmatprep.subr.mxu0 0.0
        %504 = vmatpush1.msra.mxu0 0.0
        %505 = vmatprep.subr.mxu0 0.0
        %506 = vmatpush1.msra.mxu0 0.0
        %507 = vmatprep.subr.mxu0 0.0
        %508 = vmatpush1.msra.mxu0 0.0
        %509 = vmatprep.subr.mxu0 0.0
        %510 = vmatpush1.msra.mxu0 0.0
        %511 = vmatprep.subr.mxu0 0.0
        %512 = vmatpush1.msra.mxu0 0.0
        %513 = vmatprep.mubr.f32.mxu0 0.0
        %514 = vmatmul.mubr.f32.gmra.mrb[0].mxu0 %v373
        %v515 = vpop.f32.mrb[0].mxu0
        %v516 = vadd.f32 %v442, %v515
        %v517 = vpop.f32.mrb[0].mxu0
        %v518 = vadd.f32 %v446, %v517
        %519 = vmatprep.mubr.f32.mxu0 0.0
        %520 = vmatmul.mubr.f32.gmra.mrb[0].mxu0 %v374
        %v521 = vpop.f32.mrb[0].mxu0
        %v522 = vadd.f32 %v442, %v521
        %v523 = vpop.f32.mrb[0].mxu0
        %v524 = vadd.f32 %v446, %v523
        %525 = vmatprep.mubr.f32.mxu0 0.0
        %526 = vmatmul.mubr.f32.gmra.mrb[0].mxu0 %v375
        %v527 = vpop.f32.mrb[0].mxu0
        %v528 = vadd.f32 %v442, %v527
        %v529 = vpop.f32.mrb[0].mxu0
        %v530 = vadd.f32 %v446, %v529
        %531 = vmatprep.mubr.f32.mxu0 0.0
        %532 = vmatmul.mubr.f32.gmra.mrb[0].mxu0 %v376
        %v533 = vpop.f32.mrb[0].mxu0
        %v534 = vadd.f32 %v442, %v533
        %v535 = vpop.f32.mrb[0].mxu0
        %v536 = vadd.f32 %v446, %v535
        %537 = vmatprep.mubr.f32.mxu0 0.0
        %538 = vmatmul.mubr.f32.gmra.mrb[0].mxu0 %v377
        %v539 = vpop.f32.mrb[0].mxu0
        %v540 = vadd.f32 %v442, %v539
        %v541 = vpop.f32.mrb[0].mxu0
        %v542 = vadd.f32 %v446, %v541
        %543 = vmatprep.mubr.f32.mxu0 0.0
        %544 = vmatmul.mubr.f32.gmra.mrb[0].mxu0 %v378
        %v545 = vpop.f32.mrb[0].mxu0
        %v546 = vadd.f32 %v442, %v545
        %v547 = vpop.f32.mrb[0].mxu0
        %v548 = vadd.f32 %v446, %v547
        %549 = vmatprep.mubr.f32.mxu0 0.0
        %550 = vmatmul.mubr.f32.gmra.mrb[0].mxu0 %v379
        %v551 = vpop.f32.mrb[0].mxu0
        %v552 = vadd.f32 %v442, %v551
        %v553 = vpop.f32.mrb[0].mxu0
        %v554 = vadd.f32 %v446, %v553
        %555 = vmatprep.mubr.f32.mxu0 0.0
        %556 = vmatmul.mubr.f32.gmra.mrb[0].mxu0 %v380
        %v557 = vpop.f32.mrb[0].mxu0
        %v558 = vadd.f32 %v442, %v557
        %v559 = vpop.f32.mrb[0].mxu0
        %v560 = vadd.f32 %v446, %v559
        %561 = vmatprep.mubr.f32.mxu0 0.0
        %562 = vmatmul.mubr.f32.gmra.mrb[0].mxu0 %v381
        %v563 = vpop.f32.mrb[0].mxu0
        %v564 = vadd.f32 %v442, %v563
        %v565 = vpop.f32.mrb[0].mxu0
        %v566 = vadd.f32 %v446, %v565
        %567 = vmatprep.mubr.f32.mxu0 0.0
        %568 = vmatmul.mubr.f32.gmra.mrb[0].mxu0 %v382
        %v569 = vpop.f32.mrb[0].mxu0
        %v570 = vadd.f32 %v442, %v569
        %v571 = vpop.f32.mrb[0].mxu0
        %v572 = vadd.f32 %v446, %v571
        %573 = vmatprep.mubr.f32.mxu0 0.0
        %574 = vmatmul.mubr.f32.gmra.mrb[0].mxu0 %v383
        %v575 = vpop.f32.mrb[0].mxu0
        %v576 = vadd.f32 %v442, %v575
        %v577 = vpop.f32.mrb[0].mxu0
        %v578 = vadd.f32 %v446, %v577
        %579 = vmatprep.mubr.f32.mxu0 0.0
        %580 = vmatmul.mubr.f32.gmra.mrb[0].mxu0 %v384
        %v581 = vpop.f32.mrb[0].mxu0
        %v582 = vadd.f32 %v442, %v581
        %v583 = vpop.f32.mrb[0].mxu0
        %v584 = vadd.f32 %v446, %v583
        %585 = vmatprep.mubr.f32.mxu0 0.0
        %586 = vmatmul.mubr.f32.gmra.mrb[0].mxu0 %v385
        %v587 = vpop.f32.mrb[0].mxu0
        %v588 = vadd.f32 %v442, %v587
        %v589 = vpop.f32.mrb[0].mxu0
        %v590 = vadd.f32 %v446, %v589
        %591 = vmatprep.mubr.f32.mxu0 0.0
        %592 = vmatmul.mubr.f32.gmra.mrb[0].mxu0 %v386
        %v593 = vpop.f32.mrb[0].mxu0
        %v594 = vadd.f32 %v442, %v593
        %v595 = vpop.f32.mrb[0].mxu0
        %v596 = vadd.f32 %v446, %v595
        %597 = vmatprep.mubr.f32.mxu0 0.0
        %598 = vmatmul.mubr.f32.gmra.mrb[0].mxu0 %v387
        %v599 = vpop.f32.mrb[0].mxu0
        %v600 = vadd.f32 %v442, %v599
        %v601 = vpop.f32.mrb[0].mxu0
        %v602 = vadd.f32 %v446, %v601
        %603 = vmatprep.mubr.f32.mxu0 0.0
        %604 = vmatmul.mubr.f32.gmra.mrb[0].mxu0 %v388
        %v605 = vpop.f32.mrb[0].mxu0
        %v606 = vadd.f32 %v442, %v605
        %v607 = vpop.f32.mrb[0].mxu0
        %v608 = vadd.f32 %v446, %v607
        %609 = vmatprep.mubr.f32.mxu0 0.0
        %610 = vmatmul.mubr.f32.gmra.mrb[0].mxu0 %v389
        %v611 = vpop.f32.mrb[0].mxu0
        %v612 = vadd.f32 %v442, %v611
        %v613 = vpop.f32.mrb[0].mxu0
        %v614 = vadd.f32 %v446, %v613
        %615 = vmatprep.mubr.f32.mxu0 0.0
        %616 = vmatmul.mubr.f32.gmra.mrb[0].mxu0 %v390
        %v617 = vpop.f32.mrb[0].mxu0
        %v618 = vadd.f32 %v442, %v617
        %v619 = vpop.f32.mrb[0].mxu0
        %v620 = vadd.f32 %v446, %v619
        %621 = vmatprep.mubr.f32.mxu0 0.0
        %622 = vmatmul.mubr.f32.gmra.mrb[0].mxu0 %v391
        %v623 = vpop.f32.mrb[0].mxu0
        %v624 = vadd.f32 %v442, %v623
        %v625 = vpop.f32.mrb[0].mxu0
        %v626 = vadd.f32 %v446, %v625
        %627 = vmatprep.mubr.f32.mxu0 0.0
        %628 = vmatmul.mubr.f32.gmra.mrb[0].mxu0 %v392
        %v629 = vpop.f32.mrb[0].mxu0
        %v630 = vadd.f32 %v442, %v629
        %v631 = vpop.f32.mrb[0].mxu0
        %v632 = vadd.f32 %v446, %v631
        %633 = vmatprep.mubr.f32.mxu0 0.0
        %634 = vmatmul.mubr.f32.gmra.mrb[0].mxu0 %v393
        %v635 = vpop.f32.mrb[0].mxu0
        %v636 = vadd.f32 %v442, %v635
        %v637 = vpop.f32.mrb[0].mxu0
        %v638 = vadd.f32 %v446, %v637
        %639 = vmatprep.mubr.f32.mxu0 0.0
        %640 = vmatmul.mubr.f32.gmra.mrb[0].mxu0 %v394
        %v641 = vpop.f32.mrb[0].mxu0
        %v642 = vadd.f32 %v442, %v641
        %v643 = vpop.f32.mrb[0].mxu0
        %v644 = vadd.f32 %v446, %v643
        %645 = vmatprep.mubr.f32.mxu0 0.0
        %646 = vmatmul.mubr.f32.gmra.mrb[0].mxu0 %v395
        %v647 = vpop.f32.mrb[0].mxu0
        %v648 = vadd.f32 %v442, %v647
        %v649 = vpop.f32.mrb[0].mxu0
        %v650 = vadd.f32 %v446, %v649
        %651 = vmatprep.mubr.f32.mxu0 0.0
        %652 = vmatmul.mubr.f32.gmra.mrb[0].mxu0 %v396
        %v653 = vpop.f32.mrb[0].mxu0
        %v654 = vadd.f32 %v442, %v653
        %v655 = vpop.f32.mrb[0].mxu0
        %v656 = vadd.f32 %v446, %v655
        %657 = vmatprep.mubr.f32.mxu0 0.0
        %658 = vmatmul.mubr.f32.gmra.mrb[0].mxu0 %v397
        %v659 = vpop.f32.mrb[0].mxu0
        %v660 = vadd.f32 %v442, %v659
        %v661 = vpop.f32.mrb[0].mxu0
        %v662 = vadd.f32 %v446, %v661
        %663 = vmatprep.mubr.f32.mxu0 0.0
        %664 = vmatmul.mubr.f32.gmra.mrb[0].mxu0 %v398
        %v665 = vpop.f32.mrb[0].mxu0
        %v666 = vadd.f32 %v442, %v665
        %v667 = vpop.f32.mrb[0].mxu0
        %v668 = vadd.f32 %v446, %v667
        %669 = vmatprep.mubr.f32.mxu0 0.0
        %670 = vmatmul.mubr.f32.gmra.mrb[0].mxu0 %v399
        %v671 = vpop.f32.mrb[0].mxu0
        %v672 = vadd.f32 %v442, %v671
        %v673 = vpop.f32.mrb[0].mxu0
        %v674 = vadd.f32 %v446, %v673
        %675 = vmatprep.mubr.f32.mxu0 0.0
        %676 = vmatmul.mubr.f32.gmra.mrb[0].mxu0 %v400
        %v677 = vpop.f32.mrb[0].mxu0
        %v678 = vadd.f32 %v442, %v677
        %v679 = vpop.f32.mrb[0].mxu0
        %v680 = vadd.f32 %v446, %v679
        %681 = vmatprep.mubr.f32.mxu0 0.0
        %682 = vmatmul.mubr.f32.gmra.mrb[0].mxu0 %v401
        %v683 = vpop.f32.mrb[0].mxu0
        %v684 = vadd.f32 %v442, %v683
        %v685 = vpop.f32.mrb[0].mxu0
        %v686 = vadd.f32 %v446, %v685
        %687 = vmatprep.mubr.f32.mxu0 0.0
        %688 = vmatmul.mubr.f32.gmra.mrb[0].mxu0 %v402
        %v689 = vpop.f32.mrb[0].mxu0
        %v690 = vadd.f32 %v442, %v689
        %v691 = vpop.f32.mrb[0].mxu0
        %v692 = vadd.f32 %v446, %v691
        %693 = vmatprep.mubr.f32.mxu0 0.0
        %694 = vmatmul.mubr.f32.gmra.mrb[0].mxu0 %v403
        %v695 = vpop.f32.mrb[0].mxu0
        %v696 = vadd.f32 %v442, %v695
        %v697 = vpop.f32.mrb[0].mxu0
        %v698 = vadd.f32 %v446, %v697
        %699 = vmatprep.mubr.f32.mxu0 0.0
        %700 = vmatmul.mubr.f32.gmra.mrb[0].mxu0 %v404
        %v701 = vpop.f32.mrb[0].mxu0
        %v702 = vadd.f32 %v442, %v701
        %v703 = vpop.f32.mrb[0].mxu0
        %v704 = vadd.f32 %v446, %v703
        %705 = vdwg.mxu0
        %v706 = vmul.f32 %v516, 0.5
        %v707 = vmul.f32 %v518, 0.5
        %v708 = vmul.f32 %v522, 0.5
        %v709 = vmul.f32 %v524, 0.5
        %v710 = vmul.f32 %v528, 0.5
        %v711 = vmul.f32 %v530, 0.5
        %v712 = vmul.f32 %v534, 0.5
        %v713 = vmul.f32 %v536, 0.5
        %v714 = vmul.f32 %v540, 0.5
        %v715 = vmul.f32 %v542, 0.5
        %v716 = vmul.f32 %v546, 0.5
        %v717 = vmul.f32 %v548, 0.5
        %v718 = vmul.f32 %v552, 0.5
        %v719 = vmul.f32 %v554, 0.5
        %v720 = vmul.f32 %v558, 0.5
        %v721 = vmul.f32 %v560, 0.5
        %v722 = vmul.f32 %v564, 0.5
        %v723 = vmul.f32 %v566, 0.5
        %v724 = vmul.f32 %v570, 0.5
        %v725 = vmul.f32 %v572, 0.5
        %v726 = vmul.f32 %v576, 0.5
        %v727 = vmul.f32 %v578, 0.5
        %v728 = vmul.f32 %v582, 0.5
        %v729 = vmul.f32 %v584, 0.5
        %v730 = vmul.f32 %v588, 0.5
        %v731 = vmul.f32 %v590, 0.5
        %v732 = vmul.f32 %v594, 0.5
        %v733 = vmul.f32 %v596, 0.5
        %v734 = vmul.f32 %v600, 0.5
        %v735 = vmul.f32 %v602, 0.5
        %v736 = vmul.f32 %v606, 0.5
        %v737 = vmul.f32 %v608, 0.5
        %v738 = vmul.f32 %v612, 0.5
        %v739 = vmul.f32 %v614, 0.5
        %v740 = vmul.f32 %v618, 0.5
        %v741 = vmul.f32 %v620, 0.5
        %v742 = vmul.f32 %v624, 0.5
        %v743 = vmul.f32 %v626, 0.5
        %v744 = vmul.f32 %v630, 0.5
        %v745 = vmul.f32 %v632, 0.5
        %v746 = vmul.f32 %v636, 0.5
        %v747 = vmul.f32 %v638, 0.5
        %v748 = vmul.f32 %v642, 0.5
        %v749 = vmul.f32 %v644, 0.5
        %v750 = vmul.f32 %v648, 0.5
        %v751 = vmul.f32 %v650, 0.5
        %v752 = vmul.f32 %v654, 0.5
        %v753 = vmul.f32 %v656, 0.5
        %v754 = vmul.f32 %v660, 0.5
        %v755 = vmul.f32 %v662, 0.5
        %v756 = vmul.f32 %v666, 0.5
        %v757 = vmul.f32 %v668, 0.5
        %v758 = vmul.f32 %v672, 0.5
        %v759 = vmul.f32 %v674, 0.5
        %v760 = vmul.f32 %v678, 0.5
        %v761 = vmul.f32 %v680, 0.5
        %v762 = vmul.f32 %v684, 0.5
        %v763 = vmul.f32 %v686, 0.5
        %v764 = vmul.f32 %v690, 0.5
        %v765 = vmul.f32 %v692, 0.5
        %v766 = vmul.f32 %v696, 0.5
        %v767 = vmul.f32 %v698, 0.5
        %v768 = vmul.f32 %v702, 0.5
        %v769 = vmul.f32 %v704, 0.5
        %v770 = vmul.f32 %v516, 0.70710677
        %v771 = vmul.f32 %v518, 0.70710677
        %v772 = vmul.f32 %v522, 0.70710677
        %v773 = vmul.f32 %v524, 0.70710677
        %v774 = vmul.f32 %v528, 0.70710677
        %v775 = vmul.f32 %v530, 0.70710677
        %v776 = vmul.f32 %v534, 0.70710677
        %v777 = vmul.f32 %v536, 0.70710677
        %v778 = vmul.f32 %v540, 0.70710677
        %v779 = vmul.f32 %v542, 0.70710677
        %v780 = vmul.f32 %v546, 0.70710677
        %v781 = vmul.f32 %v548, 0.70710677
        %v782 = vmul.f32 %v552, 0.70710677
        %v783 = vmul.f32 %v554, 0.70710677
        %v784 = vmul.f32 %v558, 0.70710677
        %v785 = vmul.f32 %v560, 0.70710677
        %v786 = vmul.f32 %v564, 0.70710677
        %v787 = vmul.f32 %v566, 0.70710677
        %v788 = vmul.f32 %v570, 0.70710677
        %v789 = vmul.f32 %v572, 0.70710677
        %v790 = vmul.f32 %v576, 0.70710677
        %v791 = vmul.f32 %v578, 0.70710677
        %v792 = vmul.f32 %v582, 0.70710677
        %v793 = vmul.f32 %v584, 0.70710677
        %v794 = vmul.f32 %v588, 0.70710677
        %v795 = vmul.f32 %v590, 0.70710677
        %v796 = vmul.f32 %v594, 0.70710677
        %v797 = vmul.f32 %v596, 0.70710677
        %v798 = vmul.f32 %v600, 0.70710677
        %v799 = vmul.f32 %v602, 0.70710677
        %v800 = vmul.f32 %v606, 0.70710677
        %v801 = vmul.f32 %v608, 0.70710677
        %v802 = vmul.f32 %v612, 0.70710677
        %v803 = vmul.f32 %v614, 0.70710677
        %v804 = vmul.f32 %v618, 0.70710677
        %v805 = vmul.f32 %v620, 0.70710677
        %v806 = vmul.f32 %v624, 0.70710677
        %v807 = vmul.f32 %v626, 0.70710677
        %v808 = vmul.f32 %v630, 0.70710677
        %v809 = vmul.f32 %v632, 0.70710677
        %v810 = vmul.f32 %v636, 0.70710677
        %v811 = vmul.f32 %v638, 0.70710677
        %v812 = vmul.f32 %v642, 0.70710677
        %v813 = vmul.f32 %v644, 0.70710677
        %v814 = vmul.f32 %v648, 0.70710677
        %v815 = vmul.f32 %v650, 0.70710677
        %v816 = vmul.f32 %v654, 0.70710677
        %v817 = vmul.f32 %v656, 0.70710677
        %v818 = vmul.f32 %v660, 0.70710677
        %v819 = vmul.f32 %v662, 0.70710677
        %v820 = vmul.f32 %v666, 0.70710677
        %v821 = vmul.f32 %v668, 0.70710677
        %v822 = vmul.f32 %v672, 0.70710677
        %v823 = vmul.f32 %v674, 0.70710677
        %v824 = vmul.f32 %v678, 0.70710677
        %v825 = vmul.f32 %v680, 0.70710677
        %v826 = vmul.f32 %v684, 0.70710677
        %v827 = vmul.f32 %v686, 0.70710677
        %v828 = vmul.f32 %v690, 0.70710677
        %v829 = vmul.f32 %v692, 0.70710677
        %v830 = vmul.f32 %v696, 0.70710677
        %v831 = vmul.f32 %v698, 0.70710677
        %v832 = vmul.f32 %v702, 0.70710677
        %v833 = vmul.f32 %v704, 0.70710677
        %v834 = vand.u32 2147483647, %v770
        %v835 = vand.u32 2147483647, %v771
        %v836 = vand.u32 2147483647, %v772
        %v837 = vand.u32 2147483647, %v773
        %v838 = vand.u32 2147483647, %v774
        %v839 = vand.u32 2147483647, %v775
        %v840 = vand.u32 2147483647, %v776
        %v841 = vand.u32 2147483647, %v777
        %v842 = vand.u32 2147483647, %v778
        %v843 = vand.u32 2147483647, %v779
        %v844 = vand.u32 2147483647, %v780
        %v845 = vand.u32 2147483647, %v781
        %v846 = vand.u32 2147483647, %v782
        %v847 = vand.u32 2147483647, %v783
        %v848 = vand.u32 2147483647, %v784
        %v849 = vand.u32 2147483647, %v785
        %v850 = vand.u32 2147483647, %v786
        %v851 = vand.u32 2147483647, %v787
        %v852 = vand.u32 2147483647, %v788
        %v853 = vand.u32 2147483647, %v789
        %v854 = vand.u32 2147483647, %v790
        %v855 = vand.u32 2147483647, %v791
        %v856 = vand.u32 2147483647, %v792
        %v857 = vand.u32 2147483647, %v793
        %v858 = vand.u32 2147483647, %v794
        %v859 = vand.u32 2147483647, %v795
        %v860 = vand.u32 2147483647, %v796
        %v861 = vand.u32 2147483647, %v797
        %v862 = vand.u32 2147483647, %v798
        %v863 = vand.u32 2147483647, %v799
        %v864 = vand.u32 2147483647, %v800
        %v865 = vand.u32 2147483647, %v801
        %v866 = vand.u32 2147483647, %v802
        %v867 = vand.u32 2147483647, %v803
        %v868 = vand.u32 2147483647, %v804
        %v869 = vand.u32 2147483647, %v805
        %v870 = vand.u32 2147483647, %v806
        %v871 = vand.u32 2147483647, %v807
        %v872 = vand.u32 2147483647, %v808
        %v873 = vand.u32 2147483647, %v809
        %v874 = vand.u32 2147483647, %v810
        %v875 = vand.u32 2147483647, %v811
        %v876 = vand.u32 2147483647, %v812
        %v877 = vand.u32 2147483647, %v813
        %v878 = vand.u32 2147483647, %v814
        %v879 = vand.u32 2147483647, %v815
        %v880 = vand.u32 2147483647, %v816
        %v881 = vand.u32 2147483647, %v817
        %v882 = vand.u32 2147483647, %v818
        %v883 = vand.u32 2147483647, %v819
        %v884 = vand.u32 2147483647, %v820
        %v885 = vand.u32 2147483647, %v821
        %v886 = vand.u32 2147483647, %v822
        %v887 = vand.u32 2147483647, %v823
        %v888 = vand.u32 2147483647, %v824
        %v889 = vand.u32 2147483647, %v825
        %v890 = vand.u32 2147483647, %v826
        %v891 = vand.u32 2147483647, %v827
        %v892 = vand.u32 2147483647, %v828
        %v893 = vand.u32 2147483647, %v829
        %v894 = vand.u32 2147483647, %v830
        %v895 = vand.u32 2147483647, %v831
        %v896 = vand.u32 2147483647, %v832
        %v897 = vand.u32 2147483647, %v833
        %v898 = vmul.f32 %v834, 0.3275911
        %v899 = vmul.f32 %v835, 0.3275911
        %v900 = vmul.f32 %v836, 0.3275911
        %v901 = vmul.f32 %v837, 0.3275911
        %v902 = vmul.f32 %v838, 0.3275911
        %v903 = vmul.f32 %v839, 0.3275911
        %v904 = vmul.f32 %v840, 0.3275911
        %v905 = vmul.f32 %v841, 0.3275911
        %v906 = vmul.f32 %v842, 0.3275911
        %v907 = vmul.f32 %v843, 0.3275911
        %v908 = vmul.f32 %v844, 0.3275911
        %v909 = vmul.f32 %v845, 0.3275911
        %v910 = vmul.f32 %v846, 0.3275911
        %v911 = vmul.f32 %v847, 0.3275911
        %v912 = vmul.f32 %v848, 0.3275911
        %v913 = vmul.f32 %v849, 0.3275911
        %v914 = vmul.f32 %v850, 0.3275911
        %v915 = vmul.f32 %v851, 0.3275911
        %v916 = vmul.f32 %v852, 0.3275911
        %v917 = vmul.f32 %v853, 0.3275911
        %v918 = vmul.f32 %v854, 0.3275911
        %v919 = vmul.f32 %v855, 0.3275911
        %v920 = vmul.f32 %v856, 0.3275911
        %v921 = vmul.f32 %v857, 0.3275911
        %v922 = vmul.f32 %v858, 0.3275911
        %v923 = vmul.f32 %v859, 0.3275911
        %v924 = vmul.f32 %v860, 0.3275911
        %v925 = vmul.f32 %v861, 0.3275911
        %v926 = vmul.f32 %v862, 0.3275911
        %v927 = vmul.f32 %v863, 0.3275911
        %v928 = vmul.f32 %v864, 0.3275911
        %v929 = vmul.f32 %v865, 0.3275911
        %v930 = vmul.f32 %v866, 0.3275911
        %v931 = vmul.f32 %v867, 0.3275911
        %v932 = vmul.f32 %v868, 0.3275911
        %v933 = vmul.f32 %v869, 0.3275911
        %v934 = vmul.f32 %v870, 0.3275911
        %v935 = vmul.f32 %v871, 0.3275911
        %v936 = vmul.f32 %v872, 0.3275911
        %v937 = vmul.f32 %v873, 0.3275911
        %v938 = vmul.f32 %v874, 0.3275911
        %v939 = vmul.f32 %v875, 0.3275911
        %v940 = vmul.f32 %v876, 0.3275911
        %v941 = vmul.f32 %v877, 0.3275911
        %v942 = vmul.f32 %v878, 0.3275911
        %v943 = vmul.f32 %v879, 0.3275911
        %v944 = vmul.f32 %v880, 0.3275911
        %v945 = vmul.f32 %v881, 0.3275911
        %v946 = vmul.f32 %v882, 0.3275911
        %v947 = vmul.f32 %v883, 0.3275911
        %v948 = vmul.f32 %v884, 0.3275911
        %v949 = vmul.f32 %v885, 0.3275911
        %v950 = vmul.f32 %v886, 0.3275911
        %v951 = vmul.f32 %v887, 0.3275911
        %v952 = vmul.f32 %v888, 0.3275911
        %v953 = vmul.f32 %v889, 0.3275911
        %v954 = vmul.f32 %v890, 0.3275911
        %v955 = vmul.f32 %v891, 0.3275911
        %v956 = vmul.f32 %v892, 0.3275911
        %v957 = vmul.f32 %v893, 0.3275911
        %v958 = vmul.f32 %v894, 0.3275911
        %v959 = vmul.f32 %v895, 0.3275911
        %v960 = vmul.f32 %v896, 0.3275911
        %v961 = vmul.f32 %v897, 0.3275911
        %v962 = vadd.f32 %v898, 1.0
        %v963 = vadd.f32 %v899, 1.0
        %v964 = vadd.f32 %v900, 1.0
        %v965 = vadd.f32 %v901, 1.0
        %v966 = vadd.f32 %v902, 1.0
        %v967 = vadd.f32 %v903, 1.0
        %v968 = vadd.f32 %v904, 1.0
        %v969 = vadd.f32 %v905, 1.0
        %v970 = vadd.f32 %v906, 1.0
        %v971 = vadd.f32 %v907, 1.0
        %v972 = vadd.f32 %v908, 1.0
        %v973 = vadd.f32 %v909, 1.0
        %v974 = vadd.f32 %v910, 1.0
        %v975 = vadd.f32 %v911, 1.0
        %v976 = vadd.f32 %v912, 1.0
        %v977 = vadd.f32 %v913, 1.0
        %v978 = vadd.f32 %v914, 1.0
        %v979 = vadd.f32 %v915, 1.0
        %v980 = vadd.f32 %v916, 1.0
        %v981 = vadd.f32 %v917, 1.0
        %v982 = vadd.f32 %v918, 1.0
        %v983 = vadd.f32 %v919, 1.0
        %v984 = vadd.f32 %v920, 1.0
        %v985 = vadd.f32 %v921, 1.0
        %v986 = vadd.f32 %v922, 1.0
        %v987 = vadd.f32 %v923, 1.0
        %v988 = vadd.f32 %v924, 1.0
        %v989 = vadd.f32 %v925, 1.0
        %v990 = vadd.f32 %v926, 1.0
        %v991 = vadd.f32 %v927, 1.0
        %v992 = vadd.f32 %v928, 1.0
        %v993 = vadd.f32 %v929, 1.0
        %v994 = vadd.f32 %v930, 1.0
        %v995 = vadd.f32 %v931, 1.0
        %v996 = vadd.f32 %v932, 1.0
        %v997 = vadd.f32 %v933, 1.0
        %v998 = vadd.f32 %v934, 1.0
        %v999 = vadd.f32 %v935, 1.0
        %v1000 = vadd.f32 %v936, 1.0
        %v1001 = vadd.f32 %v937, 1.0
        %v1002 = vadd.f32 %v938, 1.0
        %v1003 = vadd.f32 %v939, 1.0
        %v1004 = vadd.f32 %v940, 1.0
        %v1005 = vadd.f32 %v941, 1.0
        %v1006 = vadd.f32 %v942, 1.0
        %v1007 = vadd.f32 %v943, 1.0
        %v1008 = vadd.f32 %v944, 1.0
        %v1009 = vadd.f32 %v945, 1.0
        %v1010 = vadd.f32 %v946, 1.0
        %v1011 = vadd.f32 %v947, 1.0
        %v1012 = vadd.f32 %v948, 1.0
        %v1013 = vadd.f32 %v949, 1.0
        %v1014 = vadd.f32 %v950, 1.0
        %v1015 = vadd.f32 %v951, 1.0
        %v1016 = vadd.f32 %v952, 1.0
        %v1017 = vadd.f32 %v953, 1.0
        %v1018 = vadd.f32 %v954, 1.0
        %v1019 = vadd.f32 %v955, 1.0
        %v1020 = vadd.f32 %v956, 1.0
        %v1021 = vadd.f32 %v957, 1.0
        %v1022 = vadd.f32 %v958, 1.0
        %v1023 = vadd.f32 %v959, 1.0
        %v1024 = vadd.f32 %v960, 1.0
        %v1025 = vadd.f32 %v961, 1.0
        %v1026 = vrcp.pop %v962
        %v1027 = vrcp.pop %v963
        %v1028 = vrcp.pop %v964
        %v1029 = vrcp.pop %v965
        %v1030 = vrcp.pop %v966
        %v1031 = vrcp.pop %v967
        %v1032 = vrcp.pop %v968
        %v1033 = vrcp.pop %v969
        %v1034 = vrcp.pop %v970
        %v1035 = vrcp.pop %v971
        %v1036 = vrcp.pop %v972
        %v1037 = vrcp.pop %v973
        %v1038 = vrcp.pop %v974
        %v1039 = vrcp.pop %v975
        %v1040 = vrcp.pop %v976
        %v1041 = vrcp.pop %v977
        %v1042 = vrcp.pop %v978
        %v1043 = vrcp.pop %v979
        %v1044 = vrcp.pop %v980
        %v1045 = vrcp.pop %v981
        %v1046 = vrcp.pop %v982
        %v1047 = vrcp.pop %v983
        %v1048 = vrcp.pop %v984
        %v1049 = vrcp.pop %v985
        %v1050 = vrcp.pop %v986
        %v1051 = vrcp.pop %v987
        %v1052 = vrcp.pop %v988
        %v1053 = vrcp.pop %v989
        %v1054 = vrcp.pop %v990
        %v1055 = vrcp.pop %v991
        %v1056 = vrcp.pop %v992
        %v1057 = vrcp.pop %v993
        %v1058 = vrcp.pop %v994
        %v1059 = vrcp.pop %v995
        %v1060 = vrcp.pop %v996
        %v1061 = vrcp.pop %v997
        %v1062 = vrcp.pop %v998
        %v1063 = vrcp.pop %v999
        %v1064 = vrcp.pop %v1000
        %v1065 = vrcp.pop %v1001
        %v1066 = vrcp.pop %v1002
        %v1067 = vrcp.pop %v1003
        %v1068 = vrcp.pop %v1004
        %v1069 = vrcp.pop %v1005
        %v1070 = vrcp.pop %v1006
        %v1071 = vrcp.pop %v1007
        %v1072 = vrcp.pop %v1008
        %v1073 = vrcp.pop %v1009
        %v1074 = vrcp.pop %v1010
        %v1075 = vrcp.pop %v1011
        %v1076 = vrcp.pop %v1012
        %v1077 = vrcp.pop %v1013
        %v1078 = vrcp.pop %v1014
        %v1079 = vrcp.pop %v1015
        %v1080 = vrcp.pop %v1016
        %v1081 = vrcp.pop %v1017
        %v1082 = vrcp.pop %v1018
        %v1083 = vrcp.pop %v1019
        %v1084 = vrcp.pop %v1020
        %v1085 = vrcp.pop %v1021
        %v1086 = vrcp.pop %v1022
        %v1087 = vrcp.pop %v1023
        %v1088 = vrcp.pop %v1024
        %v1089 = vrcp.pop %v1025
        %v1090 = vmul.f32 %v1026, 1.0614054
        %v1091 = vmul.f32 %v1027, 1.0614054
        %v1092 = vmul.f32 %v1028, 1.0614054
        %v1093 = vmul.f32 %v1029, 1.0614054
        %v1094 = vmul.f32 %v1030, 1.0614054
        %v1095 = vmul.f32 %v1031, 1.0614054
        %v1096 = vmul.f32 %v1032, 1.0614054
        %v1097 = vmul.f32 %v1033, 1.0614054
        %v1098 = vmul.f32 %v1034, 1.0614054
        %v1099 = vmul.f32 %v1035, 1.0614054
        %v1100 = vmul.f32 %v1036, 1.0614054
        %v1101 = vmul.f32 %v1037, 1.0614054
        %v1102 = vmul.f32 %v1038, 1.0614054
        %v1103 = vmul.f32 %v1039, 1.0614054
        %v1104 = vmul.f32 %v1040, 1.0614054
        %v1105 = vmul.f32 %v1041, 1.0614054
        %v1106 = vmul.f32 %v1042, 1.0614054
        %v1107 = vmul.f32 %v1043, 1.0614054
        %v1108 = vmul.f32 %v1044, 1.0614054
        %v1109 = vmul.f32 %v1045, 1.0614054
        %v1110 = vmul.f32 %v1046, 1.0614054
        %v1111 = vmul.f32 %v1047, 1.0614054
        %v1112 = vmul.f32 %v1048, 1.0614054
        %v1113 = vmul.f32 %v1049, 1.0614054
        %v1114 = vmul.f32 %v1050, 1.0614054
        %v1115 = vmul.f32 %v1051, 1.0614054
        %v1116 = vmul.f32 %v1052, 1.0614054
        %v1117 = vmul.f32 %v1053, 1.0614054
        %v1118 = vmul.f32 %v1054, 1.0614054
        %v1119 = vmul.f32 %v1055, 1.0614054
        %v1120 = vmul.f32 %v1056, 1.0614054
        %v1121 = vmul.f32 %v1057, 1.0614054
        %v1122 = vmul.f32 %v1058, 1.0614054
        %v1123 = vmul.f32 %v1059, 1.0614054
        %v1124 = vmul.f32 %v1060, 1.0614054
        %v1125 = vmul.f32 %v1061, 1.0614054
        %v1126 = vmul.f32 %v1062, 1.0614054
        %v1127 = vmul.f32 %v1063, 1.0614054
        %v1128 = vmul.f32 %v1064, 1.0614054
        %v1129 = vmul.f32 %v1065, 1.0614054
        %v1130 = vmul.f32 %v1066, 1.0614054
        %v1131 = vmul.f32 %v1067, 1.0614054
        %v1132 = vmul.f32 %v1068, 1.0614054
        %v1133 = vmul.f32 %v1069, 1.0614054
        %v1134 = vmul.f32 %v1070, 1.0614054
        %v1135 = vmul.f32 %v1071, 1.0614054
        %v1136 = vmul.f32 %v1072, 1.0614054
        %v1137 = vmul.f32 %v1073, 1.0614054
        %v1138 = vmul.f32 %v1074, 1.0614054
        %v1139 = vmul.f32 %v1075, 1.0614054
        %v1140 = vmul.f32 %v1076, 1.0614054
        %v1141 = vmul.f32 %v1077, 1.0614054
        %v1142 = vmul.f32 %v1078, 1.0614054
        %v1143 = vmul.f32 %v1079, 1.0614054
        %v1144 = vmul.f32 %v1080, 1.0614054
        %v1145 = vmul.f32 %v1081, 1.0614054
        %v1146 = vmul.f32 %v1082, 1.0614054
        %v1147 = vmul.f32 %v1083, 1.0614054
        %v1148 = vmul.f32 %v1084, 1.0614054
        %v1149 = vmul.f32 %v1085, 1.0614054
        %v1150 = vmul.f32 %v1086, 1.0614054
        %v1151 = vmul.f32 %v1087, 1.0614054
        %v1152 = vmul.f32 %v1088, 1.0614054
        %v1153 = vmul.f32 %v1089, 1.0614054
        %v1154 = vadd.f32 %v1090, -1.4531521
        %v1155 = vadd.f32 %v1091, -1.4531521
        %v1156 = vadd.f32 %v1092, -1.4531521
        %v1157 = vadd.f32 %v1093, -1.4531521
        %v1158 = vadd.f32 %v1094, -1.4531521
        %v1159 = vadd.f32 %v1095, -1.4531521
        %v1160 = vadd.f32 %v1096, -1.4531521
        %v1161 = vadd.f32 %v1097, -1.4531521
        %v1162 = vadd.f32 %v1098, -1.4531521
        %v1163 = vadd.f32 %v1099, -1.4531521
        %v1164 = vadd.f32 %v1100, -1.4531521
        %v1165 = vadd.f32 %v1101, -1.4531521
        %v1166 = vadd.f32 %v1102, -1.4531521
        %v1167 = vadd.f32 %v1103, -1.4531521
        %v1168 = vadd.f32 %v1104, -1.4531521
        %v1169 = vadd.f32 %v1105, -1.4531521
        %v1170 = vadd.f32 %v1106, -1.4531521
        %v1171 = vadd.f32 %v1107, -1.4531521
        %v1172 = vadd.f32 %v1108, -1.4531521
        %v1173 = vadd.f32 %v1109, -1.4531521
        %v1174 = vadd.f32 %v1110, -1.4531521
        %v1175 = vadd.f32 %v1111, -1.4531521
        %v1176 = vadd.f32 %v1112, -1.4531521
        %v1177 = vadd.f32 %v1113, -1.4531521
        %v1178 = vadd.f32 %v1114, -1.4531521
        %v1179 = vadd.f32 %v1115, -1.4531521
        %v1180 = vadd.f32 %v1116, -1.4531521
        %v1181 = vadd.f32 %v1117, -1.4531521
        %v1182 = vadd.f32 %v1118, -1.4531521
        %v1183 = vadd.f32 %v1119, -1.4531521
        %v1184 = vadd.f32 %v1120, -1.4531521
        %v1185 = vadd.f32 %v1121, -1.4531521
        %v1186 = vadd.f32 %v1122, -1.4531521
        %v1187 = vadd.f32 %v1123, -1.4531521
        %v1188 = vadd.f32 %v1124, -1.4531521
        %v1189 = vadd.f32 %v1125, -1.4531521
        %v1190 = vadd.f32 %v1126, -1.4531521
        %v1191 = vadd.f32 %v1127, -1.4531521
        %v1192 = vadd.f32 %v1128, -1.4531521
        %v1193 = vadd.f32 %v1129, -1.4531521
        %v1194 = vadd.f32 %v1130, -1.4531521
        %v1195 = vadd.f32 %v1131, -1.4531521
        %v1196 = vadd.f32 %v1132, -1.4531521
        %v1197 = vadd.f32 %v1133, -1.4531521
        %v1198 = vadd.f32 %v1134, -1.4531521
        %v1199 = vadd.f32 %v1135, -1.4531521
        %v1200 = vadd.f32 %v1136, -1.4531521
        %v1201 = vadd.f32 %v1137, -1.4531521
        %v1202 = vadd.f32 %v1138, -1.4531521
        %v1203 = vadd.f32 %v1139, -1.4531521
        %v1204 = vadd.f32 %v1140, -1.4531521
        %v1205 = vadd.f32 %v1141, -1.4531521
        %v1206 = vadd.f32 %v1142, -1.4531521
        %v1207 = vadd.f32 %v1143, -1.4531521
        %v1208 = vadd.f32 %v1144, -1.4531521
        %v1209 = vadd.f32 %v1145, -1.4531521
        %v1210 = vadd.f32 %v1146, -1.4531521
        %v1211 = vadd.f32 %v1147, -1.4531521
        %v1212 = vadd.f32 %v1148, -1.4531521
        %v1213 = vadd.f32 %v1149, -1.4531521
        %v1214 = vadd.f32 %v1150, -1.4531521
        %v1215 = vadd.f32 %v1151, -1.4531521
        %v1216 = vadd.f32 %v1152, -1.4531521
        %v1217 = vadd.f32 %v1153, -1.4531521
        %v1218 = vmul.f32 %v1154, %v1026
        %v1219 = vmul.f32 %v1155, %v1027
        %v1220 = vmul.f32 %v1156, %v1028
        %v1221 = vmul.f32 %v1157, %v1029
        %v1222 = vmul.f32 %v1158, %v1030
        %v1223 = vmul.f32 %v1159, %v1031
        %v1224 = vmul.f32 %v1160, %v1032
        %v1225 = vmul.f32 %v1161, %v1033
        %v1226 = vmul.f32 %v1162, %v1034
        %v1227 = vmul.f32 %v1163, %v1035
        %v1228 = vmul.f32 %v1164, %v1036
        %v1229 = vmul.f32 %v1165, %v1037
        %v1230 = vmul.f32 %v1166, %v1038
        %v1231 = vmul.f32 %v1167, %v1039
        %v1232 = vmul.f32 %v1168, %v1040
        %v1233 = vmul.f32 %v1169, %v1041
        %v1234 = vmul.f32 %v1170, %v1042
        %v1235 = vmul.f32 %v1171, %v1043
        %v1236 = vmul.f32 %v1172, %v1044
        %v1237 = vmul.f32 %v1173, %v1045
        %v1238 = vmul.f32 %v1174, %v1046
        %v1239 = vmul.f32 %v1175, %v1047
        %v1240 = vmul.f32 %v1176, %v1048
        %v1241 = vmul.f32 %v1177, %v1049
        %v1242 = vmul.f32 %v1178, %v1050
        %v1243 = vmul.f32 %v1179, %v1051
        %v1244 = vmul.f32 %v1180, %v1052
        %v1245 = vmul.f32 %v1181, %v1053
        %v1246 = vmul.f32 %v1182, %v1054
        %v1247 = vmul.f32 %v1183, %v1055
        %v1248 = vmul.f32 %v1184, %v1056
        %v1249 = vmul.f32 %v1185, %v1057
        %v1250 = vmul.f32 %v1186, %v1058
        %v1251 = vmul.f32 %v1187, %v1059
        %v1252 = vmul.f32 %v1188, %v1060
        %v1253 = vmul.f32 %v1189, %v1061
        %v1254 = vmul.f32 %v1190, %v1062
        %v1255 = vmul.f32 %v1191, %v1063
        %v1256 = vmul.f32 %v1192, %v1064
        %v1257 = vmul.f32 %v1193, %v1065
        %v1258 = vmul.f32 %v1194, %v1066
        %v1259 = vmul.f32 %v1195, %v1067
        %v1260 = vmul.f32 %v1196, %v1068
        %v1261 = vmul.f32 %v1197, %v1069
        %v1262 = vmul.f32 %v1198, %v1070
        %v1263 = vmul.f32 %v1199, %v1071
        %v1264 = vmul.f32 %v1200, %v1072
        %v1265 = vmul.f32 %v1201, %v1073
        %v1266 = vmul.f32 %v1202, %v1074
        %v1267 = vmul.f32 %v1203, %v1075
        %v1268 = vmul.f32 %v1204, %v1076
        %v1269 = vmul.f32 %v1205, %v1077
        %v1270 = vmul.f32 %v1206, %v1078
        %v1271 = vmul.f32 %v1207, %v1079
        %v1272 = vmul.f32 %v1208, %v1080
        %v1273 = vmul.f32 %v1209, %v1081
        %v1274 = vmul.f32 %v1210, %v1082
        %v1275 = vmul.f32 %v1211, %v1083
        %v1276 = vmul.f32 %v1212, %v1084
        %v1277 = vmul.f32 %v1213, %v1085
        %v1278 = vmul.f32 %v1214, %v1086
        %v1279 = vmul.f32 %v1215, %v1087
        %v1280 = vmul.f32 %v1216, %v1088
        %v1281 = vmul.f32 %v1217, %v1089
        %v1282 = vadd.f32 %v1218, 1.4214138
        %v1283 = vadd.f32 %v1219, 1.4214138
        %v1284 = vadd.f32 %v1220, 1.4214138
        %v1285 = vadd.f32 %v1221, 1.4214138
        %v1286 = vadd.f32 %v1222, 1.4214138
        %v1287 = vadd.f32 %v1223, 1.4214138
        %v1288 = vadd.f32 %v1224, 1.4214138
        %v1289 = vadd.f32 %v1225, 1.4214138
        %v1290 = vadd.f32 %v1226, 1.4214138
        %v1291 = vadd.f32 %v1227, 1.4214138
        %v1292 = vadd.f32 %v1228, 1.4214138
        %v1293 = vadd.f32 %v1229, 1.4214138
        %v1294 = vadd.f32 %v1230, 1.4214138
        %v1295 = vadd.f32 %v1231, 1.4214138
        %v1296 = vadd.f32 %v1232, 1.4214138
        %v1297 = vadd.f32 %v1233, 1.4214138
        %v1298 = vadd.f32 %v1234, 1.4214138
        %v1299 = vadd.f32 %v1235, 1.4214138
        %v1300 = vadd.f32 %v1236, 1.4214138
        %v1301 = vadd.f32 %v1237, 1.4214138
        %v1302 = vadd.f32 %v1238, 1.4214138
        %v1303 = vadd.f32 %v1239, 1.4214138
        %v1304 = vadd.f32 %v1240, 1.4214138
        %v1305 = vadd.f32 %v1241, 1.4214138
        %v1306 = vadd.f32 %v1242, 1.4214138
        %v1307 = vadd.f32 %v1243, 1.4214138
        %v1308 = vadd.f32 %v1244, 1.4214138
        %v1309 = vadd.f32 %v1245, 1.4214138
        %v1310 = vadd.f32 %v1246, 1.4214138
        %v1311 = vadd.f32 %v1247, 1.4214138
        %v1312 = vadd.f32 %v1248, 1.4214138
        %v1313 = vadd.f32 %v1249, 1.4214138
        %v1314 = vadd.f32 %v1250, 1.4214138
        %v1315 = vadd.f32 %v1251, 1.4214138
        %v1316 = vadd.f32 %v1252, 1.4214138
        %v1317 = vadd.f32 %v1253, 1.4214138
        %v1318 = vadd.f32 %v1254, 1.4214138
        %v1319 = vadd.f32 %v1255, 1.4214138
        %v1320 = vadd.f32 %v1256, 1.4214138
        %v1321 = vadd.f32 %v1257, 1.4214138
        %v1322 = vadd.f32 %v1258, 1.4214138
        %v1323 = vadd.f32 %v1259, 1.4214138
        %v1324 = vadd.f32 %v1260, 1.4214138
        %v1325 = vadd.f32 %v1261, 1.4214138
        %v1326 = vadd.f32 %v1262, 1.4214138
        %v1327 = vadd.f32 %v1263, 1.4214138
        %v1328 = vadd.f32 %v1264, 1.4214138
        %v1329 = vadd.f32 %v1265, 1.4214138
        %v1330 = vadd.f32 %v1266, 1.4214138
        %v1331 = vadd.f32 %v1267, 1.4214138
        %v1332 = vadd.f32 %v1268, 1.4214138
        %v1333 = vadd.f32 %v1269, 1.4214138
        %v1334 = vadd.f32 %v1270, 1.4214138
        %v1335 = vadd.f32 %v1271, 1.4214138
        %v1336 = vadd.f32 %v1272, 1.4214138
        %v1337 = vadd.f32 %v1273, 1.4214138
        %v1338 = vadd.f32 %v1274, 1.4214138
        %v1339 = vadd.f32 %v1275, 1.4214138
        %v1340 = vadd.f32 %v1276, 1.4214138
        %v1341 = vadd.f32 %v1277, 1.4214138
        %v1342 = vadd.f32 %v1278, 1.4214138
        %v1343 = vadd.f32 %v1279, 1.4214138
        %v1344 = vadd.f32 %v1280, 1.4214138
        %v1345 = vadd.f32 %v1281, 1.4214138
        %v1346 = vmul.f32 %v1282, %v1026
        %v1347 = vmul.f32 %v1283, %v1027
        %v1348 = vmul.f32 %v1284, %v1028
        %v1349 = vmul.f32 %v1285, %v1029
        %v1350 = vmul.f32 %v1286, %v1030
        %v1351 = vmul.f32 %v1287, %v1031
        %v1352 = vmul.f32 %v1288, %v1032
        %v1353 = vmul.f32 %v1289, %v1033
        %v1354 = vmul.f32 %v1290, %v1034
        %v1355 = vmul.f32 %v1291, %v1035
        %v1356 = vmul.f32 %v1292, %v1036
        %v1357 = vmul.f32 %v1293, %v1037
        %v1358 = vmul.f32 %v1294, %v1038
        %v1359 = vmul.f32 %v1295, %v1039
        %v1360 = vmul.f32 %v1296, %v1040
        %v1361 = vmul.f32 %v1297, %v1041
        %v1362 = vmul.f32 %v1298, %v1042
        %v1363 = vmul.f32 %v1299, %v1043
        %v1364 = vmul.f32 %v1300, %v1044
        %v1365 = vmul.f32 %v1301, %v1045
        %v1366 = vmul.f32 %v1302, %v1046
        %v1367 = vmul.f32 %v1303, %v1047
        %v1368 = vmul.f32 %v1304, %v1048
        %v1369 = vmul.f32 %v1305, %v1049
        %v1370 = vmul.f32 %v1306, %v1050
        %v1371 = vmul.f32 %v1307, %v1051
        %v1372 = vmul.f32 %v1308, %v1052
        %v1373 = vmul.f32 %v1309, %v1053
        %v1374 = vmul.f32 %v1310, %v1054
        %v1375 = vmul.f32 %v1311, %v1055
        %v1376 = vmul.f32 %v1312, %v1056
        %v1377 = vmul.f32 %v1313, %v1057
        %v1378 = vmul.f32 %v1314, %v1058
        %v1379 = vmul.f32 %v1315, %v1059
        %v1380 = vmul.f32 %v1316, %v1060
        %v1381 = vmul.f32 %v1317, %v1061
        %v1382 = vmul.f32 %v1318, %v1062
        %v1383 = vmul.f32 %v1319, %v1063
        %v1384 = vmul.f32 %v1320, %v1064
        %v1385 = vmul.f32 %v1321, %v1065
        %v1386 = vmul.f32 %v1322, %v1066
        %v1387 = vmul.f32 %v1323, %v1067
        %v1388 = vmul.f32 %v1324, %v1068
        %v1389 = vmul.f32 %v1325, %v1069
        %v1390 = vmul.f32 %v1326, %v1070
        %v1391 = vmul.f32 %v1327, %v1071
        %v1392 = vmul.f32 %v1328, %v1072
        %v1393 = vmul.f32 %v1329, %v1073
        %v1394 = vmul.f32 %v1330, %v1074
        %v1395 = vmul.f32 %v1331, %v1075
        %v1396 = vmul.f32 %v1332, %v1076
        %v1397 = vmul.f32 %v1333, %v1077
        %v1398 = vmul.f32 %v1334, %v1078
        %v1399 = vmul.f32 %v1335, %v1079
        %v1400 = vmul.f32 %v1336, %v1080
        %v1401 = vmul.f32 %v1337, %v1081
        %v1402 = vmul.f32 %v1338, %v1082
        %v1403 = vmul.f32 %v1339, %v1083
        %v1404 = vmul.f32 %v1340, %v1084
        %v1405 = vmul.f32 %v1341, %v1085
        %v1406 = vmul.f32 %v1342, %v1086
        %v1407 = vmul.f32 %v1343, %v1087
        %v1408 = vmul.f32 %v1344, %v1088
        %v1409 = vmul.f32 %v1345, %v1089
        %v1410 = vadd.f32 %v1346, -0.28449672
        %v1411 = vadd.f32 %v1347, -0.28449672
        %v1412 = vadd.f32 %v1348, -0.28449672
        %v1413 = vadd.f32 %v1349, -0.28449672
        %v1414 = vadd.f32 %v1350, -0.28449672
        %v1415 = vadd.f32 %v1351, -0.28449672
        %v1416 = vadd.f32 %v1352, -0.28449672
        %v1417 = vadd.f32 %v1353, -0.28449672
        %v1418 = vadd.f32 %v1354, -0.28449672
        %v1419 = vadd.f32 %v1355, -0.28449672
        %v1420 = vadd.f32 %v1356, -0.28449672
        %v1421 = vadd.f32 %v1357, -0.28449672
        %v1422 = vadd.f32 %v1358, -0.28449672
        %v1423 = vadd.f32 %v1359, -0.28449672
        %v1424 = vadd.f32 %v1360, -0.28449672
        %v1425 = vadd.f32 %v1361, -0.28449672
        %v1426 = vadd.f32 %v1362, -0.28449672
        %v1427 = vadd.f32 %v1363, -0.28449672
        %v1428 = vadd.f32 %v1364, -0.28449672
        %v1429 = vadd.f32 %v1365, -0.28449672
        %v1430 = vadd.f32 %v1366, -0.28449672
        %v1431 = vadd.f32 %v1367, -0.28449672
        %v1432 = vadd.f32 %v1368, -0.28449672
        %v1433 = vadd.f32 %v1369, -0.28449672
        %v1434 = vadd.f32 %v1370, -0.28449672
        %v1435 = vadd.f32 %v1371, -0.28449672
        %v1436 = vadd.f32 %v1372, -0.28449672
        %v1437 = vadd.f32 %v1373, -0.28449672
        %v1438 = vadd.f32 %v1374, -0.28449672
        %v1439 = vadd.f32 %v1375, -0.28449672
        %v1440 = vadd.f32 %v1376, -0.28449672
        %v1441 = vadd.f32 %v1377, -0.28449672
        %v1442 = vadd.f32 %v1378, -0.28449672
        %v1443 = vadd.f32 %v1379, -0.28449672
        %v1444 = vadd.f32 %v1380, -0.28449672
        %v1445 = vadd.f32 %v1381, -0.28449672
        %v1446 = vadd.f32 %v1382, -0.28449672
        %v1447 = vadd.f32 %v1383, -0.28449672
        %v1448 = vadd.f32 %v1384, -0.28449672
        %v1449 = vadd.f32 %v1385, -0.28449672
        %v1450 = vadd.f32 %v1386, -0.28449672
        %v1451 = vadd.f32 %v1387, -0.28449672
        %v1452 = vadd.f32 %v1388, -0.28449672
        %v1453 = vadd.f32 %v1389, -0.28449672
        %v1454 = vadd.f32 %v1390, -0.28449672
        %v1455 = vadd.f32 %v1391, -0.28449672
        %v1456 = vadd.f32 %v1392, -0.28449672
        %v1457 = vadd.f32 %v1393, -0.28449672
        %v1458 = vadd.f32 %v1394, -0.28449672
        %v1459 = vadd.f32 %v1395, -0.28449672
        %v1460 = vadd.f32 %v1396, -0.28449672
        %v1461 = vadd.f32 %v1397, -0.28449672
        %v1462 = vadd.f32 %v1398, -0.28449672
        %v1463 = vadd.f32 %v1399, -0.28449672
        %v1464 = vadd.f32 %v1400, -0.28449672
        %v1465 = vadd.f32 %v1401, -0.28449672
        %v1466 = vadd.f32 %v1402, -0.28449672
        %v1467 = vadd.f32 %v1403, -0.28449672
        %v1468 = vadd.f32 %v1404, -0.28449672
        %v1469 = vadd.f32 %v1405, -0.28449672
        %v1470 = vadd.f32 %v1406, -0.28449672
        %v1471 = vadd.f32 %v1407, -0.28449672
        %v1472 = vadd.f32 %v1408, -0.28449672
        %v1473 = vadd.f32 %v1409, -0.28449672
        %v1474 = vmul.f32 %v1410, %v1026
        %v1475 = vmul.f32 %v1411, %v1027
        %v1476 = vmul.f32 %v1412, %v1028
        %v1477 = vmul.f32 %v1413, %v1029
        %v1478 = vmul.f32 %v1414, %v1030
        %v1479 = vmul.f32 %v1415, %v1031
        %v1480 = vmul.f32 %v1416, %v1032
        %v1481 = vmul.f32 %v1417, %v1033
        %v1482 = vmul.f32 %v1418, %v1034
        %v1483 = vmul.f32 %v1419, %v1035
        %v1484 = vmul.f32 %v1420, %v1036
        %v1485 = vmul.f32 %v1421, %v1037
        %v1486 = vmul.f32 %v1422, %v1038
        %v1487 = vmul.f32 %v1423, %v1039
        %v1488 = vmul.f32 %v1424, %v1040
        %v1489 = vmul.f32 %v1425, %v1041
        %v1490 = vmul.f32 %v1426, %v1042
        %v1491 = vmul.f32 %v1427, %v1043
        %v1492 = vmul.f32 %v1428, %v1044
        %v1493 = vmul.f32 %v1429, %v1045
        %v1494 = vmul.f32 %v1430, %v1046
        %v1495 = vmul.f32 %v1431, %v1047
        %v1496 = vmul.f32 %v1432, %v1048
        %v1497 = vmul.f32 %v1433, %v1049
        %v1498 = vmul.f32 %v1434, %v1050
        %v1499 = vmul.f32 %v1435, %v1051
        %v1500 = vmul.f32 %v1436, %v1052
        %v1501 = vmul.f32 %v1437, %v1053
        %v1502 = vmul.f32 %v1438, %v1054
        %v1503 = vmul.f32 %v1439, %v1055
        %v1504 = vmul.f32 %v1440, %v1056
        %v1505 = vmul.f32 %v1441, %v1057
        %v1506 = vmul.f32 %v1442, %v1058
        %v1507 = vmul.f32 %v1443, %v1059
        %v1508 = vmul.f32 %v1444, %v1060
        %v1509 = vmul.f32 %v1445, %v1061
        %v1510 = vmul.f32 %v1446, %v1062
        %v1511 = vmul.f32 %v1447, %v1063
        %v1512 = vmul.f32 %v1448, %v1064
        %v1513 = vmul.f32 %v1449, %v1065
        %v1514 = vmul.f32 %v1450, %v1066
        %v1515 = vmul.f32 %v1451, %v1067
        %v1516 = vmul.f32 %v1452, %v1068
        %v1517 = vmul.f32 %v1453, %v1069
        %v1518 = vmul.f32 %v1454, %v1070
        %v1519 = vmul.f32 %v1455, %v1071
        %v1520 = vmul.f32 %v1456, %v1072
        %v1521 = vmul.f32 %v1457, %v1073
        %v1522 = vmul.f32 %v1458, %v1074
        %v1523 = vmul.f32 %v1459, %v1075
        %v1524 = vmul.f32 %v1460, %v1076
        %v1525 = vmul.f32 %v1461, %v1077
        %v1526 = vmul.f32 %v1462, %v1078
        %v1527 = vmul.f32 %v1463, %v1079
        %v1528 = vmul.f32 %v1464, %v1080
        %v1529 = vmul.f32 %v1465, %v1081
        %v1530 = vmul.f32 %v1466, %v1082
        %v1531 = vmul.f32 %v1467, %v1083
        %v1532 = vmul.f32 %v1468, %v1084
        %v1533 = vmul.f32 %v1469, %v1085
        %v1534 = vmul.f32 %v1470, %v1086
        %v1535 = vmul.f32 %v1471, %v1087
        %v1536 = vmul.f32 %v1472, %v1088
        %v1537 = vmul.f32 %v1473, %v1089
        %v1538 = vadd.f32 %v1474, 0.2548296
        %v1539 = vadd.f32 %v1475, 0.2548296
        %v1540 = vadd.f32 %v1476, 0.2548296
        %v1541 = vadd.f32 %v1477, 0.2548296
        %v1542 = vadd.f32 %v1478, 0.2548296
        %v1543 = vadd.f32 %v1479, 0.2548296
        %v1544 = vadd.f32 %v1480, 0.2548296
        %v1545 = vadd.f32 %v1481, 0.2548296
        %v1546 = vadd.f32 %v1482, 0.2548296
        %v1547 = vadd.f32 %v1483, 0.2548296
        %v1548 = vadd.f32 %v1484, 0.2548296
        %v1549 = vadd.f32 %v1485, 0.2548296
        %v1550 = vadd.f32 %v1486, 0.2548296
        %v1551 = vadd.f32 %v1487, 0.2548296
        %v1552 = vadd.f32 %v1488, 0.2548296
        %v1553 = vadd.f32 %v1489, 0.2548296
        %v1554 = vadd.f32 %v1490, 0.2548296
        %v1555 = vadd.f32 %v1491, 0.2548296
        %v1556 = vadd.f32 %v1492, 0.2548296
        %v1557 = vadd.f32 %v1493, 0.2548296
        %v1558 = vadd.f32 %v1494, 0.2548296
        %v1559 = vadd.f32 %v1495, 0.2548296
        %v1560 = vadd.f32 %v1496, 0.2548296
        %v1561 = vadd.f32 %v1497, 0.2548296
        %v1562 = vadd.f32 %v1498, 0.2548296
        %v1563 = vadd.f32 %v1499, 0.2548296
        %v1564 = vadd.f32 %v1500, 0.2548296
        %v1565 = vadd.f32 %v1501, 0.2548296
        %v1566 = vadd.f32 %v1502, 0.2548296
        %v1567 = vadd.f32 %v1503, 0.2548296
        %v1568 = vadd.f32 %v1504, 0.2548296
        %v1569 = vadd.f32 %v1505, 0.2548296
        %v1570 = vadd.f32 %v1506, 0.2548296
        %v1571 = vadd.f32 %v1507, 0.2548296
        %v1572 = vadd.f32 %v1508, 0.2548296
        %v1573 = vadd.f32 %v1509, 0.2548296
        %v1574 = vadd.f32 %v1510, 0.2548296
        %v1575 = vadd.f32 %v1511, 0.2548296
        %v1576 = vadd.f32 %v1512, 0.2548296
        %v1577 = vadd.f32 %v1513, 0.2548296
        %v1578 = vadd.f32 %v1514, 0.2548296
        %v1579 = vadd.f32 %v1515, 0.2548296
        %v1580 = vadd.f32 %v1516, 0.2548296
        %v1581 = vadd.f32 %v1517, 0.2548296
        %v1582 = vadd.f32 %v1518, 0.2548296
        %v1583 = vadd.f32 %v1519, 0.2548296
        %v1584 = vadd.f32 %v1520, 0.2548296
        %v1585 = vadd.f32 %v1521, 0.2548296
        %v1586 = vadd.f32 %v1522, 0.2548296
        %v1587 = vadd.f32 %v1523, 0.2548296
        %v1588 = vadd.f32 %v1524, 0.2548296
        %v1589 = vadd.f32 %v1525, 0.2548296
        %v1590 = vadd.f32 %v1526, 0.2548296
        %v1591 = vadd.f32 %v1527, 0.2548296
        %v1592 = vadd.f32 %v1528, 0.2548296
        %v1593 = vadd.f32 %v1529, 0.2548296
        %v1594 = vadd.f32 %v1530, 0.2548296
        %v1595 = vadd.f32 %v1531, 0.2548296
        %v1596 = vadd.f32 %v1532, 0.2548296
        %v1597 = vadd.f32 %v1533, 0.2548296
        %v1598 = vadd.f32 %v1534, 0.2548296
        %v1599 = vadd.f32 %v1535, 0.2548296
        %v1600 = vadd.f32 %v1536, 0.2548296
        %v1601 = vadd.f32 %v1537, 0.2548296
        %v1602 = vmul.f32 %v1538, %v1026
        %v1603 = vmul.f32 %v1539, %v1027
        %v1604 = vmul.f32 %v1540, %v1028
        %v1605 = vmul.f32 %v1541, %v1029
        %v1606 = vmul.f32 %v1542, %v1030
        %v1607 = vmul.f32 %v1543, %v1031
        %v1608 = vmul.f32 %v1544, %v1032
        %v1609 = vmul.f32 %v1545, %v1033
        %v1610 = vmul.f32 %v1546, %v1034
        %v1611 = vmul.f32 %v1547, %v1035
        %v1612 = vmul.f32 %v1548, %v1036
        %v1613 = vmul.f32 %v1549, %v1037
        %v1614 = vmul.f32 %v1550, %v1038
        %v1615 = vmul.f32 %v1551, %v1039
        %v1616 = vmul.f32 %v1552, %v1040
        %v1617 = vmul.f32 %v1553, %v1041
        %v1618 = vmul.f32 %v1554, %v1042
        %v1619 = vmul.f32 %v1555, %v1043
        %v1620 = vmul.f32 %v1556, %v1044
        %v1621 = vmul.f32 %v1557, %v1045
        %v1622 = vmul.f32 %v1558, %v1046
        %v1623 = vmul.f32 %v1559, %v1047
        %v1624 = vmul.f32 %v1560, %v1048
        %v1625 = vmul.f32 %v1561, %v1049
        %v1626 = vmul.f32 %v1562, %v1050
        %v1627 = vmul.f32 %v1563, %v1051
        %v1628 = vmul.f32 %v1564, %v1052
        %v1629 = vmul.f32 %v1565, %v1053
        %v1630 = vmul.f32 %v1566, %v1054
        %v1631 = vmul.f32 %v1567, %v1055
        %v1632 = vmul.f32 %v1568, %v1056
        %v1633 = vmul.f32 %v1569, %v1057
        %v1634 = vmul.f32 %v1570, %v1058
        %v1635 = vmul.f32 %v1571, %v1059
        %v1636 = vmul.f32 %v1572, %v1060
        %v1637 = vmul.f32 %v1573, %v1061
        %v1638 = vmul.f32 %v1574, %v1062
        %v1639 = vmul.f32 %v1575, %v1063
        %v1640 = vmul.f32 %v1576, %v1064
        %v1641 = vmul.f32 %v1577, %v1065
        %v1642 = vmul.f32 %v1578, %v1066
        %v1643 = vmul.f32 %v1579, %v1067
        %v1644 = vmul.f32 %v1580, %v1068
        %v1645 = vmul.f32 %v1581, %v1069
        %v1646 = vmul.f32 %v1582, %v1070
        %v1647 = vmul.f32 %v1583, %v1071
        %v1648 = vmul.f32 %v1584, %v1072
        %v1649 = vmul.f32 %v1585, %v1073
        %v1650 = vmul.f32 %v1586, %v1074
        %v1651 = vmul.f32 %v1587, %v1075
        %v1652 = vmul.f32 %v1588, %v1076
        %v1653 = vmul.f32 %v1589, %v1077
        %v1654 = vmul.f32 %v1590, %v1078
        %v1655 = vmul.f32 %v1591, %v1079
        %v1656 = vmul.f32 %v1592, %v1080
        %v1657 = vmul.f32 %v1593, %v1081
        %v1658 = vmul.f32 %v1594, %v1082
        %v1659 = vmul.f32 %v1595, %v1083
        %v1660 = vmul.f32 %v1596, %v1084
        %v1661 = vmul.f32 %v1597, %v1085
        %v1662 = vmul.f32 %v1598, %v1086
        %v1663 = vmul.f32 %v1599, %v1087
        %v1664 = vmul.f32 %v1600, %v1088
        %v1665 = vmul.f32 %v1601, %v1089
        %v1666 = vsub.f32 0.0, %v834
        %v1667 = vsub.f32 0.0, %v835
        %v1668 = vsub.f32 0.0, %v836
        %v1669 = vsub.f32 0.0, %v837
        %v1670 = vsub.f32 0.0, %v838
        %v1671 = vsub.f32 0.0, %v839
        %v1672 = vsub.f32 0.0, %v840
        %v1673 = vsub.f32 0.0, %v841
        %v1674 = vsub.f32 0.0, %v842
        %v1675 = vsub.f32 0.0, %v843
        %v1676 = vsub.f32 0.0, %v844
        %v1677 = vsub.f32 0.0, %v845
        %v1678 = vsub.f32 0.0, %v846
        %v1679 = vsub.f32 0.0, %v847
        %v1680 = vsub.f32 0.0, %v848
        %v1681 = vsub.f32 0.0, %v849
        %v1682 = vsub.f32 0.0, %v850
        %v1683 = vsub.f32 0.0, %v851
        %v1684 = vsub.f32 0.0, %v852
        %v1685 = vsub.f32 0.0, %v853
        %v1686 = vsub.f32 0.0, %v854
        %v1687 = vsub.f32 0.0, %v855
        %v1688 = vsub.f32 0.0, %v856
        %v1689 = vsub.f32 0.0, %v857
        %v1690 = vsub.f32 0.0, %v858
        %v1691 = vsub.f32 0.0, %v859
        %v1692 = vsub.f32 0.0, %v860
        %v1693 = vsub.f32 0.0, %v861
        %v1694 = vsub.f32 0.0, %v862
        %v1695 = vsub.f32 0.0, %v863
        %v1696 = vsub.f32 0.0, %v864
        %v1697 = vsub.f32 0.0, %v865
        %v1698 = vsub.f32 0.0, %v866
        %v1699 = vsub.f32 0.0, %v867
        %v1700 = vsub.f32 0.0, %v868
        %v1701 = vsub.f32 0.0, %v869
        %v1702 = vsub.f32 0.0, %v870
        %v1703 = vsub.f32 0.0, %v871
        %v1704 = vsub.f32 0.0, %v872
        %v1705 = vsub.f32 0.0, %v873
        %v1706 = vsub.f32 0.0, %v874
        %v1707 = vsub.f32 0.0, %v875
        %v1708 = vsub.f32 0.0, %v876
        %v1709 = vsub.f32 0.0, %v877
        %v1710 = vsub.f32 0.0, %v878
        %v1711 = vsub.f32 0.0, %v879
        %v1712 = vsub.f32 0.0, %v880
        %v1713 = vsub.f32 0.0, %v881
        %v1714 = vsub.f32 0.0, %v882
        %v1715 = vsub.f32 0.0, %v883
        %v1716 = vsub.f32 0.0, %v884
        %v1717 = vsub.f32 0.0, %v885
        %v1718 = vsub.f32 0.0, %v886
        %v1719 = vsub.f32 0.0, %v887
        %v1720 = vsub.f32 0.0, %v888
        %v1721 = vsub.f32 0.0, %v889
        %v1722 = vsub.f32 0.0, %v890
        %v1723 = vsub.f32 0.0, %v891
        %v1724 = vsub.f32 0.0, %v892
        %v1725 = vsub.f32 0.0, %v893
        %v1726 = vsub.f32 0.0, %v894
        %v1727 = vsub.f32 0.0, %v895
        %v1728 = vsub.f32 0.0, %v896
        %v1729 = vsub.f32 0.0, %v897
        %v1730 = vmul.f32 %v1666, %v834
        %v1731 = vmul.f32 %v1667, %v835
        %v1732 = vmul.f32 %v1668, %v836
        %v1733 = vmul.f32 %v1669, %v837
        %v1734 = vmul.f32 %v1670, %v838
        %v1735 = vmul.f32 %v1671, %v839
        %v1736 = vmul.f32 %v1672, %v840
        %v1737 = vmul.f32 %v1673, %v841
        %v1738 = vmul.f32 %v1674, %v842
        %v1739 = vmul.f32 %v1675, %v843
        %v1740 = vmul.f32 %v1676, %v844
        %v1741 = vmul.f32 %v1677, %v845
        %v1742 = vmul.f32 %v1678, %v846
        %v1743 = vmul.f32 %v1679, %v847
        %v1744 = vmul.f32 %v1680, %v848
        %v1745 = vmul.f32 %v1681, %v849
        %v1746 = vmul.f32 %v1682, %v850
        %v1747 = vmul.f32 %v1683, %v851
        %v1748 = vmul.f32 %v1684, %v852
        %v1749 = vmul.f32 %v1685, %v853
        %v1750 = vmul.f32 %v1686, %v854
        %v1751 = vmul.f32 %v1687, %v855
        %v1752 = vmul.f32 %v1688, %v856
        %v1753 = vmul.f32 %v1689, %v857
        %v1754 = vmul.f32 %v1690, %v858
        %v1755 = vmul.f32 %v1691, %v859
        %v1756 = vmul.f32 %v1692, %v860
        %v1757 = vmul.f32 %v1693, %v861
        %v1758 = vmul.f32 %v1694, %v862
        %v1759 = vmul.f32 %v1695, %v863
        %v1760 = vmul.f32 %v1696, %v864
        %v1761 = vmul.f32 %v1697, %v865
        %v1762 = vmul.f32 %v1698, %v866
        %v1763 = vmul.f32 %v1699, %v867
        %v1764 = vmul.f32 %v1700, %v868
        %v1765 = vmul.f32 %v1701, %v869
        %v1766 = vmul.f32 %v1702, %v870
        %v1767 = vmul.f32 %v1703, %v871
        %v1768 = vmul.f32 %v1704, %v872
        %v1769 = vmul.f32 %v1705, %v873
        %v1770 = vmul.f32 %v1706, %v874
        %v1771 = vmul.f32 %v1707, %v875
        %v1772 = vmul.f32 %v1708, %v876
        %v1773 = vmul.f32 %v1709, %v877
        %v1774 = vmul.f32 %v1710, %v878
        %v1775 = vmul.f32 %v1711, %v879
        %v1776 = vmul.f32 %v1712, %v880
        %v1777 = vmul.f32 %v1713, %v881
        %v1778 = vmul.f32 %v1714, %v882
        %v1779 = vmul.f32 %v1715, %v883
        %v1780 = vmul.f32 %v1716, %v884
        %v1781 = vmul.f32 %v1717, %v885
        %v1782 = vmul.f32 %v1718, %v886
        %v1783 = vmul.f32 %v1719, %v887
        %v1784 = vmul.f32 %v1720, %v888
        %v1785 = vmul.f32 %v1721, %v889
        %v1786 = vmul.f32 %v1722, %v890
        %v1787 = vmul.f32 %v1723, %v891
        %v1788 = vmul.f32 %v1724, %v892
        %v1789 = vmul.f32 %v1725, %v893
        %v1790 = vmul.f32 %v1726, %v894
        %v1791 = vmul.f32 %v1727, %v895
        %v1792 = vmul.f32 %v1728, %v896
        %v1793 = vmul.f32 %v1729, %v897
        %v1794 = vmul.f32 %v1730, 1.442695
        %v1795 = vpow.pop %v1794
        %v1796 = vmul.f32 %v1731, 1.442695
        %v1797 = vpow.pop %v1796
        %v1798 = vmul.f32 %v1732, 1.442695
        %v1799 = vpow.pop %v1798
        %v1800 = vmul.f32 %v1733, 1.442695
        %v1801 = vpow.pop %v1800
        %v1802 = vmul.f32 %v1734, 1.442695
        %v1803 = vpow.pop %v1802
        %v1804 = vmul.f32 %v1735, 1.442695
        %v1805 = vpow.pop %v1804
        %v1806 = vmul.f32 %v1736, 1.442695
        %v1807 = vpow.pop %v1806
        %v1808 = vmul.f32 %v1737, 1.442695
        %v1809 = vpow.pop %v1808
        %v1810 = vmul.f32 %v1738, 1.442695
        %v1811 = vpow.pop %v1810
        %v1812 = vmul.f32 %v1739, 1.442695
        %v1813 = vpow.pop %v1812
        %v1814 = vmul.f32 %v1740, 1.442695
        %v1815 = vpow.pop %v1814
        %v1816 = vmul.f32 %v1741, 1.442695
        %v1817 = vpow.pop %v1816
        %v1818 = vmul.f32 %v1742, 1.442695
        %v1819 = vpow.pop %v1818
        %v1820 = vmul.f32 %v1743, 1.442695
        %v1821 = vpow.pop %v1820
        %v1822 = vmul.f32 %v1744, 1.442695
        %v1823 = vpow.pop %v1822
        %v1824 = vmul.f32 %v1745, 1.442695
        %v1825 = vpow.pop %v1824
        %v1826 = vmul.f32 %v1746, 1.442695
        %v1827 = vpow.pop %v1826
        %v1828 = vmul.f32 %v1747, 1.442695
        %v1829 = vpow.pop %v1828
        %v1830 = vmul.f32 %v1748, 1.442695
        %v1831 = vpow.pop %v1830
        %v1832 = vmul.f32 %v1749, 1.442695
        %v1833 = vpow.pop %v1832
        %v1834 = vmul.f32 %v1750, 1.442695
        %v1835 = vpow.pop %v1834
        %v1836 = vmul.f32 %v1751, 1.442695
        %v1837 = vpow.pop %v1836
        %v1838 = vmul.f32 %v1752, 1.442695
        %v1839 = vpow.pop %v1838
        %v1840 = vmul.f32 %v1753, 1.442695
        %v1841 = vpow.pop %v1840
        %v1842 = vmul.f32 %v1754, 1.442695
        %v1843 = vpow.pop %v1842
        %v1844 = vmul.f32 %v1755, 1.442695
        %v1845 = vpow.pop %v1844
        %v1846 = vmul.f32 %v1756, 1.442695
        %v1847 = vpow.pop %v1846
        %v1848 = vmul.f32 %v1757, 1.442695
        %v1849 = vpow.pop %v1848
        %v1850 = vmul.f32 %v1758, 1.442695
        %v1851 = vpow.pop %v1850
        %v1852 = vmul.f32 %v1759, 1.442695
        %v1853 = vpow.pop %v1852
        %v1854 = vmul.f32 %v1760, 1.442695
        %v1855 = vpow.pop %v1854
        %v1856 = vmul.f32 %v1761, 1.442695
        %v1857 = vpow.pop %v1856
        %v1858 = vmul.f32 %v1762, 1.442695
        %v1859 = vpow.pop %v1858
        %v1860 = vmul.f32 %v1763, 1.442695
        %v1861 = vpow.pop %v1860
        %v1862 = vmul.f32 %v1764, 1.442695
        %v1863 = vpow.pop %v1862
        %v1864 = vmul.f32 %v1765, 1.442695
        %v1865 = vpow.pop %v1864
        %v1866 = vmul.f32 %v1766, 1.442695
        %v1867 = vpow.pop %v1866
        %v1868 = vmul.f32 %v1767, 1.442695
        %v1869 = vpow.pop %v1868
        %v1870 = vmul.f32 %v1768, 1.442695
        %v1871 = vpow.pop %v1870
        %v1872 = vmul.f32 %v1769, 1.442695
        %v1873 = vpow.pop %v1872
        %v1874 = vmul.f32 %v1770, 1.442695
        %v1875 = vpow.pop %v1874
        %v1876 = vmul.f32 %v1771, 1.442695
        %v1877 = vpow.pop %v1876
        %v1878 = vmul.f32 %v1772, 1.442695
        %v1879 = vpow.pop %v1878
        %v1880 = vmul.f32 %v1773, 1.442695
        %v1881 = vpow.pop %v1880
        %v1882 = vmul.f32 %v1774, 1.442695
        %v1883 = vpow.pop %v1882
        %v1884 = vmul.f32 %v1775, 1.442695
        %v1885 = vpow.pop %v1884
        %v1886 = vmul.f32 %v1776, 1.442695
        %v1887 = vpow.pop %v1886
        %v1888 = vmul.f32 %v1777, 1.442695
        %v1889 = vpow.pop %v1888
        %v1890 = vmul.f32 %v1778, 1.442695
        %v1891 = vpow.pop %v1890
        %v1892 = vmul.f32 %v1779, 1.442695
        %v1893 = vpow.pop %v1892
        %v1894 = vmul.f32 %v1780, 1.442695
        %v1895 = vpow.pop %v1894
        %v1896 = vmul.f32 %v1781, 1.442695
        %v1897 = vpow.pop %v1896
        %v1898 = vmul.f32 %v1782, 1.442695
        %v1899 = vpow.pop %v1898
        %v1900 = vmul.f32 %v1783, 1.442695
        %v1901 = vpow.pop %v1900
        %v1902 = vmul.f32 %v1784, 1.442695
        %v1903 = vpow.pop %v1902
        %v1904 = vmul.f32 %v1785, 1.442695
        %v1905 = vpow.pop %v1904
        %v1906 = vmul.f32 %v1786, 1.442695
        %v1907 = vpow.pop %v1906
        %v1908 = vmul.f32 %v1787, 1.442695
        %v1909 = vpow.pop %v1908
        %v1910 = vmul.f32 %v1788, 1.442695
        %v1911 = vpow.pop %v1910
        %v1912 = vmul.f32 %v1789, 1.442695
        %v1913 = vpow.pop %v1912
        %v1914 = vmul.f32 %v1790, 1.442695
        %v1915 = vpow.pop %v1914
        %v1916 = vmul.f32 %v1791, 1.442695
        %v1917 = vpow.pop %v1916
        %v1918 = vmul.f32 %v1792, 1.442695
        %v1919 = vpow.pop %v1918
        %v1920 = vmul.f32 %v1793, 1.442695
        %v1921 = vpow.pop %v1920
        %v1922 = vmul.f32 %v1602, %v1795
        %v1923 = vmul.f32 %v1603, %v1797
        %v1924 = vmul.f32 %v1604, %v1799
        %v1925 = vmul.f32 %v1605, %v1801
        %v1926 = vmul.f32 %v1606, %v1803
        %v1927 = vmul.f32 %v1607, %v1805
        %v1928 = vmul.f32 %v1608, %v1807
        %v1929 = vmul.f32 %v1609, %v1809
        %v1930 = vmul.f32 %v1610, %v1811
        %v1931 = vmul.f32 %v1611, %v1813
        %v1932 = vmul.f32 %v1612, %v1815
        %v1933 = vmul.f32 %v1613, %v1817
        %v1934 = vmul.f32 %v1614, %v1819
        %v1935 = vmul.f32 %v1615, %v1821
        %v1936 = vmul.f32 %v1616, %v1823
        %v1937 = vmul.f32 %v1617, %v1825
        %v1938 = vmul.f32 %v1618, %v1827
        %v1939 = vmul.f32 %v1619, %v1829
        %v1940 = vmul.f32 %v1620, %v1831
        %v1941 = vmul.f32 %v1621, %v1833
        %v1942 = vmul.f32 %v1622, %v1835
        %v1943 = vmul.f32 %v1623, %v1837
        %v1944 = vmul.f32 %v1624, %v1839
        %v1945 = vmul.f32 %v1625, %v1841
        %v1946 = vmul.f32 %v1626, %v1843
        %v1947 = vmul.f32 %v1627, %v1845
        %v1948 = vmul.f32 %v1628, %v1847
        %v1949 = vmul.f32 %v1629, %v1849
        %v1950 = vmul.f32 %v1630, %v1851
        %v1951 = vmul.f32 %v1631, %v1853
        %v1952 = vmul.f32 %v1632, %v1855
        %v1953 = vmul.f32 %v1633, %v1857
        %v1954 = vmul.f32 %v1634, %v1859
        %v1955 = vmul.f32 %v1635, %v1861
        %v1956 = vmul.f32 %v1636, %v1863
        %v1957 = vmul.f32 %v1637, %v1865
        %v1958 = vmul.f32 %v1638, %v1867
        %v1959 = vmul.f32 %v1639, %v1869
        %v1960 = vmul.f32 %v1640, %v1871
        %v1961 = vmul.f32 %v1641, %v1873
        %v1962 = vmul.f32 %v1642, %v1875
        %v1963 = vmul.f32 %v1643, %v1877
        %v1964 = vmul.f32 %v1644, %v1879
        %v1965 = vmul.f32 %v1645, %v1881
        %v1966 = vmul.f32 %v1646, %v1883
        %v1967 = vmul.f32 %v1647, %v1885
        %v1968 = vmul.f32 %v1648, %v1887
        %v1969 = vmul.f32 %v1649, %v1889
        %v1970 = vmul.f32 %v1650, %v1891
        %v1971 = vmul.f32 %v1651, %v1893
        %v1972 = vmul.f32 %v1652, %v1895
        %v1973 = vmul.f32 %v1653, %v1897
        %v1974 = vmul.f32 %v1654, %v1899
        %v1975 = vmul.f32 %v1655, %v1901
        %v1976 = vmul.f32 %v1656, %v1903
        %v1977 = vmul.f32 %v1657, %v1905
        %v1978 = vmul.f32 %v1658, %v1907
        %v1979 = vmul.f32 %v1659, %v1909
        %v1980 = vmul.f32 %v1660, %v1911
        %v1981 = vmul.f32 %v1661, %v1913
        %v1982 = vmul.f32 %v1662, %v1915
        %v1983 = vmul.f32 %v1663, %v1917
        %v1984 = vmul.f32 %v1664, %v1919
        %v1985 = vmul.f32 %v1665, %v1921
        %v1986 = vsub.f32 1.0, %v1922
        %v1987 = vsub.f32 1.0, %v1923
        %v1988 = vsub.f32 1.0, %v1924
        %v1989 = vsub.f32 1.0, %v1925
        %v1990 = vsub.f32 1.0, %v1926
        %v1991 = vsub.f32 1.0, %v1927
        %v1992 = vsub.f32 1.0, %v1928
        %v1993 = vsub.f32 1.0, %v1929
        %v1994 = vsub.f32 1.0, %v1930
        %v1995 = vsub.f32 1.0, %v1931
        %v1996 = vsub.f32 1.0, %v1932
        %v1997 = vsub.f32 1.0, %v1933
        %v1998 = vsub.f32 1.0, %v1934
        %v1999 = vsub.f32 1.0, %v1935
        %v2000 = vsub.f32 1.0, %v1936
        %v2001 = vsub.f32 1.0, %v1937
        %v2002 = vsub.f32 1.0, %v1938
        %v2003 = vsub.f32 1.0, %v1939
        %v2004 = vsub.f32 1.0, %v1940
        %v2005 = vsub.f32 1.0, %v1941
        %v2006 = vsub.f32 1.0, %v1942
        %v2007 = vsub.f32 1.0, %v1943
        %v2008 = vsub.f32 1.0, %v1944
        %v2009 = vsub.f32 1.0, %v1945
        %v2010 = vsub.f32 1.0, %v1946
        %v2011 = vsub.f32 1.0, %v1947
        %v2012 = vsub.f32 1.0, %v1948
        %v2013 = vsub.f32 1.0, %v1949
        %v2014 = vsub.f32 1.0, %v1950
        %v2015 = vsub.f32 1.0, %v1951
        %v2016 = vsub.f32 1.0, %v1952
        %v2017 = vsub.f32 1.0, %v1953
        %v2018 = vsub.f32 1.0, %v1954
        %v2019 = vsub.f32 1.0, %v1955
        %v2020 = vsub.f32 1.0, %v1956
        %v2021 = vsub.f32 1.0, %v1957
        %v2022 = vsub.f32 1.0, %v1958
        %v2023 = vsub.f32 1.0, %v1959
        %v2024 = vsub.f32 1.0, %v1960
        %v2025 = vsub.f32 1.0, %v1961
        %v2026 = vsub.f32 1.0, %v1962
        %v2027 = vsub.f32 1.0, %v1963
        %v2028 = vsub.f32 1.0, %v1964
        %v2029 = vsub.f32 1.0, %v1965
        %v2030 = vsub.f32 1.0, %v1966
        %v2031 = vsub.f32 1.0, %v1967
        %v2032 = vsub.f32 1.0, %v1968
        %v2033 = vsub.f32 1.0, %v1969
        %v2034 = vsub.f32 1.0, %v1970
        %v2035 = vsub.f32 1.0, %v1971
        %v2036 = vsub.f32 1.0, %v1972
        %v2037 = vsub.f32 1.0, %v1973
        %v2038 = vsub.f32 1.0, %v1974
        %v2039 = vsub.f32 1.0, %v1975
        %v2040 = vsub.f32 1.0, %v1976
        %v2041 = vsub.f32 1.0, %v1977
        %v2042 = vsub.f32 1.0, %v1978
        %v2043 = vsub.f32 1.0, %v1979
        %v2044 = vsub.f32 1.0, %v1980
        %v2045 = vsub.f32 1.0, %v1981
        %v2046 = vsub.f32 1.0, %v1982
        %v2047 = vsub.f32 1.0, %v1983
        %v2048 = vsub.f32 1.0, %v1984
        %v2049 = vsub.f32 1.0, %v1985
        %vm2050 = vcmp.ge.f32.partialorder %v770, 0.0
        %vm2051 = vcmp.ge.f32.partialorder %v771, 0.0
        %vm2052 = vcmp.ge.f32.partialorder %v772, 0.0
        %vm2053 = vcmp.ge.f32.partialorder %v773, 0.0
        %vm2054 = vcmp.ge.f32.partialorder %v774, 0.0
        %vm2055 = vcmp.ge.f32.partialorder %v775, 0.0
        %vm2056 = vcmp.ge.f32.partialorder %v776, 0.0
        %vm2057 = vcmp.ge.f32.partialorder %v777, 0.0
        %vm2058 = vcmp.ge.f32.partialorder %v778, 0.0
        %vm2059 = vcmp.ge.f32.partialorder %v779, 0.0
        %vm2060 = vcmp.ge.f32.partialorder %v780, 0.0
        %vm2061 = vcmp.ge.f32.partialorder %v781, 0.0
        %vm2062 = vcmp.ge.f32.partialorder %v782, 0.0
        %vm2063 = vcmp.ge.f32.partialorder %v783, 0.0
        %vm2064 = vcmp.ge.f32.partialorder %v784, 0.0
        %vm2065 = vcmp.ge.f32.partialorder %v785, 0.0
        %vm2066 = vcmp.ge.f32.partialorder %v786, 0.0
        %vm2067 = vcmp.ge.f32.partialorder %v787, 0.0
        %vm2068 = vcmp.ge.f32.partialorder %v788, 0.0
        %vm2069 = vcmp.ge.f32.partialorder %v789, 0.0
        %vm2070 = vcmp.ge.f32.partialorder %v790, 0.0
        %vm2071 = vcmp.ge.f32.partialorder %v791, 0.0
        %vm2072 = vcmp.ge.f32.partialorder %v792, 0.0
        %vm2073 = vcmp.ge.f32.partialorder %v793, 0.0
        %vm2074 = vcmp.ge.f32.partialorder %v794, 0.0
        %vm2075 = vcmp.ge.f32.partialorder %v795, 0.0
        %vm2076 = vcmp.ge.f32.partialorder %v796, 0.0
        %vm2077 = vcmp.ge.f32.partialorder %v797, 0.0
        %vm2078 = vcmp.ge.f32.partialorder %v798, 0.0
        %vm2079 = vcmp.ge.f32.partialorder %v799, 0.0
        %vm2080 = vcmp.ge.f32.partialorder %v800, 0.0
        %vm2081 = vcmp.ge.f32.partialorder %v801, 0.0
        %vm2082 = vcmp.ge.f32.partialorder %v802, 0.0
        %vm2083 = vcmp.ge.f32.partialorder %v803, 0.0
        %vm2084 = vcmp.ge.f32.partialorder %v804, 0.0
        %vm2085 = vcmp.ge.f32.partialorder %v805, 0.0
        %vm2086 = vcmp.ge.f32.partialorder %v806, 0.0
        %vm2087 = vcmp.ge.f32.partialorder %v807, 0.0
        %vm2088 = vcmp.ge.f32.partialorder %v808, 0.0
        %vm2089 = vcmp.ge.f32.partialorder %v809, 0.0
        %vm2090 = vcmp.ge.f32.partialorder %v810, 0.0
        %vm2091 = vcmp.ge.f32.partialorder %v811, 0.0
        %vm2092 = vcmp.ge.f32.partialorder %v812, 0.0
        %vm2093 = vcmp.ge.f32.partialorder %v813, 0.0
        %vm2094 = vcmp.ge.f32.partialorder %v814, 0.0
        %vm2095 = vcmp.ge.f32.partialorder %v815, 0.0
        %vm2096 = vcmp.ge.f32.partialorder %v816, 0.0
        %vm2097 = vcmp.ge.f32.partialorder %v817, 0.0
        %vm2098 = vcmp.ge.f32.partialorder %v818, 0.0
        %vm2099 = vcmp.ge.f32.partialorder %v819, 0.0
        %vm2100 = vcmp.ge.f32.partialorder %v820, 0.0
        %vm2101 = vcmp.ge.f32.partialorder %v821, 0.0
        %vm2102 = vcmp.ge.f32.partialorder %v822, 0.0
        %vm2103 = vcmp.ge.f32.partialorder %v823, 0.0
        %vm2104 = vcmp.ge.f32.partialorder %v824, 0.0
        %vm2105 = vcmp.ge.f32.partialorder %v825, 0.0
        %vm2106 = vcmp.ge.f32.partialorder %v826, 0.0
        %vm2107 = vcmp.ge.f32.partialorder %v827, 0.0
        %vm2108 = vcmp.ge.f32.partialorder %v828, 0.0
        %vm2109 = vcmp.ge.f32.partialorder %v829, 0.0
        %vm2110 = vcmp.ge.f32.partialorder %v830, 0.0
        %vm2111 = vcmp.ge.f32.partialorder %v831, 0.0
        %vm2112 = vcmp.ge.f32.partialorder %v832, 0.0
        %vm2113 = vcmp.ge.f32.partialorder %v833, 0.0
        %v2114 = vsub.f32 0.0, %v1986
        %v2115 = vsub.f32 0.0, %v1987
        %v2116 = vsub.f32 0.0, %v1988
        %v2117 = vsub.f32 0.0, %v1989
        %v2118 = vsub.f32 0.0, %v1990
        %v2119 = vsub.f32 0.0, %v1991
        %v2120 = vsub.f32 0.0, %v1992
        %v2121 = vsub.f32 0.0, %v1993
        %v2122 = vsub.f32 0.0, %v1994
        %v2123 = vsub.f32 0.0, %v1995
        %v2124 = vsub.f32 0.0, %v1996
        %v2125 = vsub.f32 0.0, %v1997
        %v2126 = vsub.f32 0.0, %v1998
        %v2127 = vsub.f32 0.0, %v1999
        %v2128 = vsub.f32 0.0, %v2000
        %v2129 = vsub.f32 0.0, %v2001
        %v2130 = vsub.f32 0.0, %v2002
        %v2131 = vsub.f32 0.0, %v2003
        %v2132 = vsub.f32 0.0, %v2004
        %v2133 = vsub.f32 0.0, %v2005
        %v2134 = vsub.f32 0.0, %v2006
        %v2135 = vsub.f32 0.0, %v2007
        %v2136 = vsub.f32 0.0, %v2008
        %v2137 = vsub.f32 0.0, %v2009
        %v2138 = vsub.f32 0.0, %v2010
        %v2139 = vsub.f32 0.0, %v2011
        %v2140 = vsub.f32 0.0, %v2012
        %v2141 = vsub.f32 0.0, %v2013
        %v2142 = vsub.f32 0.0, %v2014
        %v2143 = vsub.f32 0.0, %v2015
        %v2144 = vsub.f32 0.0, %v2016
        %v2145 = vsub.f32 0.0, %v2017
        %v2146 = vsub.f32 0.0, %v2018
        %v2147 = vsub.f32 0.0, %v2019
        %v2148 = vsub.f32 0.0, %v2020
        %v2149 = vsub.f32 0.0, %v2021
        %v2150 = vsub.f32 0.0, %v2022
        %v2151 = vsub.f32 0.0, %v2023
        %v2152 = vsub.f32 0.0, %v2024
        %v2153 = vsub.f32 0.0, %v2025
        %v2154 = vsub.f32 0.0, %v2026
        %v2155 = vsub.f32 0.0, %v2027
        %v2156 = vsub.f32 0.0, %v2028
        %v2157 = vsub.f32 0.0, %v2029
        %v2158 = vsub.f32 0.0, %v2030
        %v2159 = vsub.f32 0.0, %v2031
        %v2160 = vsub.f32 0.0, %v2032
        %v2161 = vsub.f32 0.0, %v2033
        %v2162 = vsub.f32 0.0, %v2034
        %v2163 = vsub.f32 0.0, %v2035
        %v2164 = vsub.f32 0.0, %v2036
        %v2165 = vsub.f32 0.0, %v2037
        %v2166 = vsub.f32 0.0, %v2038
        %v2167 = vsub.f32 0.0, %v2039
        %v2168 = vsub.f32 0.0, %v2040
        %v2169 = vsub.f32 0.0, %v2041
        %v2170 = vsub.f32 0.0, %v2042
        %v2171 = vsub.f32 0.0, %v2043
        %v2172 = vsub.f32 0.0, %v2044
        %v2173 = vsub.f32 0.0, %v2045
        %v2174 = vsub.f32 0.0, %v2046
        %v2175 = vsub.f32 0.0, %v2047
        %v2176 = vsub.f32 0.0, %v2048
        %v2177 = vsub.f32 0.0, %v2049
        %v2178 = vsel %vm2050, %v1986, %v2114
        %v2179 = vsel %vm2051, %v1987, %v2115
        %v2180 = vsel %vm2052, %v1988, %v2116
        %v2181 = vsel %vm2053, %v1989, %v2117
        %v2182 = vsel %vm2054, %v1990, %v2118
        %v2183 = vsel %vm2055, %v1991, %v2119
        %v2184 = vsel %vm2056, %v1992, %v2120
        %v2185 = vsel %vm2057, %v1993, %v2121
        %v2186 = vsel %vm2058, %v1994, %v2122
        %v2187 = vsel %vm2059, %v1995, %v2123
        %v2188 = vsel %vm2060, %v1996, %v2124
        %v2189 = vsel %vm2061, %v1997, %v2125
        %v2190 = vsel %vm2062, %v1998, %v2126
        %v2191 = vsel %vm2063, %v1999, %v2127
        %v2192 = vsel %vm2064, %v2000, %v2128
        %v2193 = vsel %vm2065, %v2001, %v2129
        %v2194 = vsel %vm2066, %v2002, %v2130
        %v2195 = vsel %vm2067, %v2003, %v2131
        %v2196 = vsel %vm2068, %v2004, %v2132
        %v2197 = vsel %vm2069, %v2005, %v2133
        %v2198 = vsel %vm2070, %v2006, %v2134
        %v2199 = vsel %vm2071, %v2007, %v2135
        %v2200 = vsel %vm2072, %v2008, %v2136
        %v2201 = vsel %vm2073, %v2009, %v2137
        %v2202 = vsel %vm2074, %v2010, %v2138
        %v2203 = vsel %vm2075, %v2011, %v2139
        %v2204 = vsel %vm2076, %v2012, %v2140
        %v2205 = vsel %vm2077, %v2013, %v2141
        %v2206 = vsel %vm2078, %v2014, %v2142
        %v2207 = vsel %vm2079, %v2015, %v2143
        %v2208 = vsel %vm2080, %v2016, %v2144
        %v2209 = vsel %vm2081, %v2017, %v2145
        %v2210 = vsel %vm2082, %v2018, %v2146
        %v2211 = vsel %vm2083, %v2019, %v2147
        %v2212 = vsel %vm2084, %v2020, %v2148
        %v2213 = vsel %vm2085, %v2021, %v2149
        %v2214 = vsel %vm2086, %v2022, %v2150
        %v2215 = vsel %vm2087, %v2023, %v2151
        %v2216 = vsel %vm2088, %v2024, %v2152
        %v2217 = vsel %vm2089, %v2025, %v2153
        %v2218 = vsel %vm2090, %v2026, %v2154
        %v2219 = vsel %vm2091, %v2027, %v2155
        %v2220 = vsel %vm2092, %v2028, %v2156
        %v2221 = vsel %vm2093, %v2029, %v2157
        %v2222 = vsel %vm2094, %v2030, %v2158
        %v2223 = vsel %vm2095, %v2031, %v2159
        %v2224 = vsel %vm2096, %v2032, %v2160
        %v2225 = vsel %vm2097, %v2033, %v2161
        %v2226 = vsel %vm2098, %v2034, %v2162
        %v2227 = vsel %vm2099, %v2035, %v2163
        %v2228 = vsel %vm2100, %v2036, %v2164
        %v2229 = vsel %vm2101, %v2037, %v2165
        %v2230 = vsel %vm2102, %v2038, %v2166
        %v2231 = vsel %vm2103, %v2039, %v2167
        %v2232 = vsel %vm2104, %v2040, %v2168
        %v2233 = vsel %vm2105, %v2041, %v2169
        %v2234 = vsel %vm2106, %v2042, %v2170
        %v2235 = vsel %vm2107, %v2043, %v2171
        %v2236 = vsel %vm2108, %v2044, %v2172
        %v2237 = vsel %vm2109, %v2045, %v2173
        %v2238 = vsel %vm2110, %v2046, %v2174
        %v2239 = vsel %vm2111, %v2047, %v2175
        %v2240 = vsel %vm2112, %v2048, %v2176
        %v2241 = vsel %vm2113, %v2049, %v2177
        %v2242 = vadd.f32 %v2178, 1.0
        %v2243 = vadd.f32 %v2179, 1.0
        %v2244 = vadd.f32 %v2180, 1.0
        %v2245 = vadd.f32 %v2181, 1.0
        %v2246 = vadd.f32 %v2182, 1.0
        %v2247 = vadd.f32 %v2183, 1.0
        %v2248 = vadd.f32 %v2184, 1.0
        %v2249 = vadd.f32 %v2185, 1.0
        %v2250 = vadd.f32 %v2186, 1.0
        %v2251 = vadd.f32 %v2187, 1.0
        %v2252 = vadd.f32 %v2188, 1.0
        %v2253 = vadd.f32 %v2189, 1.0
        %v2254 = vadd.f32 %v2190, 1.0
        %v2255 = vadd.f32 %v2191, 1.0
        %v2256 = vadd.f32 %v2192, 1.0
        %v2257 = vadd.f32 %v2193, 1.0
        %v2258 = vadd.f32 %v2194, 1.0
        %v2259 = vadd.f32 %v2195, 1.0
        %v2260 = vadd.f32 %v2196, 1.0
        %v2261 = vadd.f32 %v2197, 1.0
        %v2262 = vadd.f32 %v2198, 1.0
        %v2263 = vadd.f32 %v2199, 1.0
        %v2264 = vadd.f32 %v2200, 1.0
        %v2265 = vadd.f32 %v2201, 1.0
        %v2266 = vadd.f32 %v2202, 1.0
        %v2267 = vadd.f32 %v2203, 1.0
        %v2268 = vadd.f32 %v2204, 1.0
        %v2269 = vadd.f32 %v2205, 1.0
        %v2270 = vadd.f32 %v2206, 1.0
        %v2271 = vadd.f32 %v2207, 1.0
        %v2272 = vadd.f32 %v2208, 1.0
        %v2273 = vadd.f32 %v2209, 1.0
        %v2274 = vadd.f32 %v2210, 1.0
        %v2275 = vadd.f32 %v2211, 1.0
        %v2276 = vadd.f32 %v2212, 1.0
        %v2277 = vadd.f32 %v2213, 1.0
        %v2278 = vadd.f32 %v2214, 1.0
        %v2279 = vadd.f32 %v2215, 1.0
        %v2280 = vadd.f32 %v2216, 1.0
        %v2281 = vadd.f32 %v2217, 1.0
        %v2282 = vadd.f32 %v2218, 1.0
        %v2283 = vadd.f32 %v2219, 1.0
        %v2284 = vadd.f32 %v2220, 1.0
        %v2285 = vadd.f32 %v2221, 1.0
        %v2286 = vadd.f32 %v2222, 1.0
        %v2287 = vadd.f32 %v2223, 1.0
        %v2288 = vadd.f32 %v2224, 1.0
        %v2289 = vadd.f32 %v2225, 1.0
        %v2290 = vadd.f32 %v2226, 1.0
        %v2291 = vadd.f32 %v2227, 1.0
        %v2292 = vadd.f32 %v2228, 1.0
        %v2293 = vadd.f32 %v2229, 1.0
        %v2294 = vadd.f32 %v2230, 1.0
        %v2295 = vadd.f32 %v2231, 1.0
        %v2296 = vadd.f32 %v2232, 1.0
        %v2297 = vadd.f32 %v2233, 1.0
        %v2298 = vadd.f32 %v2234, 1.0
        %v2299 = vadd.f32 %v2235, 1.0
        %v2300 = vadd.f32 %v2236, 1.0
        %v2301 = vadd.f32 %v2237, 1.0
        %v2302 = vadd.f32 %v2238, 1.0
        %v2303 = vadd.f32 %v2239, 1.0
        %v2304 = vadd.f32 %v2240, 1.0
        %v2305 = vadd.f32 %v2241, 1.0
        %v2306 = vmul.f32 %v706, %v2242
        %v2307 = vmul.f32 %v707, %v2243
        %v2308 = vmul.f32 %v708, %v2244
        %v2309 = vmul.f32 %v709, %v2245
        %v2310 = vmul.f32 %v710, %v2246
        %v2311 = vmul.f32 %v711, %v2247
        %v2312 = vmul.f32 %v712, %v2248
        %v2313 = vmul.f32 %v713, %v2249
        %v2314 = vmul.f32 %v714, %v2250
        %v2315 = vmul.f32 %v715, %v2251
        %v2316 = vmul.f32 %v716, %v2252
        %v2317 = vmul.f32 %v717, %v2253
        %v2318 = vmul.f32 %v718, %v2254
        %v2319 = vmul.f32 %v719, %v2255
        %v2320 = vmul.f32 %v720, %v2256
        %v2321 = vmul.f32 %v721, %v2257
        %v2322 = vmul.f32 %v722, %v2258
        %v2323 = vmul.f32 %v723, %v2259
        %v2324 = vmul.f32 %v724, %v2260
        %v2325 = vmul.f32 %v725, %v2261
        %v2326 = vmul.f32 %v726, %v2262
        %v2327 = vmul.f32 %v727, %v2263
        %v2328 = vmul.f32 %v728, %v2264
        %v2329 = vmul.f32 %v729, %v2265
        %v2330 = vmul.f32 %v730, %v2266
        %v2331 = vmul.f32 %v731, %v2267
        %v2332 = vmul.f32 %v732, %v2268
        %v2333 = vmul.f32 %v733, %v2269
        %v2334 = vmul.f32 %v734, %v2270
        %v2335 = vmul.f32 %v735, %v2271
        %v2336 = vmul.f32 %v736, %v2272
        %v2337 = vmul.f32 %v737, %v2273
        %v2338 = vmul.f32 %v738, %v2274
        %v2339 = vmul.f32 %v739, %v2275
        %v2340 = vmul.f32 %v740, %v2276
        %v2341 = vmul.f32 %v741, %v2277
        %v2342 = vmul.f32 %v742, %v2278
        %v2343 = vmul.f32 %v743, %v2279
        %v2344 = vmul.f32 %v744, %v2280
        %v2345 = vmul.f32 %v745, %v2281
        %v2346 = vmul.f32 %v746, %v2282
        %v2347 = vmul.f32 %v747, %v2283
        %v2348 = vmul.f32 %v748, %v2284
        %v2349 = vmul.f32 %v749, %v2285
        %v2350 = vmul.f32 %v750, %v2286
        %v2351 = vmul.f32 %v751, %v2287
        %v2352 = vmul.f32 %v752, %v2288
        %v2353 = vmul.f32 %v753, %v2289
        %v2354 = vmul.f32 %v754, %v2290
        %v2355 = vmul.f32 %v755, %v2291
        %v2356 = vmul.f32 %v756, %v2292
        %v2357 = vmul.f32 %v757, %v2293
        %v2358 = vmul.f32 %v758, %v2294
        %v2359 = vmul.f32 %v759, %v2295
        %v2360 = vmul.f32 %v760, %v2296
        %v2361 = vmul.f32 %v761, %v2297
        %v2362 = vmul.f32 %v762, %v2298
        %v2363 = vmul.f32 %v763, %v2299
        %v2364 = vmul.f32 %v764, %v2300
        %v2365 = vmul.f32 %v765, %v2301
        %v2366 = vmul.f32 %v766, %v2302
        %v2367 = vmul.f32 %v767, %v2303
        %v2368 = vmul.f32 %v768, %v2304
        %v2369 = vmul.f32 %v769, %v2305
        %v2370 = vld [vmem:[#allocation2] sm:$0xff]
        %v2371 = vld [vmem:[#allocation2 + $0x8] sm:$0xff]
        %v2372 = vld [vmem:[#allocation2 + $0x10] sm:$0xff]
        %v2373 = vld [vmem:[#allocation2 + $0x18] sm:$0xff]
        %v2374 = vld [vmem:[#allocation2 + $0x20] sm:$0xff]
        %v2375 = vld [vmem:[#allocation2 + $0x28] sm:$0xff]
        %v2376 = vld [vmem:[#allocation2 + $0x30] sm:$0xff]
        %v2377 = vld [vmem:[#allocation2 + $0x38] sm:$0xff]
        %v2378 = vld [vmem:[#allocation2 + $0x40] sm:$0xff]
        %v2379 = vld [vmem:[#allocation2 + $0x48] sm:$0xff]
        %v2380 = vld [vmem:[#allocation2 + $0x50] sm:$0xff]
        %v2381 = vld [vmem:[#allocation2 + $0x58] sm:$0xff]
        %v2382 = vld [vmem:[#allocation2 + $0x60] sm:$0xff]
        %v2383 = vld [vmem:[#allocation2 + $0x68] sm:$0xff]
        %v2384 = vld [vmem:[#allocation2 + $0x70] sm:$0xff]
        %v2385 = vld [vmem:[#allocation2 + $0x78] sm:$0xff]
        %v2386 = vld [vmem:[#allocation2 + $0x80] sm:$0xff]
        %v2387 = vld [vmem:[#allocation2 + $0x88] sm:$0xff]
        %v2388 = vld [vmem:[#allocation2 + $0x90] sm:$0xff]
        %v2389 = vld [vmem:[#allocation2 + $0x98] sm:$0xff]
        %v2390 = vld [vmem:[#allocation2 + $0xa0] sm:$0xff]
        %v2391 = vld [vmem:[#allocation2 + $0xa8] sm:$0xff]
        %v2392 = vld [vmem:[#allocation2 + $0xb0] sm:$0xff]
        %v2393 = vld [vmem:[#allocation2 + $0xb8] sm:$0xff]
        %v2394 = vld [vmem:[#allocation2 + $0xc0] sm:$0xff]
        %v2395 = vld [vmem:[#allocation2 + $0xc8] sm:$0xff]
        %v2396 = vld [vmem:[#allocation2 + $0xd0] sm:$0xff]
        %v2397 = vld [vmem:[#allocation2 + $0xd8] sm:$0xff]
        %v2398 = vld [vmem:[#allocation2 + $0xe0] sm:$0xff]
        %v2399 = vld [vmem:[#allocation2 + $0xe8] sm:$0xff]
        %v2400 = vld [vmem:[#allocation2 + $0xf0] sm:$0xff]
        %v2401 = vld [vmem:[#allocation2 + $0xf8] sm:$0xff]
        %v2402 = vld [vmem:[#allocation8] sm:$0xff]
        %v2403 = vld [vmem:[#allocation8 + $0x8] sm:$0xff]
        %v2404 = vld [vmem:[#allocation8 + $0x10] sm:$0xff]
        %v2405 = vld [vmem:[#allocation8 + $0x18] sm:$0xff]
        %v2406 = vld [vmem:[#allocation8 + $0x20] sm:$0xff]
        %v2407 = vld [vmem:[#allocation8 + $0x28] sm:$0xff]
        %v2408 = vld [vmem:[#allocation8 + $0x30] sm:$0xff]
        %v2409 = vld [vmem:[#allocation8 + $0x38] sm:$0xff]
        %v2410 = vld [vmem:[#allocation8 + $0x40] sm:$0xff]
        %v2411 = vld [vmem:[#allocation8 + $0x48] sm:$0xff]
        %v2412 = vld [vmem:[#allocation8 + $0x50] sm:$0xff]
        %v2413 = vld [vmem:[#allocation8 + $0x58] sm:$0xff]
        %v2414 = vld [vmem:[#allocation8 + $0x60] sm:$0xff]
        %v2415 = vld [vmem:[#allocation8 + $0x68] sm:$0xff]
        %v2416 = vld [vmem:[#allocation8 + $0x70] sm:$0xff]
        %v2417 = vld [vmem:[#allocation8 + $0x78] sm:$0xff]
        %v2418 = vld [vmem:[#allocation8 + $0x80] sm:$0xff]
        %v2419 = vld [vmem:[#allocation8 + $0x88] sm:$0xff]
        %v2420 = vld [vmem:[#allocation8 + $0x90] sm:$0xff]
        %v2421 = vld [vmem:[#allocation8 + $0x98] sm:$0xff]
        %v2422 = vld [vmem:[#allocation8 + $0xa0] sm:$0xff]
        %v2423 = vld [vmem:[#allocation8 + $0xa8] sm:$0xff]
        %v2424 = vld [vmem:[#allocation8 + $0xb0] sm:$0xff]
        %v2425 = vld [vmem:[#allocation8 + $0xb8] sm:$0xff]
        %v2426 = vld [vmem:[#allocation8 + $0xc0] sm:$0xff]
        %v2427 = vld [vmem:[#allocation8 + $0xc8] sm:$0xff]
        %v2428 = vld [vmem:[#allocation8 + $0xd0] sm:$0xff]
        %v2429 = vld [vmem:[#allocation8 + $0xd8] sm:$0xff]
        %v2430 = vld [vmem:[#allocation8 + $0xe0] sm:$0xff]
        %v2431 = vld [vmem:[#allocation8 + $0xe8] sm:$0xff]
        %v2432 = vld [vmem:[#allocation8 + $0xf0] sm:$0xff]
        %v2433 = vld [vmem:[#allocation8 + $0xf8] sm:$0xff]
        %2434 = vmatprep.subr.mxu0 0.0
        %2435 = vmatpush1.msra.mxu0 %v2402
        %2436 = vmatprep.subr.mxu0 0.0
        %2437 = vmatpush1.msra.mxu0 %v2403
        %2438 = vmatprep.subr.mxu0 0.0
        %2439 = vmatpush1.msra.mxu0 %v2404
        %2440 = vmatprep.subr.mxu0 0.0
        %2441 = vmatpush1.msra.mxu0 %v2405
        %2442 = vmatprep.subr.mxu0 0.0
        %2443 = vmatpush1.msra.mxu0 %v2406
        %2444 = vmatprep.subr.mxu0 0.0
        %2445 = vmatpush1.msra.mxu0 %v2407
        %2446 = vmatprep.subr.mxu0 0.0
        %2447 = vmatpush1.msra.mxu0 %v2408
        %2448 = vmatprep.subr.mxu0 0.0
        %2449 = vmatpush1.msra.mxu0 %v2409
        %2450 = vmatprep.subr.mxu0 0.0
        %2451 = vmatpush1.msra.mxu0 %v2410
        %2452 = vmatprep.subr.mxu0 0.0
        %2453 = vmatpush1.msra.mxu0 %v2411
        %2454 = vmatprep.subr.mxu0 0.0
        %2455 = vmatpush1.msra.mxu0 %v2412
        %2456 = vmatprep.subr.mxu0 0.0
        %2457 = vmatpush1.msra.mxu0 %v2413
        %2458 = vmatprep.subr.mxu0 0.0
        %2459 = vmatpush1.msra.mxu0 %v2414
        %2460 = vmatprep.subr.mxu0 0.0
        %2461 = vmatpush1.msra.mxu0 %v2415
        %2462 = vmatprep.subr.mxu0 0.0
        %2463 = vmatpush1.msra.mxu0 %v2416
        %2464 = vmatprep.subr.mxu0 0.0
        %2465 = vmatpush1.msra.mxu0 %v2417
        %2466 = vmatprep.subr.mxu0 0.0
        %2467 = vmatpush1.msra.mxu0 %v2418
        %2468 = vmatprep.subr.mxu0 0.0
        %2469 = vmatpush1.msra.mxu0 %v2419
        %2470 = vmatprep.subr.mxu0 0.0
        %2471 = vmatpush1.msra.mxu0 %v2420
        %2472 = vmatprep.subr.mxu0 0.0
        %2473 = vmatpush1.msra.mxu0 %v2421
        %2474 = vmatprep.subr.mxu0 0.0
        %2475 = vmatpush1.msra.mxu0 %v2422
        %2476 = vmatprep.subr.mxu0 0.0
        %2477 = vmatpush1.msra.mxu0 %v2423
        %2478 = vmatprep.subr.mxu0 0.0
        %2479 = vmatpush1.msra.mxu0 %v2424
        %2480 = vmatprep.subr.mxu0 0.0
        %2481 = vmatpush1.msra.mxu0 %v2425
        %2482 = vmatprep.subr.mxu0 0.0
        %2483 = vmatpush1.msra.mxu0 %v2426
        %2484 = vmatprep.subr.mxu0 0.0
        %2485 = vmatpush1.msra.mxu0 %v2427
        %2486 = vmatprep.subr.mxu0 0.0
        %2487 = vmatpush1.msra.mxu0 %v2428
        %2488 = vmatprep.subr.mxu0 0.0
        %2489 = vmatpush1.msra.mxu0 %v2429
        %2490 = vmatprep.subr.mxu0 0.0
        %2491 = vmatpush1.msra.mxu0 %v2430
        %2492 = vmatprep.subr.mxu0 0.0
        %2493 = vmatpush1.msra.mxu0 %v2431
        %2494 = vmatprep.subr.mxu0 0.0
        %2495 = vmatpush1.msra.mxu0 %v2432
        %2496 = vmatprep.subr.mxu0 0.0
        %2497 = vmatpush1.msra.mxu0 %v2433
        %2498 = vmatprep.mubr.f32.mxu0 %v2307
        %2499 = vmatmul.mubr.f32.gmra.mrb[0].mxu0 %v2306
        %v2500 = vpop.f32.mrb[0].mxu0
        %v2501 = vadd.f32 0.0, %v2500
        %v2502 = vpop.f32.mrb[0].mxu0
        %2503 = vmatprep.mubr.f32.mxu0 %v2309
        %2504 = vmatmul.mubr.f32.gmra.mrb[0].mxu0 %v2308
        %v2505 = vpop.f32.mrb[0].mxu0
        %v2506 = vadd.f32 0.0, %v2505
        %v2507 = vpop.f32.mrb[0].mxu0
        %2508 = vmatprep.mubr.f32.mxu0 %v2311
        %2509 = vmatmul.mubr.f32.gmra.mrb[0].mxu0 %v2310
        %v2510 = vpop.f32.mrb[0].mxu0
        %v2511 = vadd.f32 0.0, %v2510
        %v2512 = vpop.f32.mrb[0].mxu0
        %2513 = vmatprep.mubr.f32.mxu0 %v2313
        %2514 = vmatmul.mubr.f32.gmra.mrb[0].mxu0 %v2312
        %v2515 = vpop.f32.mrb[0].mxu0
        %v2516 = vadd.f32 0.0, %v2515
        %v2517 = vpop.f32.mrb[0].mxu0
        %2518 = vmatprep.mubr.f32.mxu0 %v2315
        %2519 = vmatmul.mubr.f32.gmra.mrb[0].mxu0 %v2314
        %v2520 = vpop.f32.mrb[0].mxu0
        %v2521 = vadd.f32 0.0, %v2520
        %v2522 = vpop.f32.mrb[0].mxu0
        %2523 = vmatprep.mubr.f32.mxu0 %v2317
        %2524 = vmatmul.mubr.f32.gmra.mrb[0].mxu0 %v2316
        %v2525 = vpop.f32.mrb[0].mxu0
        %v2526 = vadd.f32 0.0, %v2525
        %v2527 = vpop.f32.mrb[0].mxu0
        %2528 = vmatprep.mubr.f32.mxu0 %v2319
        %2529 = vmatmul.mubr.f32.gmra.mrb[0].mxu0 %v2318
        %v2530 = vpop.f32.mrb[0].mxu0
        %v2531 = vadd.f32 0.0, %v2530
        %v2532 = vpop.f32.mrb[0].mxu0
        %2533 = vmatprep.mubr.f32.mxu0 %v2321
        %2534 = vmatmul.mubr.f32.gmra.mrb[0].mxu0 %v2320
        %v2535 = vpop.f32.mrb[0].mxu0
        %v2536 = vadd.f32 0.0, %v2535
        %v2537 = vpop.f32.mrb[0].mxu0
        %2538 = vmatprep.mubr.f32.mxu0 %v2323
        %2539 = vmatmul.mubr.f32.gmra.mrb[0].mxu0 %v2322
        %v2540 = vpop.f32.mrb[0].mxu0
        %v2541 = vadd.f32 0.0, %v2540
        %v2542 = vpop.f32.mrb[0].mxu0
        %2543 = vmatprep.mubr.f32.mxu0 %v2325
        %2544 = vmatmul.mubr.f32.gmra.mrb[0].mxu0 %v2324
        %v2545 = vpop.f32.mrb[0].mxu0
        %v2546 = vadd.f32 0.0, %v2545
        %v2547 = vpop.f32.mrb[0].mxu0
        %2548 = vmatprep.mubr.f32.mxu0 %v2327
        %2549 = vmatmul.mubr.f32.gmra.mrb[0].mxu0 %v2326
        %v2550 = vpop.f32.mrb[0].mxu0
        %v2551 = vadd.f32 0.0, %v2550
        %v2552 = vpop.f32.mrb[0].mxu0
        %2553 = vmatprep.mubr.f32.mxu0 %v2329
        %2554 = vmatmul.mubr.f32.gmra.mrb[0].mxu0 %v2328
        %v2555 = vpop.f32.mrb[0].mxu0
        %v2556 = vadd.f32 0.0, %v2555
        %v2557 = vpop.f32.mrb[0].mxu0
        %2558 = vmatprep.mubr.f32.mxu0 %v2331
        %2559 = vmatmul.mubr.f32.gmra.mrb[0].mxu0 %v2330
        %v2560 = vpop.f32.mrb[0].mxu0
        %v2561 = vadd.f32 0.0, %v2560
        %v2562 = vpop.f32.mrb[0].mxu0
        %2563 = vmatprep.mubr.f32.mxu0 %v2333
        %2564 = vmatmul.mubr.f32.gmra.mrb[0].mxu0 %v2332
        %v2565 = vpop.f32.mrb[0].mxu0
        %v2566 = vadd.f32 0.0, %v2565
        %v2567 = vpop.f32.mrb[0].mxu0
        %2568 = vmatprep.mubr.f32.mxu0 %v2335
        %2569 = vmatmul.mubr.f32.gmra.mrb[0].mxu0 %v2334
        %v2570 = vpop.f32.mrb[0].mxu0
        %v2571 = vadd.f32 0.0, %v2570
        %v2572 = vpop.f32.mrb[0].mxu0
        %2573 = vmatprep.mubr.f32.mxu0 %v2337
        %2574 = vmatmul.mubr.f32.gmra.mrb[0].mxu0 %v2336
        %v2575 = vpop.f32.mrb[0].mxu0
        %v2576 = vadd.f32 0.0, %v2575
        %v2577 = vpop.f32.mrb[0].mxu0
        %2578 = vmatprep.mubr.f32.mxu0 %v2339
        %2579 = vmatmul.mubr.f32.gmra.mrb[0].mxu0 %v2338
        %v2580 = vpop.f32.mrb[0].mxu0
        %v2581 = vadd.f32 0.0, %v2580
        %v2582 = vpop.f32.mrb[0].mxu0
        %2583 = vmatprep.mubr.f32.mxu0 %v2341
        %2584 = vmatmul.mubr.f32.gmra.mrb[0].mxu0 %v2340
        %v2585 = vpop.f32.mrb[0].mxu0
        %v2586 = vadd.f32 0.0, %v2585
        %v2587 = vpop.f32.mrb[0].mxu0
        %2588 = vmatprep.mubr.f32.mxu0 %v2343
        %2589 = vmatmul.mubr.f32.gmra.mrb[0].mxu0 %v2342
        %v2590 = vpop.f32.mrb[0].mxu0
        %v2591 = vadd.f32 0.0, %v2590
        %v2592 = vpop.f32.mrb[0].mxu0
        %2593 = vmatprep.mubr.f32.mxu0 %v2345
        %2594 = vmatmul.mubr.f32.gmra.mrb[0].mxu0 %v2344
        %v2595 = vpop.f32.mrb[0].mxu0
        %v2596 = vadd.f32 0.0, %v2595
        %v2597 = vpop.f32.mrb[0].mxu0
        %2598 = vmatprep.mubr.f32.mxu0 %v2347
        %2599 = vmatmul.mubr.f32.gmra.mrb[0].mxu0 %v2346
        %v2600 = vpop.f32.mrb[0].mxu0
        %v2601 = vadd.f32 0.0, %v2600
        %v2602 = vpop.f32.mrb[0].mxu0
        %2603 = vmatprep.mubr.f32.mxu0 %v2349
        %2604 = vmatmul.mubr.f32.gmra.mrb[0].mxu0 %v2348
        %v2605 = vpop.f32.mrb[0].mxu0
        %v2606 = vadd.f32 0.0, %v2605
        %v2607 = vpop.f32.mrb[0].mxu0
        %2608 = vmatprep.mubr.f32.mxu0 %v2351
        %2609 = vmatmul.mubr.f32.gmra.mrb[0].mxu0 %v2350
        %v2610 = vpop.f32.mrb[0].mxu0
        %v2611 = vadd.f32 0.0, %v2610
        %v2612 = vpop.f32.mrb[0].mxu0
        %2613 = vmatprep.mubr.f32.mxu0 %v2353
        %2614 = vmatmul.mubr.f32.gmra.mrb[0].mxu0 %v2352
        %v2615 = vpop.f32.mrb[0].mxu0
        %v2616 = vadd.f32 0.0, %v2615
        %v2617 = vpop.f32.mrb[0].mxu0
        %2618 = vmatprep.mubr.f32.mxu0 %v2355
        %2619 = vmatmul.mubr.f32.gmra.mrb[0].mxu0 %v2354
        %v2620 = vpop.f32.mrb[0].mxu0
        %v2621 = vadd.f32 0.0, %v2620
        %v2622 = vpop.f32.mrb[0].mxu0
        %2623 = vmatprep.mubr.f32.mxu0 %v2357
        %2624 = vmatmul.mubr.f32.gmra.mrb[0].mxu0 %v2356
        %v2625 = vpop.f32.mrb[0].mxu0
        %v2626 = vadd.f32 0.0, %v2625
        %v2627 = vpop.f32.mrb[0].mxu0
        %2628 = vmatprep.mubr.f32.mxu0 %v2359
        %2629 = vmatmul.mubr.f32.gmra.mrb[0].mxu0 %v2358
        %v2630 = vpop.f32.mrb[0].mxu0
        %v2631 = vadd.f32 0.0, %v2630
        %v2632 = vpop.f32.mrb[0].mxu0
        %2633 = vmatprep.mubr.f32.mxu0 %v2361
        %2634 = vmatmul.mubr.f32.gmra.mrb[0].mxu0 %v2360
        %v2635 = vpop.f32.mrb[0].mxu0
        %v2636 = vadd.f32 0.0, %v2635
        %v2637 = vpop.f32.mrb[0].mxu0
        %2638 = vmatprep.mubr.f32.mxu0 %v2363
        %2639 = vmatmul.mubr.f32.gmra.mrb[0].mxu0 %v2362
        %v2640 = vpop.f32.mrb[0].mxu0
        %v2641 = vadd.f32 0.0, %v2640
        %v2642 = vpop.f32.mrb[0].mxu0
        %2643 = vmatprep.mubr.f32.mxu0 %v2365
        %2644 = vmatmul.mubr.f32.gmra.mrb[0].mxu0 %v2364
        %v2645 = vpop.f32.mrb[0].mxu0
        %v2646 = vadd.f32 0.0, %v2645
        %v2647 = vpop.f32.mrb[0].mxu0
        %2648 = vmatprep.mubr.f32.mxu0 %v2367
        %2649 = vmatmul.mubr.f32.gmra.mrb[0].mxu0 %v2366
        %v2650 = vpop.f32.mrb[0].mxu0
        %v2651 = vadd.f32 0.0, %v2650
        %v2652 = vpop.f32.mrb[0].mxu0
        %2653 = vmatprep.mubr.f32.mxu0 %v2369
        %2654 = vmatmul.mubr.f32.gmra.mrb[0].mxu0 %v2368
        %v2655 = vpop.f32.mrb[0].mxu0
        %v2656 = vadd.f32 0.0, %v2655
        %v2657 = vpop.f32.mrb[0].mxu0
        %2658 = vdwg.mxu0
        %v2659 = vadd.f32 %v2370, %v2501
        %v2660 = vadd.f32 %v2371, %v2506
        %v2661 = vadd.f32 %v2372, %v2511
        %v2662 = vadd.f32 %v2373, %v2516
        %v2663 = vadd.f32 %v2374, %v2521
        %v2664 = vadd.f32 %v2375, %v2526
        %v2665 = vadd.f32 %v2376, %v2531
        %v2666 = vadd.f32 %v2377, %v2536
        %v2667 = vadd.f32 %v2378, %v2541
        %v2668 = vadd.f32 %v2379, %v2546
        %v2669 = vadd.f32 %v2380, %v2551
        %v2670 = vadd.f32 %v2381, %v2556
        %v2671 = vadd.f32 %v2382, %v2561
        %v2672 = vadd.f32 %v2383, %v2566
        %v2673 = vadd.f32 %v2384, %v2571
        %v2674 = vadd.f32 %v2385, %v2576
        %v2675 = vadd.f32 %v2386, %v2581
        %v2676 = vadd.f32 %v2387, %v2586
        %v2677 = vadd.f32 %v2388, %v2591
        %v2678 = vadd.f32 %v2389, %v2596
        %v2679 = vadd.f32 %v2390, %v2601
        %v2680 = vadd.f32 %v2391, %v2606
        %v2681 = vadd.f32 %v2392, %v2611
        %v2682 = vadd.f32 %v2393, %v2616
        %v2683 = vadd.f32 %v2394, %v2621
        %v2684 = vadd.f32 %v2395, %v2626
        %v2685 = vadd.f32 %v2396, %v2631
        %v2686 = vadd.f32 %v2397, %v2636
        %v2687 = vadd.f32 %v2398, %v2641
        %v2688 = vadd.f32 %v2399, %v2646
        %v2689 = vadd.f32 %v2400, %v2651
        %v2690 = vadd.f32 %v2401, %v2656
        %2691 = vst [vmem:[#allocation2] sm:$0xff] %v2659
        %2692 = vst [vmem:[#allocation2 + $0x8] sm:$0xff] %v2660
        %2693 = vst [vmem:[#allocation2 + $0x10] sm:$0xff] %v2661
        %2694 = vst [vmem:[#allocation2 + $0x18] sm:$0xff] %v2662
        %2695 = vst [vmem:[#allocation2 + $0x20] sm:$0xff] %v2663
        %2696 = vst [vmem:[#allocation2 + $0x28] sm:$0xff] %v2664
        %2697 = vst [vmem:[#allocation2 + $0x30] sm:$0xff] %v2665
        %2698 = vst [vmem:[#allocation2 + $0x38] sm:$0xff] %v2666
        %2699 = vst [vmem:[#allocation2 + $0x40] sm:$0xff] %v2667
        %2700 = vst [vmem:[#allocation2 + $0x48] sm:$0xff] %v2668
        %2701 = vst [vmem:[#allocation2 + $0x50] sm:$0xff] %v2669
        %2702 = vst [vmem:[#allocation2 + $0x58] sm:$0xff] %v2670
        %2703 = vst [vmem:[#allocation2 + $0x60] sm:$0xff] %v2671
        %2704 = vst [vmem:[#allocation2 + $0x68] sm:$0xff] %v2672
        %2705 = vst [vmem:[#allocation2 + $0x70] sm:$0xff] %v2673
        %2706 = vst [vmem:[#allocation2 + $0x78] sm:$0xff] %v2674
        %2707 = vst [vmem:[#allocation2 + $0x80] sm:$0xff] %v2675
        %2708 = vst [vmem:[#allocation2 + $0x88] sm:$0xff] %v2676
        %2709 = vst [vmem:[#allocation2 + $0x90] sm:$0xff] %v2677
        %2710 = vst [vmem:[#allocation2 + $0x98] sm:$0xff] %v2678
        %2711 = vst [vmem:[#allocation2 + $0xa0] sm:$0xff] %v2679
        %2712 = vst [vmem:[#allocation2 + $0xa8] sm:$0xff] %v2680
        %2713 = vst [vmem:[#allocation2 + $0xb0] sm:$0xff] %v2681
        %2714 = vst [vmem:[#allocation2 + $0xb8] sm:$0xff] %v2682
        %2715 = vst [vmem:[#allocation2 + $0xc0] sm:$0xff] %v2683
        %2716 = vst [vmem:[#allocation2 + $0xc8] sm:$0xff] %v2684
        %2717 = vst [vmem:[#allocation2 + $0xd0] sm:$0xff] %v2685
        %2718 = vst [vmem:[#allocation2 + $0xd8] sm:$0xff] %v2686
        %2719 = vst [vmem:[#allocation2 + $0xe0] sm:$0xff] %v2687
        %2720 = vst [vmem:[#allocation2 + $0xe8] sm:$0xff] %v2688
        %2721 = vst [vmem:[#allocation2 + $0xf0] sm:$0xff] %v2689
        %2722 = vst [vmem:[#allocation2 + $0xf8] sm:$0xff] %v2690
        // Predicated region
        $region57: #{mlp3d_forward.1} parent=39 // pred_check
          %p2723 = pneg %p337
        $region58: #{mlp3d_forward.1} parent=39 // pred_check_branch
          %2725 = sbr.rel (%p2723) target = $region60
        $region59: #{mlp3d_forward.1} parent=39 // pred_region
          %v2726 = vld [vmem:[#allocation2] sm:$0xff]
          %v2727 = vld [vmem:[#allocation2 + $0x8] sm:$0xff]
          %v2728 = vld [vmem:[#allocation2 + $0x10] sm:$0xff]
          %v2729 = vld [vmem:[#allocation2 + $0x18] sm:$0xff]
          %v2730 = vld [vmem:[#allocation2 + $0x20] sm:$0xff]
          %v2731 = vld [vmem:[#allocation2 + $0x28] sm:$0xff]
          %v2732 = vld [vmem:[#allocation2 + $0x30] sm:$0xff]
          %v2733 = vld [vmem:[#allocation2 + $0x38] sm:$0xff]
          %v2734 = vld [vmem:[#allocation2 + $0x40] sm:$0xff]
          %v2735 = vld [vmem:[#allocation2 + $0x48] sm:$0xff]
          %v2736 = vld [vmem:[#allocation2 + $0x50] sm:$0xff]
          %v2737 = vld [vmem:[#allocation2 + $0x58] sm:$0xff]
          %v2738 = vld [vmem:[#allocation2 + $0x60] sm:$0xff]
          %v2739 = vld [vmem:[#allocation2 + $0x68] sm:$0xff]
          %v2740 = vld [vmem:[#allocation2 + $0x70] sm:$0xff]
          %v2741 = vld [vmem:[#allocation2 + $0x78] sm:$0xff]
          %v2742 = vld [vmem:[#allocation2 + $0x80] sm:$0xff]
          %v2743 = vld [vmem:[#allocation2 + $0x88] sm:$0xff]
          %v2744 = vld [vmem:[#allocation2 + $0x90] sm:$0xff]
          %v2745 = vld [vmem:[#allocation2 + $0x98] sm:$0xff]
          %v2746 = vld [vmem:[#allocation2 + $0xa0] sm:$0xff]
          %v2747 = vld [vmem:[#allocation2 + $0xa8] sm:$0xff]
          %v2748 = vld [vmem:[#allocation2 + $0xb0] sm:$0xff]
          %v2749 = vld [vmem:[#allocation2 + $0xb8] sm:$0xff]
          %v2750 = vld [vmem:[#allocation2 + $0xc0] sm:$0xff]
          %v2751 = vld [vmem:[#allocation2 + $0xc8] sm:$0xff]
          %v2752 = vld [vmem:[#allocation2 + $0xd0] sm:$0xff]
          %v2753 = vld [vmem:[#allocation2 + $0xd8] sm:$0xff]
          %v2754 = vld [vmem:[#allocation2 + $0xe0] sm:$0xff]
          %v2755 = vld [vmem:[#allocation2 + $0xe8] sm:$0xff]
          %v2756 = vld [vmem:[#allocation2 + $0xf0] sm:$0xff]
          %v2757 = vld [vmem:[#allocation2 + $0xf8] sm:$0xff]
          %v2758 = vld [vmem:[%s4] sm:$0x1]
          %v2760 = vlaneseq
          %v2761 = vshrl.u32 %v2760, 7
          %v2762 = vsub.s32 0, %v2761
          %v2763 = vrot.slane %v2758, %v2762
          %v2765 = vadd.f32 %v2726, %v2763
          %v2766 = vadd.f32 %v2727, %v2763
          %v2767 = vadd.f32 %v2728, %v2763
          %v2768 = vadd.f32 %v2729, %v2763
          %v2769 = vadd.f32 %v2730, %v2763
          %v2770 = vadd.f32 %v2731, %v2763
          %v2771 = vadd.f32 %v2732, %v2763
          %v2772 = vadd.f32 %v2733, %v2763
          %v2773 = vadd.f32 %v2734, %v2763
          %v2774 = vadd.f32 %v2735, %v2763
          %v2775 = vadd.f32 %v2736, %v2763
          %v2776 = vadd.f32 %v2737, %v2763
          %v2777 = vadd.f32 %v2738, %v2763
          %v2778 = vadd.f32 %v2739, %v2763
          %v2779 = vadd.f32 %v2740, %v2763
          %v2780 = vadd.f32 %v2741, %v2763
          %v2781 = vadd.f32 %v2742, %v2763
          %v2782 = vadd.f32 %v2743, %v2763
          %v2783 = vadd.f32 %v2744, %v2763
          %v2784 = vadd.f32 %v2745, %v2763
          %v2785 = vadd.f32 %v2746, %v2763
          %v2786 = vadd.f32 %v2747, %v2763
          %v2787 = vadd.f32 %v2748, %v2763
          %v2788 = vadd.f32 %v2749, %v2763
          %v2789 = vadd.f32 %v2750, %v2763
          %v2790 = vadd.f32 %v2751, %v2763
          %v2791 = vadd.f32 %v2752, %v2763
          %v2792 = vadd.f32 %v2753, %v2763
          %v2793 = vadd.f32 %v2754, %v2763
          %v2794 = vadd.f32 %v2755, %v2763
          %v2795 = vadd.f32 %v2756, %v2763
          %v2796 = vadd.f32 %v2757, %v2763
          %2797 = vst [vmem:[%s319] sm:$0xff] %v2765
          %2798 = vst [vmem:[%s319 + $0x8] sm:$0xff] %v2766
          %2799 = vst [vmem:[%s319 + $0x10] sm:$0xff] %v2767
          %2800 = vst [vmem:[%s319 + $0x18] sm:$0xff] %v2768
          %2801 = vst [vmem:[%s319 + $0x20] sm:$0xff] %v2769
          %2802 = vst [vmem:[%s319 + $0x28] sm:$0xff] %v2770
          %2803 = vst [vmem:[%s319 + $0x30] sm:$0xff] %v2771
          %2804 = vst [vmem:[%s319 + $0x38] sm:$0xff] %v2772
          %2805 = vst [vmem:[%s319 + $0x40] sm:$0xff] %v2773
          %2806 = vst [vmem:[%s319 + $0x48] sm:$0xff] %v2774
          %2807 = vst [vmem:[%s319 + $0x50] sm:$0xff] %v2775
          %2808 = vst [vmem:[%s319 + $0x58] sm:$0xff] %v2776
          %2809 = vst [vmem:[%s319 + $0x60] sm:$0xff] %v2777
          %2810 = vst [vmem:[%s319 + $0x68] sm:$0xff] %v2778
          %2811 = vst [vmem:[%s319 + $0x70] sm:$0xff] %v2779
          %2812 = vst [vmem:[%s319 + $0x78] sm:$0xff] %v2780
          %2813 = vst [vmem:[%s319 + $0x80] sm:$0xff] %v2781
          %2814 = vst [vmem:[%s319 + $0x88] sm:$0xff] %v2782
          %2815 = vst [vmem:[%s319 + $0x90] sm:$0xff] %v2783
          %2816 = vst [vmem:[%s319 + $0x98] sm:$0xff] %v2784
          %2817 = vst [vmem:[%s319 + $0xa0] sm:$0xff] %v2785
          %2818 = vst [vmem:[%s319 + $0xa8] sm:$0xff] %v2786
          %2819 = vst [vmem:[%s319 + $0xb0] sm:$0xff] %v2787
          %2820 = vst [vmem:[%s319 + $0xb8] sm:$0xff] %v2788
          %2821 = vst [vmem:[%s319 + $0xc0] sm:$0xff] %v2789
          %2822 = vst [vmem:[%s319 + $0xc8] sm:$0xff] %v2790
          %2823 = vst [vmem:[%s319 + $0xd0] sm:$0xff] %v2791
          %2824 = vst [vmem:[%s319 + $0xd8] sm:$0xff] %v2792
          %2825 = vst [vmem:[%s319 + $0xe0] sm:$0xff] %v2793
          %2826 = vst [vmem:[%s319 + $0xe8] sm:$0xff] %v2794
          %2827 = vst [vmem:[%s319 + $0xf0] sm:$0xff] %v2795
          %2828 = vst [vmem:[%s319 + $0xf8] sm:$0xff] %v2796
        $region60: #{mlp3d_forward.1} parent=39 // pred_fallthru
          _
        %s2829 = sand.u32 %s168, 1
        %s2830 = scalar_lea.sflag [#allocation5], %s2829
        %s2831 = sand.u32 %s168, 1
        %s2832 = smul.addr %s2831, 256
        %s2833 = scalar_lea.vmem [#allocation9], %s2832
        // Predicated region
        $region61: #{mlp3d_forward.1} parent=39 // pred_check
          %p2834 = pneg %p178
        $region62: #{mlp3d_forward.1} parent=39 // pred_check_branch
          %2836 = sbr.rel (%p2834) target = $region64
        $region63: #{mlp3d_forward.1} parent=39 // pred_region
          %s2837 = smul.u32 32, %s27
          %s2838 = ssub.s32 112, %s2837
          %p2839 = scmp.lt.s32.totalorder %s2838, 32
          %s2840 = scalar_select %p2839, %s2838, 32
          %s2841 = smul.u32 128, %s2840
          %s2843 = ssub.s32 4096, %s2841
          %2844 = vsyncadd %s2830, %s2843
          %p2845 = scmp.ne.s32.totalorder 0, %s2841
          %s2846 = smul.addr %s2837, 128
          %s2847 = scalar_lea.hbm %s5, %s2846
          %s2848 = smul.u32 8, %s2840
          %s2849 = sshll.u32 %s2833, 4
          %s2850 = int_to_ptr.vmem [resolvable:$true] %s2849
          %s2851 = sshll.u32 %s2848, 4
          %2855 = dma.vmem_to_hbm [thread:$0]  (%p2845), %s2850, %s2851, %s2847, %s2830, 128, 128, 8
        $region64: #{mlp3d_forward.1} parent=39 // pred_fallthru
          _
      $region40: #{mlp3d_forward.1} parent=5 // pred_fallthru
        _
      %p2856 = scmp.le.s32.totalorder 2, %s18
      // Predicated region
      $region65: #{mlp3d_forward.1} parent=5 // pred_check
        %p2857 = pneg %p2856
      $region66: #{mlp3d_forward.1} parent=5 // pred_check_branch
        %2859 = sbr.rel (%p2857) target = $region68
      $region67: #{mlp3d_forward.1} parent=5 // pred_region
        %s2860 = ssub.s32 %s18, 2
        // Predicated region
        $region69: #{mlp3d_forward.1} parent=67 // pred_check
          %p2861 = pneg %p184
        $region70: #{mlp3d_forward.1} parent=67 // pred_check_branch
          %2863 = sbr.rel (%p2861) target = $region72
        $region71: #{mlp3d_forward.1} parent=67 // pred_region
          %s2864 = sand.u32 %s169, 1
          %s2865 = scalar_lea.sflag [#allocation5], %s2864
          %s2866 = sand.u32 %s169, 1
          %s2867 = smul.addr %s2866, 256
          %s2868 = scalar_lea.vmem [#allocation9], %s2867
          %2869 = dma.done %s2865, 4096
        $region72: #{mlp3d_forward.1} parent=67 // pred_fallthru
          _
      $region68: #{mlp3d_forward.1} parent=5 // pred_fallthru
        _
    $region6: #{mlp3d_forward.1} parent=1 // loop_footer
      %s22 = sadd.s32 1, %s18
    $region7: #{mlp3d_forward.1} parent=1 // loop_footer_branch
      %17 = sbr.rel target = $region3
    $region8: #{mlp3d_forward.1} parent=1 // loop_exit
      _
    %2870 = vsyncpa [#allocation4], 1
    %s2871 = scalar_lea.sflag [#allocation4], 1
    %2872 = vsyncpa %s2871, 1
    %2873 = vsyncpa [#allocation7], 1
    %2874 = vsyncpa [#allocation5], 1
    %s2875 = scalar_lea.sflag [#allocation5], 1
    %2876 = vsyncpa %s2875, 1

// kernel: mlp3d_forward.1
$region0: #{mlp3d_forward.1}
  #allocation0 [shape = 'u32[]', space=smem, size = 0x4, offset = 0x4, fixed_abs, tag = 'smem constant byte address 0x4 - core index']
  #allocation1 [shape = 'u32[144,128]{1,0:T(1,128)}', space=vmem, size = 0x12000, scoped, tag = 'internal scratch']
  #allocation2 [shape = 'f32[256,128]{1,0:T(8,128)}', space=vmem, size = 0x20000, scoped, tag = 'scratch operand']
  %s0 = inlined_call_operand.hbm [shape: f32[896,128], index: 0, kind: input, shape index: {}]
  %s1 = inlined_call_operand.hbm [shape: f32[128,256], index: 1, kind: input, shape index: {}]
  %s2 = inlined_call_operand.vmem [shape: f32[1,256], index: 2, kind: input, shape index: {}]
  %s3 = inlined_call_operand.hbm [shape: f32[256,128], index: 3, kind: input, shape index: {}]
  %s4 = inlined_call_operand.vmem [shape: f32[1,128], index: 4, kind: input, shape index: {}]
  %s5 = inlined_call_operand.hbm [shape: f32[896,128], index: 5, kind: output, shape index: {}]
  %s6 = sld [smem:[#allocation0]]
  $region73: #{mlp3d_forward.1} parent=0
    _
  %s8 = ssub.s32 1, %s6
  %s9 = scalar_select 0, %s8, %s6
  $region1: #{mlp3d_forward.1} parent=0
    #allocation3 [shape = 'u8[262144]{0}', space=vmem, size = 0x40000, scoped, tag = 'input window, operand 0']
    #allocation4 [shape = 's32[2]{0}', space=sflag, size = 0x8, scoped, tag = 'scoped memory for mlp3d_forward.1']
    #allocation5 [shape = 's32[2]{0}', space=sflag, size = 0x8, scoped, tag = 'scoped memory for mlp3d_forward.1']
    #allocation6 [shape = 'u8[131072]{0}', space=vmem, size = 0x20000, scoped, tag = 'input window, operand 1, single buffered']
    #allocation7 [shape = 's32[1]{0}', space=sflag, size = 0x4, scoped, tag = 'scoped memory for mlp3d_forward.1']
    #allocation8 [shape = 'u8[131072]{0}', space=vmem, size = 0x20000, scoped, tag = 'input window, operand 3, single buffered']
    #allocation9 [shape = 'u8[262144]{0}', space=vmem, size = 0x40000, scoped, tag = 'output window, operand 0']
    %10 = vsyncpa [#allocation4], 0
    %s11 = scalar_lea.sflag [#allocation4], 1
    %12 = vsyncpa %s11, 0
    %13 = vsyncpa [#allocation7], 0
    %14 = vsyncpa [#allocation5], 0
    %s15 = scalar_lea.sflag [#allocation5], 1
    %16 = vsyncpa %s15, 0
    loop: start=0, step=1, limit=6
    $region2: #{mlp3d_forward.1} parent=1 // loop_pre_header
      _
    $region3: #{mlp3d_forward.1} parent=1 // loop_header
      %s18 = sphi 0, %s22
      %p19 = scmp.ge.s32.totalorder %s18, 6
      %s25 = sphi 0, %s37
      %s26 = sphi 0, %s33
      %s27 = sphi 0, %s25
      %s28 = sphi 0, %s26
      %s29 = sphi 0, %s27
      %s30 = sphi 0, %s28
      %s40 = sphi 0, %s42
      %s43 = sphi 0, %s40
      %s44 = sphi 0, %s43
      %s60 = sphi 0, %s44
      %s66 = sphi 0, %s68
      %s69 = sphi 0, %s66
      %s70 = sphi 0, %s69
      %s86 = sphi 0, %s70
      %s92 = sphi 0, %s94
      %s95 = sphi 0, %s92
      %s96 = sphi 0, %s95
      %s112 = sphi 0, %s96
      %s118 = sphi 0, %s120
      %s121 = sphi 0, %s118
      %s122 = sphi 0, %s121
      %s138 = sphi 0, %s122
      %s142 = sphi 0, %s142
      %s144 = sphi 0, %s142
      %s145 = sphi 0, %s144
      %s159 = sphi 0, %s145
      %s165 = sphi 0, %s167
      %s168 = sphi 0, %s165
      %s169 = sphi 0, %s168
      %s185 = sphi 0, %s169
    $region4: #{mlp3d_forward.1} parent=1 // loop_header_branch
      %21 = sbr.rel (%p19) target = $region8
    $region5: #{mlp3d_forward.1} parent=1 // loop_body
      %s23 = ssub.s32 %s18, 1
      %s24 = ssub.s32 %s18, 2
      %s31 = sadd.s32 1, %s26
      %p32 = scmp.ge.s32.totalorder %s31, 1
      %s33 = scalar_select %p32, 0, %s31
      %s34 = sadd.s32 1, %s25
      %s35 = scalar_select %p32, %s34, %s25
      %p36 = scmp.ge.s32.totalorder %s35, 4
      %s37 = scalar_select %p36, 0, %s35
      %s38 = ssub.s32 %s25, %s37
      %p39 = scmp.eq.s32.totalorder %s38, 0
      %s41 = sadd.s32 %s40, 1
      %s42 = scalar_select %p39, %s40, %s41
      %p45 = pneg %p39
      %p46 = scmp.eq.s32.totalorder %s18, 3
      %p47 = por %p45, %p46
      %p48 = scmp.ne.s32.totalorder %s40, %s43
      %p49 = scmp.eq.s32.totalorder %s18, 0
      %p50 = por %p48, %p49
      %p51 = scmp.ne.s32.totalorder %s40, %s43
      %p52 = scmp.eq.s32.totalorder %s23, 3
      %p53 = por %p51, %p52
      %p54 = scmp.ne.s32.totalorder %s43, %s44
      %p55 = scmp.eq.s32.totalorder %s23, 0
      %p56 = por %p54, %p55
      %p57 = scmp.ne.s32.totalorder %s43, %s44
      %p58 = scmp.eq.s32.totalorder %s24, 3
      %p59 = por %p57, %p58
      %p61 = scmp.ne.s32.totalorder %s44, %s60
      %p62 = scmp.eq.s32.totalorder %s24, 0
      %p63 = por %p61, %p62
      %s64 = ssub.s32 %s26, %s33
      %p65 = scmp.eq.s32.totalorder %s64, 0
      %s67 = sadd.s32 %s66, 1
      %s68 = scalar_select %p65, %s66, %s67
      %p71 = pneg %p65
      %p72 = scmp.eq.s32.totalorder %s18, 3
      %p73 = por %p71, %p72
      %p74 = scmp.ne.s32.totalorder %s66, %s69
      %p75 = scmp.eq.s32.totalorder %s18, 0
      %p76 = por %p74, %p75
      %p77 = scmp.ne.s32.totalorder %s66, %s69
      %p78 = scmp.eq.s32.totalorder %s23, 3
      %p79 = por %p77, %p78
      %p80 = scmp.ne.s32.totalorder %s69, %s70
      %p81 = scmp.eq.s32.totalorder %s23, 0
      %p82 = por %p80, %p81
      %p83 = scmp.ne.s32.totalorder %s69, %s70
      %p84 = scmp.eq.s32.totalorder %s24, 3
      %p85 = por %p83, %p84
      %p87 = scmp.ne.s32.totalorder %s70, %s86
      %p88 = scmp.eq.s32.totalorder %s24, 0
      %p89 = por %p87, %p88
      %s90 = ssub.s32 %s26, %s33
      %p91 = scmp.eq.s32.totalorder %s90, 0
      %s93 = sadd.s32 %s92, 1
      %s94 = scalar_select %p91, %s92, %s93
      %p97 = pneg %p91
      %p98 = scmp.eq.s32.totalorder %s18, 3
      %p99 = por %p97, %p98
      %p100 = scmp.ne.s32.totalorder %s92, %s95
      %p101 = scmp.eq.s32.totalorder %s18, 0
      %p102 = por %p100, %p101
      %p103 = scmp.ne.s32.totalorder %s92, %s95
      %p104 = scmp.eq.s32.totalorder %s23, 3
      %p105 = por %p103, %p104
      %p106 = scmp.ne.s32.totalorder %s95, %s96
      %p107 = scmp.eq.s32.totalorder %s23, 0
      %p108 = por %p106, %p107
      %p109 = scmp.ne.s32.totalorder %s95, %s96
      %p110 = scmp.eq.s32.totalorder %s24, 3
      %p111 = por %p109, %p110
      %p113 = scmp.ne.s32.totalorder %s96, %s112
      %p114 = scmp.eq.s32.totalorder %s24, 0
      %p115 = por %p113, %p114
      %s116 = ssub.s32 %s26, %s33
      %p117 = scmp.eq.s32.totalorder %s116, 0
      %s119 = sadd.s32 %s118, 1
      %s120 = scalar_select %p117, %s118, %s119
      %p123 = pneg %p117
      %p124 = scmp.eq.s32.totalorder %s18, 3
      %p125 = por %p123, %p124
      %p126 = scmp.ne.s32.totalorder %s118, %s121
      %p127 = scmp.eq.s32.totalorder %s18, 0
      %p128 = por %p126, %p127
      %p129 = scmp.ne.s32.totalorder %s118, %s121
      %p130 = scmp.eq.s32.totalorder %s23, 3
      %p131 = por %p129, %p130
      %p132 = scmp.ne.s32.totalorder %s121, %s122
      %p133 = scmp.eq.s32.totalorder %s23, 0
      %p134 = por %p132, %p133
      %p135 = scmp.ne.s32.totalorder %s121, %s122
      %p136 = scmp.eq.s32.totalorder %s24, 3
      %p137 = por %p135, %p136
      %p139 = scmp.ne.s32.totalorder %s122, %s138
      %p140 = scmp.eq.s32.totalorder %s24, 0
      %p141 = por %p139, %p140
      %s143 = sadd.s32 %s142, 1
      %p146 = scmp.eq.s32.totalorder %s18, 3
      %p147 = scmp.ne.s32.totalorder %s142, %s144
      %p148 = scmp.eq.s32.totalorder %s18, 0
      %p149 = por %p147, %p148
      %p150 = scmp.ne.s32.totalorder %s142, %s144
      %p151 = scmp.eq.s32.totalorder %s23, 3
      %p152 = por %p150, %p151
      %p153 = scmp.ne.s32.totalorder %s144, %s145
      %p154 = scmp.eq.s32.totalorder %s23, 0
      %p155 = por %p153, %p154
      %p156 = scmp.ne.s32.totalorder %s144, %s145
      %p157 = scmp.eq.s32.totalorder %s24, 3
      %p158 = por %p156, %p157
      %p160 = scmp.ne.s32.totalorder %s145, %s159
      %p161 = scmp.eq.s32.totalorder %s24, 0
      %p162 = por %p160, %p161
      %s163 = ssub.s32 %s25, %s37
      %p164 = scmp.eq.s32.totalorder %s163, 0
      %s166 = sadd.s32 %s165, 1
      %s167 = scalar_select %p164, %s165, %s166
      %p170 = pneg %p164
      %p171 = scmp.eq.s32.totalorder %s18, 3
      %p172 = por %p170, %p171
      %p173 = scmp.ne.s32.totalorder %s165, %s168
      %p174 = scmp.eq.s32.totalorder %s18, 0
      %p175 = por %p173, %p174
      %p176 = scmp.ne.s32.totalorder %s165, %s168
      %p177 = scmp.eq.s32.totalorder %s23, 3
      %p178 = por %p176, %p177
      %p179 = scmp.ne.s32.totalorder %s168, %s169
      %p180 = scmp.eq.s32.totalorder %s23, 0
      %p181 = por %p179, %p180
      %p182 = scmp.ne.s32.totalorder %s168, %s169
      %p183 = scmp.eq.s32.totalorder %s24, 3
      %p184 = por %p182, %p183
      %p186 = scmp.ne.s32.totalorder %s169, %s185
      %p187 = scmp.eq.s32.totalorder %s24, 0
      %p188 = por %p186, %p187
      %p189 = scmp.le.s32.totalorder 1, %s18
      %p190 = scmp.lt.s32.totalorder %s18, 5
      %p191 = pnand %p189, %p190
      %p192 = pneg %p191
      // Predicated region
      $region9: #{mlp3d_forward.1} parent=5 // pred_check
        _
      $region10: #{mlp3d_forward.1} parent=5 // pred_check_branch
        %194 = sbr.rel (%p191) target = $region12
      $region11: #{mlp3d_forward.1} parent=5 // pred_region
        %s195 = ssub.s32 %s18, 1
        // Predicated region
        $region13: #{mlp3d_forward.1} parent=11 // pred_check
          %p196 = pneg %p82
        $region14: #{mlp3d_forward.1} parent=11 // pred_check_branch
          %198 = sbr.rel (%p196) target = $region16
        $region15: #{mlp3d_forward.1} parent=11 // pred_region
          %s199 = smul.u32 2, %s28
          %s201 = ssub.s32 4096, 4096
          %202 = vsyncadd [#allocation7], %s201
          %s203 = smul.addr %s199, 128
          %s204 = scalar_lea.hbm %s1, %s203
          %s205 = sshll.u32 [#allocation6], 4
          %s206 = int_to_ptr.vmem [resolvable:$true] %s205
          %211 = dma.hbm_to_vmem [thread:$0]  %s204, 4096, %s206, [#allocation7], 256, 256, 16
        $region16: #{mlp3d_forward.1} parent=11 // pred_fallthru
          _
        // Predicated region
        $region17: #{mlp3d_forward.1} parent=11 // pred_check
          %p212 = pneg %p108
        $region18: #{mlp3d_forward.1} parent=11 // pred_check_branch
          %214 = sbr.rel (%p212) target = $region20
        $region19: #{mlp3d_forward.1} parent=11 // pred_region
          %s215 = smul.u32 2, %s28
          %p216 = scmp.lt.s32.totalorder %s215, 1
          %s217 = scalar_select %p216, %s215, 1
          %s218 = scalar_lea.vmem %s2, %s217
          %s219 = smul.u32 2, %s28
        $region20: #{mlp3d_forward.1} parent=11 // pred_fallthru
          _
        // Predicated region
        $region21: #{mlp3d_forward.1} parent=11 // pred_check
          %p220 = pneg %p134
        $region22: #{mlp3d_forward.1} parent=11 // pred_check_branch
          %222 = sbr.rel (%p220) target = $region24
        $region23: #{mlp3d_forward.1} parent=11 // pred_region
          %s223 = smul.u32 32, %s28
          %s225 = ssub.s32 4096, 4096
          %226 = vsyncadd [#allocation7], %s225
          %s227 = smul.addr %s223, 128
          %s228 = scalar_lea.hbm %s3, %s227
          %s229 = sshll.u32 [#allocation8], 4
          %s230 = int_to_ptr.vmem [resolvable:$true] %s229
          %235 = dma.hbm_to_vmem [thread:$0]  %s228, 4096, %s230, [#allocation7], 128, 128, 8
        $region24: #{mlp3d_forward.1} parent=11 // pred_fallthru
          _
        // Predicated region
        $region25: #{mlp3d_forward.1} parent=11 // pred_check
          %p236 = pneg %p155
        $region26: #{mlp3d_forward.1} parent=11 // pred_check_branch
          %238 = sbr.rel (%p236) target = $region28
        $region27: #{mlp3d_forward.1} parent=11 // pred_region
          _
        $region28: #{mlp3d_forward.1} parent=11 // pred_fallthru
          _
      $region12: #{mlp3d_forward.1} parent=5 // pred_fallthru
        _
      %p239 = scmp.lt.s32.totalorder %s18, 4
      // Predicated region
      $region29: #{mlp3d_forward.1} parent=5 // pred_check
        %p240 = pneg %p239
      $region30: #{mlp3d_forward.1} parent=5 // pred_check_branch
        %242 = sbr.rel (%p240) target = $region32
      $region31: #{mlp3d_forward.1} parent=5 // pred_region
        // Predicated region
        $region33: #{mlp3d_forward.1} parent=31 // pred_check
          %p243 = pneg %p50
        $region34: #{mlp3d_forward.1} parent=31 // pred_check_branch
          %245 = sbr.rel (%p243) target = $region36
        $region35: #{mlp3d_forward.1} parent=31 // pred_region
          %s246 = sand.u32 %s40, 1
          %s247 = scalar_lea.sflag [#allocation4], %s246
          %s248 = sand.u32 %s40, 1
          %s249 = smul.addr %s248, 256
          %s250 = scalar_lea.vmem [#allocation3], %s249
          %s251 = smul.u32 32, %s25
          %s252 = ssub.s32 112, %s251
          %p253 = scmp.lt.s32.totalorder %s252, 32
          %s254 = scalar_select %p253, %s252, 32
          %s255 = smul.u32 128, %s254
          %s257 = ssub.s32 4096, %s255
          %258 = vsyncadd %s247, %s257
          %p259 = scmp.ne.s32.totalorder 0, %s255
          %s260 = smul.addr %s251, 128
          %s261 = scalar_lea.hbm %s0, %s260
          %s262 = smul.u32 8, %s254
          %s263 = sshll.u32 %s250, 4
          %s264 = int_to_ptr.vmem [resolvable:$true] %s263
          %s265 = sshll.u32 %s262, 4
          %269 = dma.hbm_to_vmem [thread:$0]  (%p259), %s261, %s265, %s264, %s247, 128, 128, 8
        $region36: #{mlp3d_forward.1} parent=31 // pred_fallthru
          _
      $region32: #{mlp3d_forward.1} parent=5 // pred_fallthru
        _
      %p270 = scmp.le.s32.totalorder 1, %s18
      %p271 = scmp.lt.s32.totalorder %s18, 5
      %p272 = pnand %p270, %p271
      %p273 = pneg %p272
      // Predicated region
      $region37: #{mlp3d_forward.1} parent=5 // pred_check
        _
      $region38: #{mlp3d_forward.1} parent=5 // pred_check_branch
        %275 = sbr.rel (%p272) target = $region40
      $region39: #{mlp3d_forward.1} parent=5 // pred_region
        %s276 = ssub.s32 %s18, 1
        %s277 = sand.u32 %s43, 1
        %s278 = scalar_lea.sflag [#allocation4], %s277
        %s279 = sand.u32 %s43, 1
        %s280 = smul.addr %s279, 256
        %s281 = scalar_lea.vmem [#allocation3], %s280
        // Predicated region
        $region41: #{mlp3d_forward.1} parent=39 // pred_check
          %p282 = pneg %p56
        $region42: #{mlp3d_forward.1} parent=39 // pred_check_branch
          %284 = sbr.rel (%p282) target = $region44
        $region43: #{mlp3d_forward.1} parent=39 // pred_region
          %285 = dma.done %s278, 4096
        $region44: #{mlp3d_forward.1} parent=39 // pred_fallthru
          _
        // Predicated region
        $region45: #{mlp3d_forward.1} parent=39 // pred_check
          %p286 = pneg %p82
        $region46: #{mlp3d_forward.1} parent=39 // pred_check_branch
          %288 = sbr.rel (%p286) target = $region48
        $region47: #{mlp3d_forward.1} parent=39 // pred_region
          %289 = dma.done [#allocation7], 4096
        $region48: #{mlp3d_forward.1} parent=39 // pred_fallthru
          _
        // Predicated region
        $region49: #{mlp3d_forward.1} parent=39 // pred_check
          %p290 = pneg %p134
        $region50: #{mlp3d_forward.1} parent=39 // pred_check_branch
          %292 = sbr.rel (%p290) target = $region52
        $region51: #{mlp3d_forward.1} parent=39 // pred_region
          %293 = dma.done [#allocation7], 4096
        $region52: #{mlp3d_forward.1} parent=39 // pred_fallthru
          _
        %s294 = sand.u32 %s43, 1
        %s295 = scalar_lea.sflag [#allocation4], %s294
        %s296 = sand.u32 %s43, 1
        %s297 = smul.addr %s296, 256
        %s298 = scalar_lea.vmem [#allocation3], %s297
        %p299 = pneg %p56
        %p300 = pneg %p53
        %p301 = pneg %p82
        %p302 = pneg %p79
        %s303 = smul.u32 2, %s28
        %p304 = scmp.lt.s32.totalorder %s303, 1
        %s305 = scalar_select %p304, %s303, 1
        %s306 = scalar_lea.vmem %s2, %s305
        %p307 = pneg %p108
        %p308 = pneg %p105
        %p309 = pneg %p134
        %p310 = pneg %p131
        %p311 = pneg %p155
        %p312 = pneg %p152
        %p313 = pneg %p181
        %p314 = pneg %p178
        %s315 = sand.u32 %s168, 1
        %s316 = scalar_lea.sflag [#allocation5], %s315
        %s317 = sand.u32 %s168, 1
        %s318 = smul.addr %s317, 256
        %s319 = scalar_lea.vmem [#allocation9], %s318
        %s320 = smul.u32 32, %s27
        %s321 = ssub.s32 112, %s320
        %p322 = scmp.lt.s32.totalorder %s321, 32
        %s323 = scalar_select %p322, %s321, 32
        %s324 = smul.u32 128, %s323
        %s325 = smul.u32 2, %s28
        %s326 = smul.u32 2, %s28
        %p327 = scmp.lt.s32.totalorder %s326, 1
        %s328 = scalar_select %p327, %s326, 1
        %s329 = scalar_lea.vmem %s2, %s328
        %s330 = smul.u32 2, %s28
        %s331 = smul.u32 32, %s28
        %s332 = smul.u32 32, %s27
        %s333 = ssub.s32 112, %s332
        %p334 = scmp.lt.s32.totalorder %s333, 32
        %s335 = scalar_select %p334, %s333, 32
        %s336 = smul.u32 128, %s335
        %p337 = scmp.eq.s32.totalorder %s28, 0
        // Predicated region
        $region53: #{mlp3d_forward.1} parent=39 // pred_check
          %p338 = pneg %p337
        $region54: #{mlp3d_forward.1} parent=39 // pred_check_branch
          %340 = sbr.rel (%p338) target = $region56
        $region55: #{mlp3d_forward.1} parent=39 // pred_region
          %341 = vst [vmem:[#allocation2] sm:$0xff] 0.0
          %342 = vst [vmem:[#allocation2 + $0x8] sm:$0xff] 0.0
          %343 = vst [vmem:[#allocation2 + $0x10] sm:$0xff] 0.0
          %344 = vst [vmem:[#allocation2 + $0x18] sm:$0xff] 0.0
          %345 = vst [vmem:[#allocation2 + $0x20] sm:$0xff] 0.0
          %346 = vst [vmem:[#allocation2 + $0x28] sm:$0xff] 0.0
          %347 = vst [vmem:[#allocation2 + $0x30] sm:$0xff] 0.0
          %348 = vst [vmem:[#allocation2 + $0x38] sm:$0xff] 0.0
          %349 = vst [vmem:[#allocation2 + $0x40] sm:$0xff] 0.0
          %350 = vst [vmem:[#allocation2 + $0x48] sm:$0xff] 0.0
          %351 = vst [vmem:[#allocation2 + $0x50] sm:$0xff] 0.0
          %352 = vst [vmem:[#allocation2 + $0x58] sm:$0xff] 0.0
          %353 = vst [vmem:[#allocation2 + $0x60] sm:$0xff] 0.0
          %354 = vst [vmem:[#allocation2 + $0x68] sm:$0xff] 0.0
          %355 = vst [vmem:[#allocation2 + $0x70] sm:$0xff] 0.0
          %356 = vst [vmem:[#allocation2 + $0x78] sm:$0xff] 0.0
          %357 = vst [vmem:[#allocation2 + $0x80] sm:$0xff] 0.0
          %358 = vst [vmem:[#allocation2 + $0x88] sm:$0xff] 0.0
          %359 = vst [vmem:[#allocation2 + $0x90] sm:$0xff] 0.0
          %360 = vst [vmem:[#allocation2 + $0x98] sm:$0xff] 0.0
          %361 = vst [vmem:[#allocation2 + $0xa0] sm:$0xff] 0.0
          %362 = vst [vmem:[#allocation2 + $0xa8] sm:$0xff] 0.0
          %363 = vst [vmem:[#allocation2 + $0xb0] sm:$0xff] 0.0
          %364 = vst [vmem:[#allocation2 + $0xb8] sm:$0xff] 0.0
          %365 = vst [vmem:[#allocation2 + $0xc0] sm:$0xff] 0.0
          %366 = vst [vmem:[#allocation2 + $0xc8] sm:$0xff] 0.0
          %367 = vst [vmem:[#allocation2 + $0xd0] sm:$0xff] 0.0
          %368 = vst [vmem:[#allocation2 + $0xd8] sm:$0xff] 0.0
          %369 = vst [vmem:[#allocation2 + $0xe0] sm:$0xff] 0.0
          %370 = vst [vmem:[#allocation2 + $0xe8] sm:$0xff] 0.0
          %371 = vst [vmem:[#allocation2 + $0xf0] sm:$0xff] 0.0
          %372 = vst [vmem:[#allocation2 + $0xf8] sm:$0xff] 0.0
        $region56: #{mlp3d_forward.1} parent=39 // pred_fallthru
          _
        %v373 = vld [vmem:[%s281] sm:$0xff]
        %v374 = vld [vmem:[%s281 + $0x8] sm:$0xff]
        %v375 = vld [vmem:[%s281 + $0x10] sm:$0xff]
        %v376 = vld [vmem:[%s281 + $0x18] sm:$0xff]
        %v377 = vld [vmem:[%s281 + $0x20] sm:$0xff]
        %v378 = vld [vmem:[%s281 + $0x28] sm:$0xff]
        %v379 = vld [vmem:[%s281 + $0x30] sm:$0xff]
        %v380 = vld [vmem:[%s281 + $0x38] sm:$0xff]
        %v381 = vld [vmem:[%s281 + $0x40] sm:$0xff]
        %v382 = vld [vmem:[%s281 + $0x48] sm:$0xff]
        %v383 = vld [vmem:[%s281 + $0x50] sm:$0xff]
        %v384 = vld [vmem:[%s281 + $0x58] sm:$0xff]
        %v385 = vld [vmem:[%s281 + $0x60] sm:$0xff]
        %v386 = vld [vmem:[%s281 + $0x68] sm:$0xff]
        %v387 = vld [vmem:[%s281 + $0x70] sm:$0xff]
        %v388 = vld [vmem:[%s281 + $0x78] sm:$0xff]
        %v389 = vld [vmem:[%s281 + $0x80] sm:$0xff]
        %v390 = vld [vmem:[%s281 + $0x88] sm:$0xff]
        %v391 = vld [vmem:[%s281 + $0x90] sm:$0xff]
        %v392 = vld [vmem:[%s281 + $0x98] sm:$0xff]
        %v393 = vld [vmem:[%s281 + $0xa0] sm:$0xff]
        %v394 = vld [vmem:[%s281 + $0xa8] sm:$0xff]
        %v395 = vld [vmem:[%s281 + $0xb0] sm:$0xff]
        %v396 = vld [vmem:[%s281 + $0xb8] sm:$0xff]
        %v397 = vld [vmem:[%s281 + $0xc0] sm:$0xff]
        %v398 = vld [vmem:[%s281 + $0xc8] sm:$0xff]
        %v399 = vld [vmem:[%s281 + $0xd0] sm:$0xff]
        %v400 = vld [vmem:[%s281 + $0xd8] sm:$0xff]
        %v401 = vld [vmem:[%s281 + $0xe0] sm:$0xff]
        %v402 = vld [vmem:[%s281 + $0xe8] sm:$0xff]
        %v403 = vld [vmem:[%s281 + $0xf0] sm:$0xff]
        %v404 = vld [vmem:[%s281 + $0xf8] sm:$0xff]
        %v405 = vld [vmem:[#allocation6] sm:$0xff]
        %v406 = vld [vmem:[#allocation6 + $0x8] sm:$0xff]
        %v407 = vld [vmem:[#allocation6 + $0x10] sm:$0xff]
        %v408 = vld [vmem:[#allocation6 + $0x18] sm:$0xff]
        %v409 = vld [vmem:[#allocation6 + $0x20] sm:$0xff]
        %v410 = vld [vmem:[#allocation6 + $0x28] sm:$0xff]
        %v411 = vld [vmem:[#allocation6 + $0x30] sm:$0xff]
        %v412 = vld [vmem:[#allocation6 + $0x38] sm:$0xff]
        %v413 = vld [vmem:[#allocation6 + $0x40] sm:$0xff]
        %v414 = vld [vmem:[#allocation6 + $0x48] sm:$0xff]
        %v415 = vld [vmem:[#allocation6 + $0x50] sm:$0xff]
        %v416 = vld [vmem:[#allocation6 + $0x58] sm:$0xff]
        %v417 = vld [vmem:[#allocation6 + $0x60] sm:$0xff]
        %v418 = vld [vmem:[#allocation6 + $0x68] sm:$0xff]
        %v419 = vld [vmem:[#allocation6 + $0x70] sm:$0xff]
        %v420 = vld [vmem:[#allocation6 + $0x78] sm:$0xff]
        %v421 = vld [vmem:[#allocation6 + $0x80] sm:$0xff]
        %v422 = vld [vmem:[#allocation6 + $0x88] sm:$0xff]
        %v423 = vld [vmem:[#allocation6 + $0x90] sm:$0xff]
        %v424 = vld [vmem:[#allocation6 + $0x98] sm:$0xff]
        %v425 = vld [vmem:[#allocation6 + $0xa0] sm:$0xff]
        %v426 = vld [vmem:[#allocation6 + $0xa8] sm:$0xff]
        %v427 = vld [vmem:[#allocation6 + $0xb0] sm:$0xff]
        %v428 = vld [vmem:[#allocation6 + $0xb8] sm:$0xff]
        %v429 = vld [vmem:[#allocation6 + $0xc0] sm:$0xff]
        %v430 = vld [vmem:[#allocation6 + $0xc8] sm:$0xff]
        %v431 = vld [vmem:[#allocation6 + $0xd0] sm:$0xff]
        %v432 = vld [vmem:[#allocation6 + $0xd8] sm:$0xff]
        %v433 = vld [vmem:[#allocation6 + $0xe0] sm:$0xff]
        %v434 = vld [vmem:[#allocation6 + $0xe8] sm:$0xff]
        %v435 = vld [vmem:[#allocation6 + $0xf0] sm:$0xff]
        %v436 = vld [vmem:[#allocation6 + $0xf8] sm:$0xff]
        %v437 = vld [vmem:[%s329] sm:$0x3]
        %v439 = vlaneseq
        %v440 = vshrl.u32 %v439, 7
        %v441 = vsub.s32 0, %v440
        %v442 = vrot.slane %v437, %v441
        %v443 = vlaneseq
        %v444 = vshrl.u32 %v443, 7
        %v445 = vsub.s32 1, %v444
        %v446 = vrot.slane %v437, %v445
        %449 = vmatprep.subr.mxu0 %v406
        %450 = vmatpush1.msra.mxu0 %v405
        %451 = vmatprep.subr.mxu0 %v408
        %452 = vmatpush1.msra.mxu0 %v407
        %453 = vmatprep.subr.mxu0 %v410
        %454 = vmatpush1.msra.mxu0 %v409
        %455 = vmatprep.subr.mxu0 %v412
        %456 = vmatpush1.msra.mxu0 %v411
        %457 = vmatprep.subr.mxu0 %v414
        %458 = vmatpush1.msra.mxu0 %v413
        %459 = vmatprep.subr.mxu0 %v416
        %460 = vmatpush1.msra.mxu0 %v415
        %461 = vmatprep.subr.mxu0 %v418
        %462 = vmatpush1.msra.mxu0 %v417
        %463 = vmatprep.subr.mxu0 %v420
        %464 = vmatpush1.msra.mxu0 %v419
        %465 = vmatprep.subr.mxu0 %v422
        %466 = vmatpush1.msra.mxu0 %v421
        %467 = vmatprep.subr.mxu0 %v424
        %468 = vmatpush1.msra.mxu0 %v423
        %469 = vmatprep.subr.mxu0 %v426
        %470 = vmatpush1.msra.mxu0 %v425
        %471 = vmatprep.subr.mxu0 %v428
        %472 = vmatpush1.msra.mxu0 %v427
        %473 = vmatprep.subr.mxu0 %v430
        %474 = vmatpush1.msra.mxu0 %v429
        %475 = vmatprep.subr.mxu0 %v432
        %476 = vmatpush1.msra.mxu0 %v431
        %477 = vmatprep.subr.mxu0 %v434
        %478 = vmatpush1.msra.mxu0 %v433
        %479 = vmatprep.subr.mxu0 %v436
        %480 = vmatpush1.msra.mxu0 %v435
        %481 = vmatprep.subr.mxu0 0.0
        %482 = vmatpush1.msra.mxu0 0.0
        %483 = vmatprep.subr.mxu0 0.0
        %484 = vmatpush1.msra.mxu0 0.0
        %485 = vmatprep.subr.mxu0 0.0
        %486 = vmatpush1.msra.mxu0 0.0
        %487 = vmatprep.subr.mxu0 0.0
        %488 = vmatpush1.msra.mxu0 0.0
        %489 = vmatprep.subr.mxu0 0.0
        %490 = vmatpush1.msra.mxu0 0.0
        %491 = vmatprep.subr.mxu0 0.0
        %492 = vmatpush1.msra.mxu0 0.0
        %493 = vmatprep.subr.mxu0 0.0
        %494 = vmatpush1.msra.mxu0 0.0
        %495 = vmatprep.subr.mxu0 0.0
        %496 = vmatpush1.msra.mxu0 0.0
        %497 = vmatprep.subr.mxu0 0.0
        %498 = vmatpush1.msra.mxu0 0.0
        %499 = vmatprep.subr.mxu0 0.0
        %500 = vmatpush1.msra.mxu0 0.0
        %501 = vmatprep.subr.mxu0 0.0
        %502 = vmatpush1.msra.mxu0 0.0
        %503 = vmatprep.subr.mxu0 0.0
        %504 = vmatpush1.msra.mxu0 0.0
        %505 = vmatprep.subr.mxu0 0.0
        %506 = vmatpush1.msra.mxu0 0.0
        %507 = vmatprep.subr.mxu0 0.0
        %508 = vmatpush1.msra.mxu0 0.0
        %509 = vmatprep.subr.mxu0 0.0
        %510 = vmatpush1.msra.mxu0 0.0
        %511 = vmatprep.subr.mxu0 0.0
        %512 = vmatpush1.msra.mxu0 0.0
        %513 = vmatprep.mubr.f32.mxu0 0.0
        %514 = vmatmul.mubr.f32.gmra.mrb[0].mxu0 %v373
        %v515 = vpop.f32.mrb[0].mxu0
        %v516 = vadd.f32 %v442, %v515
        %v517 = vpop.f32.mrb[0].mxu0
        %v518 = vadd.f32 %v446, %v517
        %519 = vmatprep.mubr.f32.mxu0 0.0
        %520 = vmatmul.mubr.f32.gmra.mrb[0].mxu0 %v374
        %v521 = vpop.f32.mrb[0].mxu0
        %v522 = vadd.f32 %v442, %v521
        %v523 = vpop.f32.mrb[0].mxu0
        %v524 = vadd.f32 %v446, %v523
        %525 = vmatprep.mubr.f32.mxu0 0.0
        %526 = vmatmul.mubr.f32.gmra.mrb[0].mxu0 %v375
        %v527 = vpop.f32.mrb[0].mxu0
        %v528 = vadd.f32 %v442, %v527
        %v529 = vpop.f32.mrb[0].mxu0
        %v530 = vadd.f32 %v446, %v529
        %531 = vmatprep.mubr.f32.mxu0 0.0
        %532 = vmatmul.mubr.f32.gmra.mrb[0].mxu0 %v376
        %v533 = vpop.f32.mrb[0].mxu0
        %v534 = vadd.f32 %v442, %v533
        %v535 = vpop.f32.mrb[0].mxu0
        %v536 = vadd.f32 %v446, %v535
        %537 = vmatprep.mubr.f32.mxu0 0.0
        %538 = vmatmul.mubr.f32.gmra.mrb[0].mxu0 %v377
        %v539 = vpop.f32.mrb[0].mxu0
        %v540 = vadd.f32 %v442, %v539
        %v541 = vpop.f32.mrb[0].mxu0
        %v542 = vadd.f32 %v446, %v541
        %543 = vmatprep.mubr.f32.mxu0 0.0
        %544 = vmatmul.mubr.f32.gmra.mrb[0].mxu0 %v378
        %v545 = vpop.f32.mrb[0].mxu0
        %v546 = vadd.f32 %v442, %v545
        %v547 = vpop.f32.mrb[0].mxu0
        %v548 = vadd.f32 %v446, %v547
        %549 = vmatprep.mubr.f32.mxu0 0.0
        %550 = vmatmul.mubr.f32.gmra.mrb[0].mxu0 %v379
        %v551 = vpop.f32.mrb[0].mxu0
        %v552 = vadd.f32 %v442, %v551
        %v553 = vpop.f32.mrb[0].mxu0
        %v554 = vadd.f32 %v446, %v553
        %555 = vmatprep.mubr.f32.mxu0 0.0
        %556 = vmatmul.mubr.f32.gmra.mrb[0].mxu0 %v380
        %v557 = vpop.f32.mrb[0].mxu0
        %v558 = vadd.f32 %v442, %v557
        %v559 = vpop.f32.mrb[0].mxu0
        %v560 = vadd.f32 %v446, %v559
        %561 = vmatprep.mubr.f32.mxu0 0.0
        %562 = vmatmul.mubr.f32.gmra.mrb[0].mxu0 %v381
        %v563 = vpop.f32.mrb[0].mxu0
        %v564 = vadd.f32 %v442, %v563
        %v565 = vpop.f32.mrb[0].mxu0
        %v566 = vadd.f32 %v446, %v565
        %567 = vmatprep.mubr.f32.mxu0 0.0
        %568 = vmatmul.mubr.f32.gmra.mrb[0].mxu0 %v382
        %v569 = vpop.f32.mrb[0].mxu0
        %v570 = vadd.f32 %v442, %v569
        %v571 = vpop.f32.mrb[0].mxu0
        %v572 = vadd.f32 %v446, %v571
        %573 = vmatprep.mubr.f32.mxu0 0.0
        %574 = vmatmul.mubr.f32.gmra.mrb[0].mxu0 %v383
        %v575 = vpop.f32.mrb[0].mxu0
        %v576 = vadd.f32 %v442, %v575
        %v577 = vpop.f32.mrb[0].mxu0
        %v578 = vadd.f32 %v446, %v577
        %579 = vmatprep.mubr.f32.mxu0 0.0
        %580 = vmatmul.mubr.f32.gmra.mrb[0].mxu0 %v384
        %v581 = vpop.f32.mrb[0].mxu0
        %v582 = vadd.f32 %v442, %v581
        %v583 = vpop.f32.mrb[0].mxu0
        %v584 = vadd.f32 %v446, %v583
        %585 = vmatprep.mubr.f32.mxu0 0.0
        %586 = vmatmul.mubr.f32.gmra.mrb[0].mxu0 %v385
        %v587 = vpop.f32.mrb[0].mxu0
        %v588 = vadd.f32 %v442, %v587
        %v589 = vpop.f32.mrb[0].mxu0
        %v590 = vadd.f32 %v446, %v589
        %591 = vmatprep.mubr.f32.mxu0 0.0
        %592 = vmatmul.mubr.f32.gmra.mrb[0].mxu0 %v386
        %v593 = vpop.f32.mrb[0].mxu0
        %v594 = vadd.f32 %v442, %v593
        %v595 = vpop.f32.mrb[0].mxu0
        %v596 = vadd.f32 %v446, %v595
        %597 = vmatprep.mubr.f32.mxu0 0.0
        %598 = vmatmul.mubr.f32.gmra.mrb[0].mxu0 %v387
        %v599 = vpop.f32.mrb[0].mxu0
        %v600 = vadd.f32 %v442, %v599
        %v601 = vpop.f32.mrb[0].mxu0
        %v602 = vadd.f32 %v446, %v601
        %603 = vmatprep.mubr.f32.mxu0 0.0
        %604 = vmatmul.mubr.f32.gmra.mrb[0].mxu0 %v388
        %v605 = vpop.f32.mrb[0].mxu0
        %v606 = vadd.f32 %v442, %v605
        %v607 = vpop.f32.mrb[0].mxu0
        %v608 = vadd.f32 %v446, %v607
        %609 = vmatprep.mubr.f32.mxu0 0.0
        %610 = vmatmul.mubr.f32.gmra.mrb[0].mxu0 %v389
        %v611 = vpop.f32.mrb[0].mxu0
        %v612 = vadd.f32 %v442, %v611
        %v613 = vpop.f32.mrb[0].mxu0
        %v614 = vadd.f32 %v446, %v613
        %615 = vmatprep.mubr.f32.mxu0 0.0
        %616 = vmatmul.mubr.f32.gmra.mrb[0].mxu0 %v390
        %v617 = vpop.f32.mrb[0].mxu0
        %v618 = vadd.f32 %v442, %v617
        %v619 = vpop.f32.mrb[0].mxu0
        %v620 = vadd.f32 %v446, %v619
        %621 = vmatprep.mubr.f32.mxu0 0.0
        %622 = vmatmul.mubr.f32.gmra.mrb[0].mxu0 %v391
        %v623 = vpop.f32.mrb[0].mxu0
        %v624 = vadd.f32 %v442, %v623
        %v625 = vpop.f32.mrb[0].mxu0
        %v626 = vadd.f32 %v446, %v625
        %627 = vmatprep.mubr.f32.mxu0 0.0
        %628 = vmatmul.mubr.f32.gmra.mrb[0].mxu0 %v392
        %v629 = vpop.f32.mrb[0].mxu0
        %v630 = vadd.f32 %v442, %v629
        %v631 = vpop.f32.mrb[0].mxu0
        %v632 = vadd.f32 %v446, %v631
        %633 = vmatprep.mubr.f32.mxu0 0.0
        %634 = vmatmul.mubr.f32.gmra.mrb[0].mxu0 %v393
        %v635 = vpop.f32.mrb[0].mxu0
        %v636 = vadd.f32 %v442, %v635
        %v637 = vpop.f32.mrb[0].mxu0
        %v638 = vadd.f32 %v446, %v637
        %639 = vmatprep.mubr.f32.mxu0 0.0
        %640 = vmatmul.mubr.f32.gmra.mrb[0].mxu0 %v394
        %v641 = vpop.f32.mrb[0].mxu0
        %v642 = vadd.f32 %v442, %v641
        %v643 = vpop.f32.mrb[0].mxu0
        %v644 = vadd.f32 %v446, %v643
        %645 = vmatprep.mubr.f32.mxu0 0.0
        %646 = vmatmul.mubr.f32.gmra.mrb[0].mxu0 %v395
        %v647 = vpop.f32.mrb[0].mxu0
        %v648 = vadd.f32 %v442, %v647
        %v649 = vpop.f32.mrb[0].mxu0
        %v650 = vadd.f32 %v446, %v649
        %651 = vmatprep.mubr.f32.mxu0 0.0
        %652 = vmatmul.mubr.f32.gmra.mrb[0].mxu0 %v396
        %v653 = vpop.f32.mrb[0].mxu0
        %v654 = vadd.f32 %v442, %v653
        %v655 = vpop.f32.mrb[0].mxu0
        %v656 = vadd.f32 %v446, %v655
        %657 = vmatprep.mubr.f32.mxu0 0.0
        %658 = vmatmul.mubr.f32.gmra.mrb[0].mxu0 %v397
        %v659 = vpop.f32.mrb[0].mxu0
        %v660 = vadd.f32 %v442, %v659
        %v661 = vpop.f32.mrb[0].mxu0
        %v662 = vadd.f32 %v446, %v661
        %663 = vmatprep.mubr.f32.mxu0 0.0
        %664 = vmatmul.mubr.f32.gmra.mrb[0].mxu0 %v398
        %v665 = vpop.f32.mrb[0].mxu0
        %v666 = vadd.f32 %v442, %v665
        %v667 = vpop.f32.mrb[0].mxu0
        %v668 = vadd.f32 %v446, %v667
        %669 = vmatprep.mubr.f32.mxu0 0.0
        %670 = vmatmul.mubr.f32.gmra.mrb[0].mxu0 %v399
        %v671 = vpop.f32.mrb[0].mxu0
        %v672 = vadd.f32 %v442, %v671
        %v673 = vpop.f32.mrb[0].mxu0
        %v674 = vadd.f32 %v446, %v673
        %675 = vmatprep.mubr.f32.mxu0 0.0
        %676 = vmatmul.mubr.f32.gmra.mrb[0].mxu0 %v400
        %v677 = vpop.f32.mrb[0].mxu0
        %v678 = vadd.f32 %v442, %v677
        %v679 = vpop.f32.mrb[0].mxu0
        %v680 = vadd.f32 %v446, %v679
        %681 = vmatprep.mubr.f32.mxu0 0.0
        %682 = vmatmul.mubr.f32.gmra.mrb[0].mxu0 %v401
        %v683 = vpop.f32.mrb[0].mxu0
        %v684 = vadd.f32 %v442, %v683
        %v685 = vpop.f32.mrb[0].mxu0
        %v686 = vadd.f32 %v446, %v685
        %687 = vmatprep.mubr.f32.mxu0 0.0
        %688 = vmatmul.mubr.f32.gmra.mrb[0].mxu0 %v402
        %v689 = vpop.f32.mrb[0].mxu0
        %v690 = vadd.f32 %v442, %v689
        %v691 = vpop.f32.mrb[0].mxu0
        %v692 = vadd.f32 %v446, %v691
        %693 = vmatprep.mubr.f32.mxu0 0.0
        %694 = vmatmul.mubr.f32.gmra.mrb[0].mxu0 %v403
        %v695 = vpop.f32.mrb[0].mxu0
        %v696 = vadd.f32 %v442, %v695
        %v697 = vpop.f32.mrb[0].mxu0
        %v698 = vadd.f32 %v446, %v697
        %699 = vmatprep.mubr.f32.mxu0 0.0
        %700 = vmatmul.mubr.f32.gmra.mrb[0].mxu0 %v404
        %v701 = vpop.f32.mrb[0].mxu0
        %v702 = vadd.f32 %v442, %v701
        %v703 = vpop.f32.mrb[0].mxu0
        %v704 = vadd.f32 %v446, %v703
        %705 = vdwg.mxu0
        %v706 = vmul.f32 %v516, 0.5
        %v707 = vmul.f32 %v518, 0.5
        %v708 = vmul.f32 %v522, 0.5
        %v709 = vmul.f32 %v524, 0.5
        %v710 = vmul.f32 %v528, 0.5
        %v711 = vmul.f32 %v530, 0.5
        %v712 = vmul.f32 %v534, 0.5
        %v713 = vmul.f32 %v536, 0.5
        %v714 = vmul.f32 %v540, 0.5
        %v715 = vmul.f32 %v542, 0.5
        %v716 = vmul.f32 %v546, 0.5
        %v717 = vmul.f32 %v548, 0.5
        %v718 = vmul.f32 %v552, 0.5
        %v719 = vmul.f32 %v554, 0.5
        %v720 = vmul.f32 %v558, 0.5
        %v721 = vmul.f32 %v560, 0.5
        %v722 = vmul.f32 %v564, 0.5
        %v723 = vmul.f32 %v566, 0.5
        %v724 = vmul.f32 %v570, 0.5
        %v725 = vmul.f32 %v572, 0.5
        %v726 = vmul.f32 %v576, 0.5
        %v727 = vmul.f32 %v578, 0.5
        %v728 = vmul.f32 %v582, 0.5
        %v729 = vmul.f32 %v584, 0.5
        %v730 = vmul.f32 %v588, 0.5
        %v731 = vmul.f32 %v590, 0.5
        %v732 = vmul.f32 %v594, 0.5
        %v733 = vmul.f32 %v596, 0.5
        %v734 = vmul.f32 %v600, 0.5
        %v735 = vmul.f32 %v602, 0.5
        %v736 = vmul.f32 %v606, 0.5
        %v737 = vmul.f32 %v608, 0.5
        %v738 = vmul.f32 %v612, 0.5
        %v739 = vmul.f32 %v614, 0.5
        %v740 = vmul.f32 %v618, 0.5
        %v741 = vmul.f32 %v620, 0.5
        %v742 = vmul.f32 %v624, 0.5
        %v743 = vmul.f32 %v626, 0.5
        %v744 = vmul.f32 %v630, 0.5
        %v745 = vmul.f32 %v632, 0.5
        %v746 = vmul.f32 %v636, 0.5
        %v747 = vmul.f32 %v638, 0.5
        %v748 = vmul.f32 %v642, 0.5
        %v749 = vmul.f32 %v644, 0.5
        %v750 = vmul.f32 %v648, 0.5
        %v751 = vmul.f32 %v650, 0.5
        %v752 = vmul.f32 %v654, 0.5
        %v753 = vmul.f32 %v656, 0.5
        %v754 = vmul.f32 %v660, 0.5
        %v755 = vmul.f32 %v662, 0.5
        %v756 = vmul.f32 %v666, 0.5
        %v757 = vmul.f32 %v668, 0.5
        %v758 = vmul.f32 %v672, 0.5
        %v759 = vmul.f32 %v674, 0.5
        %v760 = vmul.f32 %v678, 0.5
        %v761 = vmul.f32 %v680, 0.5
        %v762 = vmul.f32 %v684, 0.5
        %v763 = vmul.f32 %v686, 0.5
        %v764 = vmul.f32 %v690, 0.5
        %v765 = vmul.f32 %v692, 0.5
        %v766 = vmul.f32 %v696, 0.5
        %v767 = vmul.f32 %v698, 0.5
        %v768 = vmul.f32 %v702, 0.5
        %v769 = vmul.f32 %v704, 0.5
        %v770 = vmul.f32 %v516, 0.70710677
        %v771 = vmul.f32 %v518, 0.70710677
        %v772 = vmul.f32 %v522, 0.70710677
        %v773 = vmul.f32 %v524, 0.70710677
        %v774 = vmul.f32 %v528, 0.70710677
        %v775 = vmul.f32 %v530, 0.70710677
        %v776 = vmul.f32 %v534, 0.70710677
        %v777 = vmul.f32 %v536, 0.70710677
        %v778 = vmul.f32 %v540, 0.70710677
        %v779 = vmul.f32 %v542, 0.70710677
        %v780 = vmul.f32 %v546, 0.70710677
        %v781 = vmul.f32 %v548, 0.70710677
        %v782 = vmul.f32 %v552, 0.70710677
        %v783 = vmul.f32 %v554, 0.70710677
        %v784 = vmul.f32 %v558, 0.70710677
        %v785 = vmul.f32 %v560, 0.70710677
        %v786 = vmul.f32 %v564, 0.70710677
        %v787 = vmul.f32 %v566, 0.70710677
        %v788 = vmul.f32 %v570, 0.70710677
        %v789 = vmul.f32 %v572, 0.70710677
        %v790 = vmul.f32 %v576, 0.70710677
        %v791 = vmul.f32 %v578, 0.70710677
        %v792 = vmul.f32 %v582, 0.70710677
        %v793 = vmul.f32 %v584, 0.70710677
        %v794 = vmul.f32 %v588, 0.70710677
        %v795 = vmul.f32 %v590, 0.70710677
        %v796 = vmul.f32 %v594, 0.70710677
        %v797 = vmul.f32 %v596, 0.70710677
        %v798 = vmul.f32 %v600, 0.70710677
        %v799 = vmul.f32 %v602, 0.70710677
        %v800 = vmul.f32 %v606, 0.70710677
        %v801 = vmul.f32 %v608, 0.70710677
        %v802 = vmul.f32 %v612, 0.70710677
        %v803 = vmul.f32 %v614, 0.70710677
        %v804 = vmul.f32 %v618, 0.70710677
        %v805 = vmul.f32 %v620, 0.70710677
        %v806 = vmul.f32 %v624, 0.70710677
        %v807 = vmul.f32 %v626, 0.70710677
        %v808 = vmul.f32 %v630, 0.70710677
        %v809 = vmul.f32 %v632, 0.70710677
        %v810 = vmul.f32 %v636, 0.70710677
        %v811 = vmul.f32 %v638, 0.70710677
        %v812 = vmul.f32 %v642, 0.70710677
        %v813 = vmul.f32 %v644, 0.70710677
        %v814 = vmul.f32 %v648, 0.70710677
        %v815 = vmul.f32 %v650, 0.70710677
        %v816 = vmul.f32 %v654, 0.70710677
        %v817 = vmul.f32 %v656, 0.70710677
        %v818 = vmul.f32 %v660, 0.70710677
        %v819 = vmul.f32 %v662, 0.70710677
        %v820 = vmul.f32 %v666, 0.70710677
        %v821 = vmul.f32 %v668, 0.70710677
        %v822 = vmul.f32 %v672, 0.70710677
        %v823 = vmul.f32 %v674, 0.70710677
        %v824 = vmul.f32 %v678, 0.70710677
        %v825 = vmul.f32 %v680, 0.70710677
        %v826 = vmul.f32 %v684, 0.70710677
        %v827 = vmul.f32 %v686, 0.70710677
        %v828 = vmul.f32 %v690, 0.70710677
        %v829 = vmul.f32 %v692, 0.70710677
        %v830 = vmul.f32 %v696, 0.70710677
        %v831 = vmul.f32 %v698, 0.70710677
        %v832 = vmul.f32 %v702, 0.70710677
        %v833 = vmul.f32 %v704, 0.70710677
        %v834 = vand.u32 2147483647, %v770
        %v835 = vand.u32 2147483647, %v771
        %v836 = vand.u32 2147483647, %v772
        %v837 = vand.u32 2147483647, %v773
        %v838 = vand.u32 2147483647, %v774
        %v839 = vand.u32 2147483647, %v775
        %v840 = vand.u32 2147483647, %v776
        %v841 = vand.u32 2147483647, %v777
        %v842 = vand.u32 2147483647, %v778
        %v843 = vand.u32 2147483647, %v779
        %v844 = vand.u32 2147483647, %v780
        %v845 = vand.u32 2147483647, %v781
        %v846 = vand.u32 2147483647, %v782
        %v847 = vand.u32 2147483647, %v783
        %v848 = vand.u32 2147483647, %v784
        %v849 = vand.u32 2147483647, %v785
        %v850 = vand.u32 2147483647, %v786
        %v851 = vand.u32 2147483647, %v787
        %v852 = vand.u32 2147483647, %v788
        %v853 = vand.u32 2147483647, %v789
        %v854 = vand.u32 2147483647, %v790
        %v855 = vand.u32 2147483647, %v791
        %v856 = vand.u32 2147483647, %v792
        %v857 = vand.u32 2147483647, %v793
        %v858 = vand.u32 2147483647, %v794
        %v859 = vand.u32 2147483647, %v795
        %v860 = vand.u32 2147483647, %v796
        %v861 = vand.u32 2147483647, %v797
        %v862 = vand.u32 2147483647, %v798
        %v863 = vand.u32 2147483647, %v799
        %v864 = vand.u32 2147483647, %v800
        %v865 = vand.u32 2147483647, %v801
        %v866 = vand.u32 2147483647, %v802
        %v867 = vand.u32 2147483647, %v803
        %v868 = vand.u32 2147483647, %v804
        %v869 = vand.u32 2147483647, %v805
        %v870 = vand.u32 2147483647, %v806
        %v871 = vand.u32 2147483647, %v807
        %v872 = vand.u32 2147483647, %v808
        %v873 = vand.u32 2147483647, %v809
        %v874 = vand.u32 2147483647, %v810
        %v875 = vand.u32 2147483647, %v811
        %v876 = vand.u32 2147483647, %v812
        %v877 = vand.u32 2147483647, %v813
        %v878 = vand.u32 2147483647, %v814
        %v879 = vand.u32 2147483647, %v815
        %v880 = vand.u32 2147483647, %v816
        %v881 = vand.u32 2147483647, %v817
        %v882 = vand.u32 2147483647, %v818
        %v883 = vand.u32 2147483647, %v819
        %v884 = vand.u32 2147483647, %v820
        %v885 = vand.u32 2147483647, %v821
        %v886 = vand.u32 2147483647, %v822
        %v887 = vand.u32 2147483647, %v823
        %v888 = vand.u32 2147483647, %v824
        %v889 = vand.u32 2147483647, %v825
        %v890 = vand.u32 2147483647, %v826
        %v891 = vand.u32 2147483647, %v827
        %v892 = vand.u32 2147483647, %v828
        %v893 = vand.u32 2147483647, %v829
        %v894 = vand.u32 2147483647, %v830
        %v895 = vand.u32 2147483647, %v831
        %v896 = vand.u32 2147483647, %v832
        %v897 = vand.u32 2147483647, %v833
        %v898 = vmul.f32 %v834, 0.3275911
        %v899 = vmul.f32 %v835, 0.3275911
        %v900 = vmul.f32 %v836, 0.3275911
        %v901 = vmul.f32 %v837, 0.3275911
        %v902 = vmul.f32 %v838, 0.3275911
        %v903 = vmul.f32 %v839, 0.3275911
        %v904 = vmul.f32 %v840, 0.3275911
        %v905 = vmul.f32 %v841, 0.3275911
        %v906 = vmul.f32 %v842, 0.3275911
        %v907 = vmul.f32 %v843, 0.3275911
        %v908 = vmul.f32 %v844, 0.3275911
        %v909 = vmul.f32 %v845, 0.3275911
        %v910 = vmul.f32 %v846, 0.3275911
        %v911 = vmul.f32 %v847, 0.3275911
        %v912 = vmul.f32 %v848, 0.3275911
        %v913 = vmul.f32 %v849, 0.3275911
        %v914 = vmul.f32 %v850, 0.3275911
        %v915 = vmul.f32 %v851, 0.3275911
        %v916 = vmul.f32 %v852, 0.3275911
        %v917 = vmul.f32 %v853, 0.3275911
        %v918 = vmul.f32 %v854, 0.3275911
        %v919 = vmul.f32 %v855, 0.3275911
        %v920 = vmul.f32 %v856, 0.3275911
        %v921 = vmul.f32 %v857, 0.3275911
        %v922 = vmul.f32 %v858, 0.3275911
        %v923 = vmul.f32 %v859, 0.3275911
        %v924 = vmul.f32 %v860, 0.3275911
        %v925 = vmul.f32 %v861, 0.3275911
        %v926 = vmul.f32 %v862, 0.3275911
        %v927 = vmul.f32 %v863, 0.3275911
        %v928 = vmul.f32 %v864, 0.3275911
        %v929 = vmul.f32 %v865, 0.3275911
        %v930 = vmul.f32 %v866, 0.3275911
        %v931 = vmul.f32 %v867, 0.3275911
        %v932 = vmul.f32 %v868, 0.3275911
        %v933 = vmul.f32 %v869, 0.3275911
        %v934 = vmul.f32 %v870, 0.3275911
        %v935 = vmul.f32 %v871, 0.3275911
        %v936 = vmul.f32 %v872, 0.3275911
        %v937 = vmul.f32 %v873, 0.3275911
        %v938 = vmul.f32 %v874, 0.3275911
        %v939 = vmul.f32 %v875, 0.3275911
        %v940 = vmul.f32 %v876, 0.3275911
        %v941 = vmul.f32 %v877, 0.3275911
        %v942 = vmul.f32 %v878, 0.3275911
        %v943 = vmul.f32 %v879, 0.3275911
        %v944 = vmul.f32 %v880, 0.3275911
        %v945 = vmul.f32 %v881, 0.3275911
        %v946 = vmul.f32 %v882, 0.3275911
        %v947 = vmul.f32 %v883, 0.3275911
        %v948 = vmul.f32 %v884, 0.3275911
        %v949 = vmul.f32 %v885, 0.3275911
        %v950 = vmul.f32 %v886, 0.3275911
        %v951 = vmul.f32 %v887, 0.3275911
        %v952 = vmul.f32 %v888, 0.3275911
        %v953 = vmul.f32 %v889, 0.3275911
        %v954 = vmul.f32 %v890, 0.3275911
        %v955 = vmul.f32 %v891, 0.3275911
        %v956 = vmul.f32 %v892, 0.3275911
        %v957 = vmul.f32 %v893, 0.3275911
        %v958 = vmul.f32 %v894, 0.3275911
        %v959 = vmul.f32 %v895, 0.3275911
        %v960 = vmul.f32 %v896, 0.3275911
        %v961 = vmul.f32 %v897, 0.3275911
        %v962 = vadd.f32 %v898, 1.0
        %v963 = vadd.f32 %v899, 1.0
        %v964 = vadd.f32 %v900, 1.0
        %v965 = vadd.f32 %v901, 1.0
        %v966 = vadd.f32 %v902, 1.0
        %v967 = vadd.f32 %v903, 1.0
        %v968 = vadd.f32 %v904, 1.0
        %v969 = vadd.f32 %v905, 1.0
        %v970 = vadd.f32 %v906, 1.0
        %v971 = vadd.f32 %v907, 1.0
        %v972 = vadd.f32 %v908, 1.0
        %v973 = vadd.f32 %v909, 1.0
        %v974 = vadd.f32 %v910, 1.0
        %v975 = vadd.f32 %v911, 1.0
        %v976 = vadd.f32 %v912, 1.0
        %v977 = vadd.f32 %v913, 1.0
        %v978 = vadd.f32 %v914, 1.0
        %v979 = vadd.f32 %v915, 1.0
        %v980 = vadd.f32 %v916, 1.0
        %v981 = vadd.f32 %v917, 1.0
        %v982 = vadd.f32 %v918, 1.0
        %v983 = vadd.f32 %v919, 1.0
        %v984 = vadd.f32 %v920, 1.0
        %v985 = vadd.f32 %v921, 1.0
        %v986 = vadd.f32 %v922, 1.0
        %v987 = vadd.f32 %v923, 1.0
        %v988 = vadd.f32 %v924, 1.0
        %v989 = vadd.f32 %v925, 1.0
        %v990 = vadd.f32 %v926, 1.0
        %v991 = vadd.f32 %v927, 1.0
        %v992 = vadd.f32 %v928, 1.0
        %v993 = vadd.f32 %v929, 1.0
        %v994 = vadd.f32 %v930, 1.0
        %v995 = vadd.f32 %v931, 1.0
        %v996 = vadd.f32 %v932, 1.0
        %v997 = vadd.f32 %v933, 1.0
        %v998 = vadd.f32 %v934, 1.0
        %v999 = vadd.f32 %v935, 1.0
        %v1000 = vadd.f32 %v936, 1.0
        %v1001 = vadd.f32 %v937, 1.0
        %v1002 = vadd.f32 %v938, 1.0
        %v1003 = vadd.f32 %v939, 1.0
        %v1004 = vadd.f32 %v940, 1.0
        %v1005 = vadd.f32 %v941, 1.0
        %v1006 = vadd.f32 %v942, 1.0
        %v1007 = vadd.f32 %v943, 1.0
        %v1008 = vadd.f32 %v944, 1.0
        %v1009 = vadd.f32 %v945, 1.0
        %v1010 = vadd.f32 %v946, 1.0
        %v1011 = vadd.f32 %v947, 1.0
        %v1012 = vadd.f32 %v948, 1.0
        %v1013 = vadd.f32 %v949, 1.0
        %v1014 = vadd.f32 %v950, 1.0
        %v1015 = vadd.f32 %v951, 1.0
        %v1016 = vadd.f32 %v952, 1.0
        %v1017 = vadd.f32 %v953, 1.0
        %v1018 = vadd.f32 %v954, 1.0
        %v1019 = vadd.f32 %v955, 1.0
        %v1020 = vadd.f32 %v956, 1.0
        %v1021 = vadd.f32 %v957, 1.0
        %v1022 = vadd.f32 %v958, 1.0
        %v1023 = vadd.f32 %v959, 1.0
        %v1024 = vadd.f32 %v960, 1.0
        %v1025 = vadd.f32 %v961, 1.0
        %v1026 = vrcp.pop %v962
        %v1027 = vrcp.pop %v963
        %v1028 = vrcp.pop %v964
        %v1029 = vrcp.pop %v965
        %v1030 = vrcp.pop %v966
        %v1031 = vrcp.pop %v967
        %v1032 = vrcp.pop %v968
        %v1033 = vrcp.pop %v969
        %v1034 = vrcp.pop %v970
        %v1035 = vrcp.pop %v971
        %v1036 = vrcp.pop %v972
        %v1037 = vrcp.pop %v973
        %v1038 = vrcp.pop %v974
        %v1039 = vrcp.pop %v975
        %v1040 = vrcp.pop %v976
        %v1041 = vrcp.pop %v977
        %v1042 = vrcp.pop %v978
        %v1043 = vrcp.pop %v979
        %v1044 = vrcp.pop %v980
        %v1045 = vrcp.pop %v981
        %v1046 = vrcp.pop %v982
        %v1047 = vrcp.pop %v983
        %v1048 = vrcp.pop %v984
        %v1049 = vrcp.pop %v985
        %v1050 = vrcp.pop %v986
        %v1051 = vrcp.pop %v987
        %v1052 = vrcp.pop %v988
        %v1053 = vrcp.pop %v989
        %v1054 = vrcp.pop %v990
        %v1055 = vrcp.pop %v991
        %v1056 = vrcp.pop %v992
        %v1057 = vrcp.pop %v993
        %v1058 = vrcp.pop %v994
        %v1059 = vrcp.pop %v995
        %v1060 = vrcp.pop %v996
        %v1061 = vrcp.pop %v997
        %v1062 = vrcp.pop %v998
        %v1063 = vrcp.pop %v999
        %v1064 = vrcp.pop %v1000
        %v1065 = vrcp.pop %v1001
        %v1066 = vrcp.pop %v1002
        %v1067 = vrcp.pop %v1003
        %v1068 = vrcp.pop %v1004
        %v1069 = vrcp.pop %v1005
        %v1070 = vrcp.pop %v1006
        %v1071 = vrcp.pop %v1007
        %v1072 = vrcp.pop %v1008
        %v1073 = vrcp.pop %v1009
        %v1074 = vrcp.pop %v1010
        %v1075 = vrcp.pop %v1011
        %v1076 = vrcp.pop %v1012
        %v1077 = vrcp.pop %v1013
        %v1078 = vrcp.pop %v1014
        %v1079 = vrcp.pop %v1015
        %v1080 = vrcp.pop %v1016
        %v1081 = vrcp.pop %v1017
        %v1082 = vrcp.pop %v1018
        %v1083 = vrcp.pop %v1019
        %v1084 = vrcp.pop %v1020
        %v1085 = vrcp.pop %v1021
        %v1086 = vrcp.pop %v1022
        %v1087 = vrcp.pop %v1023
        %v1088 = vrcp.pop %v1024
        %v1089 = vrcp.pop %v1025
        %v1090 = vmul.f32 %v1026, 1.0614054
        %v1091 = vmul.f32 %v1027, 1.0614054
        %v1092 = vmul.f32 %v1028, 1.0614054
        %v1093 = vmul.f32 %v1029, 1.0614054
        %v1094 = vmul.f32 %v1030, 1.0614054
        %v1095 = vmul.f32 %v1031, 1.0614054
        %v1096 = vmul.f32 %v1032, 1.0614054
        %v1097 = vmul.f32 %v1033, 1.0614054
        %v1098 = vmul.f32 %v1034, 1.0614054
        %v1099 = vmul.f32 %v1035, 1.0614054
        %v1100 = vmul.f32 %v1036, 1.0614054
        %v1101 = vmul.f32 %v1037, 1.0614054
        %v1102 = vmul.f32 %v1038, 1.0614054
        %v1103 = vmul.f32 %v1039, 1.0614054
        %v1104 = vmul.f32 %v1040, 1.0614054
        %v1105 = vmul.f32 %v1041, 1.0614054
        %v1106 = vmul.f32 %v1042, 1.0614054
        %v1107 = vmul.f32 %v1043, 1.0614054
        %v1108 = vmul.f32 %v1044, 1.0614054
        %v1109 = vmul.f32 %v1045, 1.0614054
        %v1110 = vmul.f32 %v1046, 1.0614054
        %v1111 = vmul.f32 %v1047, 1.0614054
        %v1112 = vmul.f32 %v1048, 1.0614054
        %v1113 = vmul.f32 %v1049, 1.0614054
        %v1114 = vmul.f32 %v1050, 1.0614054
        %v1115 = vmul.f32 %v1051, 1.0614054
        %v1116 = vmul.f32 %v1052, 1.0614054
        %v1117 = vmul.f32 %v1053, 1.0614054
        %v1118 = vmul.f32 %v1054, 1.0614054
        %v1119 = vmul.f32 %v1055, 1.0614054
        %v1120 = vmul.f32 %v1056, 1.0614054
        %v1121 = vmul.f32 %v1057, 1.0614054
        %v1122 = vmul.f32 %v1058, 1.0614054
        %v1123 = vmul.f32 %v1059, 1.0614054
        %v1124 = vmul.f32 %v1060, 1.0614054
        %v1125 = vmul.f32 %v1061, 1.0614054
        %v1126 = vmul.f32 %v1062, 1.0614054
        %v1127 = vmul.f32 %v1063, 1.0614054
        %v1128 = vmul.f32 %v1064, 1.0614054
        %v1129 = vmul.f32 %v1065, 1.0614054
        %v1130 = vmul.f32 %v1066, 1.0614054
        %v1131 = vmul.f32 %v1067, 1.0614054
        %v1132 = vmul.f32 %v1068, 1.0614054
        %v1133 = vmul.f32 %v1069, 1.0614054
        %v1134 = vmul.f32 %v1070, 1.0614054
        %v1135 = vmul.f32 %v1071, 1.0614054
        %v1136 = vmul.f32 %v1072, 1.0614054
        %v1137 = vmul.f32 %v1073, 1.0614054
        %v1138 = vmul.f32 %v1074, 1.0614054
        %v1139 = vmul.f32 %v1075, 1.0614054
        %v1140 = vmul.f32 %v1076, 1.0614054
        %v1141 = vmul.f32 %v1077, 1.0614054
        %v1142 = vmul.f32 %v1078, 1.0614054
        %v1143 = vmul.f32 %v1079, 1.0614054
        %v1144 = vmul.f32 %v1080, 1.0614054
        %v1145 = vmul.f32 %v1081, 1.0614054
        %v1146 = vmul.f32 %v1082, 1.0614054
        %v1147 = vmul.f32 %v1083, 1.0614054
        %v1148 = vmul.f32 %v1084, 1.0614054
        %v1149 = vmul.f32 %v1085, 1.0614054
        %v1150 = vmul.f32 %v1086, 1.0614054
        %v1151 = vmul.f32 %v1087, 1.0614054
        %v1152 = vmul.f32 %v1088, 1.0614054
        %v1153 = vmul.f32 %v1089, 1.0614054
        %v1154 = vadd.f32 %v1090, -1.4531521
        %v1155 = vadd.f32 %v1091, -1.4531521
        %v1156 = vadd.f32 %v1092, -1.4531521
        %v1157 = vadd.f32 %v1093, -1.4531521
        %v1158 = vadd.f32 %v1094, -1.4531521
        %v1159 = vadd.f32 %v1095, -1.4531521
        %v1160 = vadd.f32 %v1096, -1.4531521
        %v1161 = vadd.f32 %v1097, -1.4531521
        %v1162 = vadd.f32 %v1098, -1.4531521
        %v1163 = vadd.f32 %v1099, -1.4531521
        %v1164 = vadd.f32 %v1100, -1.4531521
        %v1165 = vadd.f32 %v1101, -1.4531521
        %v1166 = vadd.f32 %v1102, -1.4531521
        %v1167 = vadd.f32 %v1103, -1.4531521
        %v1168 = vadd.f32 %v1104, -1.4531521
        %v1169 = vadd.f32 %v1105, -1.4531521
        %v1170 = vadd.f32 %v1106, -1.4531521
        %v1171 = vadd.f32 %v1107, -1.4531521
        %v1172 = vadd.f32 %v1108, -1.4531521
        %v1173 = vadd.f32 %v1109, -1.4531521
        %v1174 = vadd.f32 %v1110, -1.4531521
        %v1175 = vadd.f32 %v1111, -1.4531521
        %v1176 = vadd.f32 %v1112, -1.4531521
        %v1177 = vadd.f32 %v1113, -1.4531521
        %v1178 = vadd.f32 %v1114, -1.4531521
        %v1179 = vadd.f32 %v1115, -1.4531521
        %v1180 = vadd.f32 %v1116, -1.4531521
        %v1181 = vadd.f32 %v1117, -1.4531521
        %v1182 = vadd.f32 %v1118, -1.4531521
        %v1183 = vadd.f32 %v1119, -1.4531521
        %v1184 = vadd.f32 %v1120, -1.4531521
        %v1185 = vadd.f32 %v1121, -1.4531521
        %v1186 = vadd.f32 %v1122, -1.4531521
        %v1187 = vadd.f32 %v1123, -1.4531521
        %v1188 = vadd.f32 %v1124, -1.4531521
        %v1189 = vadd.f32 %v1125, -1.4531521
        %v1190 = vadd.f32 %v1126, -1.4531521
        %v1191 = vadd.f32 %v1127, -1.4531521
        %v1192 = vadd.f32 %v1128, -1.4531521
        %v1193 = vadd.f32 %v1129, -1.4531521
        %v1194 = vadd.f32 %v1130, -1.4531521
        %v1195 = vadd.f32 %v1131, -1.4531521
        %v1196 = vadd.f32 %v1132, -1.4531521
        %v1197 = vadd.f32 %v1133, -1.4531521
        %v1198 = vadd.f32 %v1134, -1.4531521
        %v1199 = vadd.f32 %v1135, -1.4531521
        %v1200 = vadd.f32 %v1136, -1.4531521
        %v1201 = vadd.f32 %v1137, -1.4531521
        %v1202 = vadd.f32 %v1138, -1.4531521
        %v1203 = vadd.f32 %v1139, -1.4531521
        %v1204 = vadd.f32 %v1140, -1.4531521
        %v1205 = vadd.f32 %v1141, -1.4531521
        %v1206 = vadd.f32 %v1142, -1.4531521
        %v1207 = vadd.f32 %v1143, -1.4531521
        %v1208 = vadd.f32 %v1144, -1.4531521
        %v1209 = vadd.f32 %v1145, -1.4531521
        %v1210 = vadd.f32 %v1146, -1.4531521
        %v1211 = vadd.f32 %v1147, -1.4531521
        %v1212 = vadd.f32 %v1148, -1.4531521
        %v1213 = vadd.f32 %v1149, -1.4531521
        %v1214 = vadd.f32 %v1150, -1.4531521
        %v1215 = vadd.f32 %v1151, -1.4531521
        %v1216 = vadd.f32 %v1152, -1.4531521
        %v1217 = vadd.f32 %v1153, -1.4531521
        %v1218 = vmul.f32 %v1154, %v1026
        %v1219 = vmul.f32 %v1155, %v1027
        %v1220 = vmul.f32 %v1156, %v1028
        %v1221 = vmul.f32 %v1157, %v1029
        %v1222 = vmul.f32 %v1158, %v1030
        %v1223 = vmul.f32 %v1159, %v1031
        %v1224 = vmul.f32 %v1160, %v1032
        %v1225 = vmul.f32 %v1161, %v1033
        %v1226 = vmul.f32 %v1162, %v1034
        %v1227 = vmul.f32 %v1163, %v1035
        %v1228 = vmul.f32 %v1164, %v1036
        %v1229 = vmul.f32 %v1165, %v1037
        %v1230 = vmul.f32 %v1166, %v1038
        %v1231 = vmul.f32 %v1167, %v1039
        %v1232 = vmul.f32 %v1168, %v1040
        %v1233 = vmul.f32 %v1169, %v1041
        %v1234 = vmul.f32 %v1170, %v1042
        %v1235 = vmul.f32 %v1171, %v1043
        %v1236 = vmul.f32 %v1172, %v1044
        %v1237 = vmul.f32 %v1173, %v1045
        %v1238 = vmul.f32 %v1174, %v1046
        %v1239 = vmul.f32 %v1175, %v1047
        %v1240 = vmul.f32 %v1176, %v1048
        %v1241 = vmul.f32 %v1177, %v1049
        %v1242 = vmul.f32 %v1178, %v1050
        %v1243 = vmul.f32 %v1179, %v1051
        %v1244 = vmul.f32 %v1180, %v1052
        %v1245 = vmul.f32 %v1181, %v1053
        %v1246 = vmul.f32 %v1182, %v1054
        %v1247 = vmul.f32 %v1183, %v1055
        %v1248 = vmul.f32 %v1184, %v1056
        %v1249 = vmul.f32 %v1185, %v1057
        %v1250 = vmul.f32 %v1186, %v1058
        %v1251 = vmul.f32 %v1187, %v1059
        %v1252 = vmul.f32 %v1188, %v1060
        %v1253 = vmul.f32 %v1189, %v1061
        %v1254 = vmul.f32 %v1190, %v1062
        %v1255 = vmul.f32 %v1191, %v1063
        %v1256 = vmul.f32 %v1192, %v1064
        %v1257 = vmul.f32 %v1193, %v1065
        %v1258 = vmul.f32 %v1194, %v1066
        %v1259 = vmul.f32 %v1195, %v1067
        %v1260 = vmul.f32 %v1196, %v1068
        %v1261 = vmul.f32 %v1197, %v1069
        %v1262 = vmul.f32 %v1198, %v1070
        %v1263 = vmul.f32 %v1199, %v1071
        %v1264 = vmul.f32 %v1200, %v1072
        %v1265 = vmul.f32 %v1201, %v1073
        %v1266 = vmul.f32 %v1202, %v1074
        %v1267 = vmul.f32 %v1203, %v1075
        %v1268 = vmul.f32 %v1204, %v1076
        %v1269 = vmul.f32 %v1205, %v1077
        %v1270 = vmul.f32 %v1206, %v1078
        %v1271 = vmul.f32 %v1207, %v1079
        %v1272 = vmul.f32 %v1208, %v1080
        %v1273 = vmul.f32 %v1209, %v1081
        %v1274 = vmul.f32 %v1210, %v1082
        %v1275 = vmul.f32 %v1211, %v1083
        %v1276 = vmul.f32 %v1212, %v1084
        %v1277 = vmul.f32 %v1213, %v1085
        %v1278 = vmul.f32 %v1214, %v1086
        %v1279 = vmul.f32 %v1215, %v1087
        %v1280 = vmul.f32 %v1216, %v1088
        %v1281 = vmul.f32 %v1217, %v1089
        %v1282 = vadd.f32 %v1218, 1.4214138
        %v1283 = vadd.f32 %v1219, 1.4214138
        %v1284 = vadd.f32 %v1220, 1.4214138
        %v1285 = vadd.f32 %v1221, 1.4214138
        %v1286 = vadd.f32 %v1222, 1.4214138
        %v1287 = vadd.f32 %v1223, 1.4214138
        %v1288 = vadd.f32 %v1224, 1.4214138
        %v1289 = vadd.f32 %v1225, 1.4214138
        %v1290 = vadd.f32 %v1226, 1.4214138
        %v1291 = vadd.f32 %v1227, 1.4214138
        %v1292 = vadd.f32 %v1228, 1.4214138
        %v1293 = vadd.f32 %v1229, 1.4214138
        %v1294 = vadd.f32 %v1230, 1.4214138
        %v1295 = vadd.f32 %v1231, 1.4214138
        %v1296 = vadd.f32 %v1232, 1.4214138
        %v1297 = vadd.f32 %v1233, 1.4214138
        %v1298 = vadd.f32 %v1234, 1.4214138
        %v1299 = vadd.f32 %v1235, 1.4214138
        %v1300 = vadd.f32 %v1236, 1.4214138
        %v1301 = vadd.f32 %v1237, 1.4214138
        %v1302 = vadd.f32 %v1238, 1.4214138
        %v1303 = vadd.f32 %v1239, 1.4214138
        %v1304 = vadd.f32 %v1240, 1.4214138
        %v1305 = vadd.f32 %v1241, 1.4214138
        %v1306 = vadd.f32 %v1242, 1.4214138
        %v1307 = vadd.f32 %v1243, 1.4214138
        %v1308 = vadd.f32 %v1244, 1.4214138
        %v1309 = vadd.f32 %v1245, 1.4214138
        %v1310 = vadd.f32 %v1246, 1.4214138
        %v1311 = vadd.f32 %v1247, 1.4214138
        %v1312 = vadd.f32 %v1248, 1.4214138
        %v1313 = vadd.f32 %v1249, 1.4214138
        %v1314 = vadd.f32 %v1250, 1.4214138
        %v1315 = vadd.f32 %v1251, 1.4214138
        %v1316 = vadd.f32 %v1252, 1.4214138
        %v1317 = vadd.f32 %v1253, 1.4214138
        %v1318 = vadd.f32 %v1254, 1.4214138
        %v1319 = vadd.f32 %v1255, 1.4214138
        %v1320 = vadd.f32 %v1256, 1.4214138
        %v1321 = vadd.f32 %v1257, 1.4214138
        %v1322 = vadd.f32 %v1258, 1.4214138
        %v1323 = vadd.f32 %v1259, 1.4214138
        %v1324 = vadd.f32 %v1260, 1.4214138
        %v1325 = vadd.f32 %v1261, 1.4214138
        %v1326 = vadd.f32 %v1262, 1.4214138
        %v1327 = vadd.f32 %v1263, 1.4214138
        %v1328 = vadd.f32 %v1264, 1.4214138
        %v1329 = vadd.f32 %v1265, 1.4214138
        %v1330 = vadd.f32 %v1266, 1.4214138
        %v1331 = vadd.f32 %v1267, 1.4214138
        %v1332 = vadd.f32 %v1268, 1.4214138
        %v1333 = vadd.f32 %v1269, 1.4214138
        %v1334 = vadd.f32 %v1270, 1.4214138
        %v1335 = vadd.f32 %v1271, 1.4214138
        %v1336 = vadd.f32 %v1272, 1.4214138
        %v1337 = vadd.f32 %v1273, 1.4214138
        %v1338 = vadd.f32 %v1274, 1.4214138
        %v1339 = vadd.f32 %v1275, 1.4214138
        %v1340 = vadd.f32 %v1276, 1.4214138
        %v1341 = vadd.f32 %v1277, 1.4214138
        %v1342 = vadd.f32 %v1278, 1.4214138
        %v1343 = vadd.f32 %v1279, 1.4214138
        %v1344 = vadd.f32 %v1280, 1.4214138
        %v1345 = vadd.f32 %v1281, 1.4214138
        %v1346 = vmul.f32 %v1282, %v1026
        %v1347 = vmul.f32 %v1283, %v1027
        %v1348 = vmul.f32 %v1284, %v1028
        %v1349 = vmul.f32 %v1285, %v1029
        %v1350 = vmul.f32 %v1286, %v1030
        %v1351 = vmul.f32 %v1287, %v1031
        %v1352 = vmul.f32 %v1288, %v1032
        %v1353 = vmul.f32 %v1289, %v1033
        %v1354 = vmul.f32 %v1290, %v1034
        %v1355 = vmul.f32 %v1291, %v1035
        %v1356 = vmul.f32 %v1292, %v1036
        %v1357 = vmul.f32 %v1293, %v1037
        %v1358 = vmul.f32 %v1294, %v1038
        %v1359 = vmul.f32 %v1295, %v1039
        %v1360 = vmul.f32 %v1296, %v1040
        %v1361 = vmul.f32 %v1297, %v1041
        %v1362 = vmul.f32 %v1298, %v1042
        %v1363 = vmul.f32 %v1299, %v1043
        %v1364 = vmul.f32 %v1300, %v1044
        %v1365 = vmul.f32 %v1301, %v1045
        %v1366 = vmul.f32 %v1302, %v1046
        %v1367 = vmul.f32 %v1303, %v1047
        %v1368 = vmul.f32 %v1304, %v1048
        %v1369 = vmul.f32 %v1305, %v1049
        %v1370 = vmul.f32 %v1306, %v1050
        %v1371 = vmul.f32 %v1307, %v1051
        %v1372 = vmul.f32 %v1308, %v1052
        %v1373 = vmul.f32 %v1309, %v1053
        %v1374 = vmul.f32 %v1310, %v1054
        %v1375 = vmul.f32 %v1311, %v1055
        %v1376 = vmul.f32 %v1312, %v1056
        %v1377 = vmul.f32 %v1313, %v1057
        %v1378 = vmul.f32 %v1314, %v1058
        %v1379 = vmul.f32 %v1315, %v1059
        %v1380 = vmul.f32 %v1316, %v1060
        %v1381 = vmul.f32 %v1317, %v1061
        %v1382 = vmul.f32 %v1318, %v1062
        %v1383 = vmul.f32 %v1319, %v1063
        %v1384 = vmul.f32 %v1320, %v1064
        %v1385 = vmul.f32 %v1321, %v1065
        %v1386 = vmul.f32 %v1322, %v1066
        %v1387 = vmul.f32 %v1323, %v1067
        %v1388 = vmul.f32 %v1324, %v1068
        %v1389 = vmul.f32 %v1325, %v1069
        %v1390 = vmul.f32 %v1326, %v1070
        %v1391 = vmul.f32 %v1327, %v1071
        %v1392 = vmul.f32 %v1328, %v1072
        %v1393 = vmul.f32 %v1329, %v1073
        %v1394 = vmul.f32 %v1330, %v1074
        %v1395 = vmul.f32 %v1331, %v1075
        %v1396 = vmul.f32 %v1332, %v1076
        %v1397 = vmul.f32 %v1333, %v1077
        %v1398 = vmul.f32 %v1334, %v1078
        %v1399 = vmul.f32 %v1335, %v1079
        %v1400 = vmul.f32 %v1336, %v1080
        %v1401 = vmul.f32 %v1337, %v1081
        %v1402 = vmul.f32 %v1338, %v1082
        %v1403 = vmul.f32 %v1339, %v1083
        %v1404 = vmul.f32 %v1340, %v1084
        %v1405 = vmul.f32 %v1341, %v1085
        %v1406 = vmul.f32 %v1342, %v1086
        %v1407 = vmul.f32 %v1343, %v1087
        %v1408 = vmul.f32 %v1344, %v1088
        %v1409 = vmul.f32 %v1345, %v1089
        %v1410 = vadd.f32 %v1346, -0.28449672
        %v1411 = vadd.f32 %v1347, -0.28449672
        %v1412 = vadd.f32 %v1348, -0.28449672
        %v1413 = vadd.f32 %v1349, -0.28449672
        %v1414 = vadd.f32 %v1350, -0.28449672
        %v1415 = vadd.f32 %v1351, -0.28449672
        %v1416 = vadd.f32 %v1352, -0.28449672
        %v1417 = vadd.f32 %v1353, -0.28449672
        %v1418 = vadd.f32 %v1354, -0.28449672
        %v1419 = vadd.f32 %v1355, -0.28449672
        %v1420 = vadd.f32 %v1356, -0.28449672
        %v1421 = vadd.f32 %v1357, -0.28449672
        %v1422 = vadd.f32 %v1358, -0.28449672
        %v1423 = vadd.f32 %v1359, -0.28449672
        %v1424 = vadd.f32 %v1360, -0.28449672
        %v1425 = vadd.f32 %v1361, -0.28449672
        %v1426 = vadd.f32 %v1362, -0.28449672
        %v1427 = vadd.f32 %v1363, -0.28449672
        %v1428 = vadd.f32 %v1364, -0.28449672
        %v1429 = vadd.f32 %v1365, -0.28449672
        %v1430 = vadd.f32 %v1366, -0.28449672
        %v1431 = vadd.f32 %v1367, -0.28449672
        %v1432 = vadd.f32 %v1368, -0.28449672
        %v1433 = vadd.f32 %v1369, -0.28449672
        %v1434 = vadd.f32 %v1370, -0.28449672
        %v1435 = vadd.f32 %v1371, -0.28449672
        %v1436 = vadd.f32 %v1372, -0.28449672
        %v1437 = vadd.f32 %v1373, -0.28449672
        %v1438 = vadd.f32 %v1374, -0.28449672
        %v1439 = vadd.f32 %v1375, -0.28449672
        %v1440 = vadd.f32 %v1376, -0.28449672
        %v1441 = vadd.f32 %v1377, -0.28449672
        %v1442 = vadd.f32 %v1378, -0.28449672
        %v1443 = vadd.f32 %v1379, -0.28449672
        %v1444 = vadd.f32 %v1380, -0.28449672
        %v1445 = vadd.f32 %v1381, -0.28449672
        %v1446 = vadd.f32 %v1382, -0.28449672
        %v1447 = vadd.f32 %v1383, -0.28449672
        %v1448 = vadd.f32 %v1384, -0.28449672
        %v1449 = vadd.f32 %v1385, -0.28449672
        %v1450 = vadd.f32 %v1386, -0.28449672
        %v1451 = vadd.f32 %v1387, -0.28449672
        %v1452 = vadd.f32 %v1388, -0.28449672
        %v1453 = vadd.f32 %v1389, -0.28449672
        %v1454 = vadd.f32 %v1390, -0.28449672
        %v1455 = vadd.f32 %v1391, -0.28449672
        %v1456 = vadd.f32 %v1392, -0.28449672
        %v1457 = vadd.f32 %v1393, -0.28449672
        %v1458 = vadd.f32 %v1394, -0.28449672
        %v1459 = vadd.f32 %v1395, -0.28449672
        %v1460 = vadd.f32 %v1396, -0.28449672
        %v1461 = vadd.f32 %v1397, -0.28449672
        %v1462 = vadd.f32 %v1398, -0.28449672
        %v1463 = vadd.f32 %v1399, -0.28449672
        %v1464 = vadd.f32 %v1400, -0.28449672
        %v1465 = vadd.f32 %v1401, -0.28449672
        %v1466 = vadd.f32 %v1402, -0.28449672
        %v1467 = vadd.f32 %v1403, -0.28449672
        %v1468 = vadd.f32 %v1404, -0.28449672
        %v1469 = vadd.f32 %v1405, -0.28449672
        %v1470 = vadd.f32 %v1406, -0.28449672
        %v1471 = vadd.f32 %v1407, -0.28449672
        %v1472 = vadd.f32 %v1408, -0.28449672
        %v1473 = vadd.f32 %v1409, -0.28449672
        %v1474 = vmul.f32 %v1410, %v1026
        %v1475 = vmul.f32 %v1411, %v1027
        %v1476 = vmul.f32 %v1412, %v1028
        %v1477 = vmul.f32 %v1413, %v1029
        %v1478 = vmul.f32 %v1414, %v1030
        %v1479 = vmul.f32 %v1415, %v1031
        %v1480 = vmul.f32 %v1416, %v1032
        %v1481 = vmul.f32 %v1417, %v1033
        %v1482 = vmul.f32 %v1418, %v1034
        %v1483 = vmul.f32 %v1419, %v1035
        %v1484 = vmul.f32 %v1420, %v1036
        %v1485 = vmul.f32 %v1421, %v1037
        %v1486 = vmul.f32 %v1422, %v1038
        %v1487 = vmul.f32 %v1423, %v1039
        %v1488 = vmul.f32 %v1424, %v1040
        %v1489 = vmul.f32 %v1425, %v1041
        %v1490 = vmul.f32 %v1426, %v1042
        %v1491 = vmul.f32 %v1427, %v1043
        %v1492 = vmul.f32 %v1428, %v1044
        %v1493 = vmul.f32 %v1429, %v1045
        %v1494 = vmul.f32 %v1430, %v1046
        %v1495 = vmul.f32 %v1431, %v1047
        %v1496 = vmul.f32 %v1432, %v1048
        %v1497 = vmul.f32 %v1433, %v1049
        %v1498 = vmul.f32 %v1434, %v1050
        %v1499 = vmul.f32 %v1435, %v1051
        %v1500 = vmul.f32 %v1436, %v1052
        %v1501 = vmul.f32 %v1437, %v1053
        %v1502 = vmul.f32 %v1438, %v1054
        %v1503 = vmul.f32 %v1439, %v1055
        %v1504 = vmul.f32 %v1440, %v1056
        %v1505 = vmul.f32 %v1441, %v1057
        %v1506 = vmul.f32 %v1442, %v1058
        %v1507 = vmul.f32 %v1443, %v1059
        %v1508 = vmul.f32 %v1444, %v1060
        %v1509 = vmul.f32 %v1445, %v1061
        %v1510 = vmul.f32 %v1446, %v1062
        %v1511 = vmul.f32 %v1447, %v1063
        %v1512 = vmul.f32 %v1448, %v1064
        %v1513 = vmul.f32 %v1449, %v1065
        %v1514 = vmul.f32 %v1450, %v1066
        %v1515 = vmul.f32 %v1451, %v1067
        %v1516 = vmul.f32 %v1452, %v1068
        %v1517 = vmul.f32 %v1453, %v1069
        %v1518 = vmul.f32 %v1454, %v1070
        %v1519 = vmul.f32 %v1455, %v1071
        %v1520 = vmul.f32 %v1456, %v1072
        %v1521 = vmul.f32 %v1457, %v1073
        %v1522 = vmul.f32 %v1458, %v1074
        %v1523 = vmul.f32 %v1459, %v1075
        %v1524 = vmul.f32 %v1460, %v1076
        %v1525 = vmul.f32 %v1461, %v1077
        %v1526 = vmul.f32 %v1462, %v1078
        %v1527 = vmul.f32 %v1463, %v1079
        %v1528 = vmul.f32 %v1464, %v1080
        %v1529 = vmul.f32 %v1465, %v1081
        %v1530 = vmul.f32 %v1466, %v1082
        %v1531 = vmul.f32 %v1467, %v1083
        %v1532 = vmul.f32 %v1468, %v1084
        %v1533 = vmul.f32 %v1469, %v1085
        %v1534 = vmul.f32 %v1470, %v1086
        %v1535 = vmul.f32 %v1471, %v1087
        %v1536 = vmul.f32 %v1472, %v1088
        %v1537 = vmul.f32 %v1473, %v1089
        %v1538 = vadd.f32 %v1474, 0.2548296
        %v1539 = vadd.f32 %v1475, 0.2548296
        %v1540 = vadd.f32 %v1476, 0.2548296
        %v1541 = vadd.f32 %v1477, 0.2548296
        %v1542 = vadd.f32 %v1478, 0.2548296
        %v1543 = vadd.f32 %v1479, 0.2548296
        %v1544 = vadd.f32 %v1480, 0.2548296
        %v1545 = vadd.f32 %v1481, 0.2548296
        %v1546 = vadd.f32 %v1482, 0.2548296
        %v1547 = vadd.f32 %v1483, 0.2548296
        %v1548 = vadd.f32 %v1484, 0.2548296
        %v1549 = vadd.f32 %v1485, 0.2548296
        %v1550 = vadd.f32 %v1486, 0.2548296
        %v1551 = vadd.f32 %v1487, 0.2548296
        %v1552 = vadd.f32 %v1488, 0.2548296
        %v1553 = vadd.f32 %v1489, 0.2548296
        %v1554 = vadd.f32 %v1490, 0.2548296
        %v1555 = vadd.f32 %v1491, 0.2548296
        %v1556 = vadd.f32 %v1492, 0.2548296
        %v1557 = vadd.f32 %v1493, 0.2548296
        %v1558 = vadd.f32 %v1494, 0.2548296
        %v1559 = vadd.f32 %v1495, 0.2548296
        %v1560 = vadd.f32 %v1496, 0.2548296
        %v1561 = vadd.f32 %v1497, 0.2548296
        %v1562 = vadd.f32 %v1498, 0.2548296
        %v1563 = vadd.f32 %v1499, 0.2548296
        %v1564 = vadd.f32 %v1500, 0.2548296
        %v1565 = vadd.f32 %v1501, 0.2548296
        %v1566 = vadd.f32 %v1502, 0.2548296
        %v1567 = vadd.f32 %v1503, 0.2548296
        %v1568 = vadd.f32 %v1504, 0.2548296
        %v1569 = vadd.f32 %v1505, 0.2548296
        %v1570 = vadd.f32 %v1506, 0.2548296
        %v1571 = vadd.f32 %v1507, 0.2548296
        %v1572 = vadd.f32 %v1508, 0.2548296
        %v1573 = vadd.f32 %v1509, 0.2548296
        %v1574 = vadd.f32 %v1510, 0.2548296
        %v1575 = vadd.f32 %v1511, 0.2548296
        %v1576 = vadd.f32 %v1512, 0.2548296
        %v1577 = vadd.f32 %v1513, 0.2548296
        %v1578 = vadd.f32 %v1514, 0.2548296
        %v1579 = vadd.f32 %v1515, 0.2548296
        %v1580 = vadd.f32 %v1516, 0.2548296
        %v1581 = vadd.f32 %v1517, 0.2548296
        %v1582 = vadd.f32 %v1518, 0.2548296
        %v1583 = vadd.f32 %v1519, 0.2548296
        %v1584 = vadd.f32 %v1520, 0.2548296
        %v1585 = vadd.f32 %v1521, 0.2548296
        %v1586 = vadd.f32 %v1522, 0.2548296
        %v1587 = vadd.f32 %v1523, 0.2548296
        %v1588 = vadd.f32 %v1524, 0.2548296
        %v1589 = vadd.f32 %v1525, 0.2548296
        %v1590 = vadd.f32 %v1526, 0.2548296
        %v1591 = vadd.f32 %v1527, 0.2548296
        %v1592 = vadd.f32 %v1528, 0.2548296
        %v1593 = vadd.f32 %v1529, 0.2548296
        %v1594 = vadd.f32 %v1530, 0.2548296
        %v1595 = vadd.f32 %v1531, 0.2548296
        %v1596 = vadd.f32 %v1532, 0.2548296
        %v1597 = vadd.f32 %v1533, 0.2548296
        %v1598 = vadd.f32 %v1534, 0.2548296
        %v1599 = vadd.f32 %v1535, 0.2548296
        %v1600 = vadd.f32 %v1536, 0.2548296
        %v1601 = vadd.f32 %v1537, 0.2548296
        %v1602 = vmul.f32 %v1538, %v1026
        %v1603 = vmul.f32 %v1539, %v1027
        %v1604 = vmul.f32 %v1540, %v1028
        %v1605 = vmul.f32 %v1541, %v1029
        %v1606 = vmul.f32 %v1542, %v1030
        %v1607 = vmul.f32 %v1543, %v1031
        %v1608 = vmul.f32 %v1544, %v1032
        %v1609 = vmul.f32 %v1545, %v1033
        %v1610 = vmul.f32 %v1546, %v1034
        %v1611 = vmul.f32 %v1547, %v1035
        %v1612 = vmul.f32 %v1548, %v1036
        %v1613 = vmul.f32 %v1549, %v1037
        %v1614 = vmul.f32 %v1550, %v1038
        %v1615 = vmul.f32 %v1551, %v1039
        %v1616 = vmul.f32 %v1552, %v1040
        %v1617 = vmul.f32 %v1553, %v1041
        %v1618 = vmul.f32 %v1554, %v1042
        %v1619 = vmul.f32 %v1555, %v1043
        %v1620 = vmul.f32 %v1556, %v1044
        %v1621 = vmul.f32 %v1557, %v1045
        %v1622 = vmul.f32 %v1558, %v1046
        %v1623 = vmul.f32 %v1559, %v1047
        %v1624 = vmul.f32 %v1560, %v1048
        %v1625 = vmul.f32 %v1561, %v1049
        %v1626 = vmul.f32 %v1562, %v1050
        %v1627 = vmul.f32 %v1563, %v1051
        %v1628 = vmul.f32 %v1564, %v1052
        %v1629 = vmul.f32 %v1565, %v1053
        %v1630 = vmul.f32 %v1566, %v1054
        %v1631 = vmul.f32 %v1567, %v1055
        %v1632 = vmul.f32 %v1568, %v1056
        %v1633 = vmul.f32 %v1569, %v1057
        %v1634 = vmul.f32 %v1570, %v1058
        %v1635 = vmul.f32 %v1571, %v1059
        %v1636 = vmul.f32 %v1572, %v1060
        %v1637 = vmul.f32 %v1573, %v1061
        %v1638 = vmul.f32 %v1574, %v1062
        %v1639 = vmul.f32 %v1575, %v1063
        %v1640 = vmul.f32 %v1576, %v1064
        %v1641 = vmul.f32 %v1577, %v1065
        %v1642 = vmul.f32 %v1578, %v1066
        %v1643 = vmul.f32 %v1579, %v1067
        %v1644 = vmul.f32 %v1580, %v1068
        %v1645 = vmul.f32 %v1581, %v1069
        %v1646 = vmul.f32 %v1582, %v1070
        %v1647 = vmul.f32 %v1583, %v1071
        %v1648 = vmul.f32 %v1584, %v1072
        %v1649 = vmul.f32 %v1585, %v1073
        %v1650 = vmul.f32 %v1586, %v1074
        %v1651 = vmul.f32 %v1587, %v1075
        %v1652 = vmul.f32 %v1588, %v1076
        %v1653 = vmul.f32 %v1589, %v1077
        %v1654 = vmul.f32 %v1590, %v1078
        %v1655 = vmul.f32 %v1591, %v1079
        %v1656 = vmul.f32 %v1592, %v1080
        %v1657 = vmul.f32 %v1593, %v1081
        %v1658 = vmul.f32 %v1594, %v1082
        %v1659 = vmul.f32 %v1595, %v1083
        %v1660 = vmul.f32 %v1596, %v1084
        %v1661 = vmul.f32 %v1597, %v1085
        %v1662 = vmul.f32 %v1598, %v1086
        %v1663 = vmul.f32 %v1599, %v1087
        %v1664 = vmul.f32 %v1600, %v1088
        %v1665 = vmul.f32 %v1601, %v1089
        %v1666 = vsub.f32 0.0, %v834
        %v1667 = vsub.f32 0.0, %v835
        %v1668 = vsub.f32 0.0, %v836
        %v1669 = vsub.f32 0.0, %v837
        %v1670 = vsub.f32 0.0, %v838
        %v1671 = vsub.f32 0.0, %v839
        %v1672 = vsub.f32 0.0, %v840
        %v1673 = vsub.f32 0.0, %v841
        %v1674 = vsub.f32 0.0, %v842
        %v1675 = vsub.f32 0.0, %v843
        %v1676 = vsub.f32 0.0, %v844
        %v1677 = vsub.f32 0.0, %v845
        %v1678 = vsub.f32 0.0, %v846
        %v1679 = vsub.f32 0.0, %v847
        %v1680 = vsub.f32 0.0, %v848
        %v1681 = vsub.f32 0.0, %v849
        %v1682 = vsub.f32 0.0, %v850
        %v1683 = vsub.f32 0.0, %v851
        %v1684 = vsub.f32 0.0, %v852
        %v1685 = vsub.f32 0.0, %v853
        %v1686 = vsub.f32 0.0, %v854
        %v1687 = vsub.f32 0.0, %v855
        %v1688 = vsub.f32 0.0, %v856
        %v1689 = vsub.f32 0.0, %v857
        %v1690 = vsub.f32 0.0, %v858
        %v1691 = vsub.f32 0.0, %v859
        %v1692 = vsub.f32 0.0, %v860
        %v1693 = vsub.f32 0.0, %v861
        %v1694 = vsub.f32 0.0, %v862
        %v1695 = vsub.f32 0.0, %v863
        %v1696 = vsub.f32 0.0, %v864
        %v1697 = vsub.f32 0.0, %v865
        %v1698 = vsub.f32 0.0, %v866
        %v1699 = vsub.f32 0.0, %v867
        %v1700 = vsub.f32 0.0, %v868
        %v1701 = vsub.f32 0.0, %v869
        %v1702 = vsub.f32 0.0, %v870
        %v1703 = vsub.f32 0.0, %v871
        %v1704 = vsub.f32 0.0, %v872
        %v1705 = vsub.f32 0.0, %v873
        %v1706 = vsub.f32 0.0, %v874
        %v1707 = vsub.f32 0.0, %v875
        %v1708 = vsub.f32 0.0, %v876
        %v1709 = vsub.f32 0.0, %v877
        %v1710 = vsub.f32 0.0, %v878
        %v1711 = vsub.f32 0.0, %v879
        %v1712 = vsub.f32 0.0, %v880
        %v1713 = vsub.f32 0.0, %v881
        %v1714 = vsub.f32 0.0, %v882
        %v1715 = vsub.f32 0.0, %v883
        %v1716 = vsub.f32 0.0, %v884
        %v1717 = vsub.f32 0.0, %v885
        %v1718 = vsub.f32 0.0, %v886
        %v1719 = vsub.f32 0.0, %v887
        %v1720 = vsub.f32 0.0, %v888
        %v1721 = vsub.f32 0.0, %v889
        %v1722 = vsub.f32 0.0, %v890
        %v1723 = vsub.f32 0.0, %v891
        %v1724 = vsub.f32 0.0, %v892
        %v1725 = vsub.f32 0.0, %v893
        %v1726 = vsub.f32 0.0, %v894
        %v1727 = vsub.f32 0.0, %v895
        %v1728 = vsub.f32 0.0, %v896
        %v1729 = vsub.f32 0.0, %v897
        %v1730 = vmul.f32 %v1666, %v834
        %v1731 = vmul.f32 %v1667, %v835
        %v1732 = vmul.f32 %v1668, %v836
        %v1733 = vmul.f32 %v1669, %v837
        %v1734 = vmul.f32 %v1670, %v838
        %v1735 = vmul.f32 %v1671, %v839
        %v1736 = vmul.f32 %v1672, %v840
        %v1737 = vmul.f32 %v1673, %v841
        %v1738 = vmul.f32 %v1674, %v842
        %v1739 = vmul.f32 %v1675, %v843
        %v1740 = vmul.f32 %v1676, %v844
        %v1741 = vmul.f32 %v1677, %v845
        %v1742 = vmul.f32 %v1678, %v846
        %v1743 = vmul.f32 %v1679, %v847
        %v1744 = vmul.f32 %v1680, %v848
        %v1745 = vmul.f32 %v1681, %v849
        %v1746 = vmul.f32 %v1682, %v850
        %v1747 = vmul.f32 %v1683, %v851
        %v1748 = vmul.f32 %v1684, %v852
        %v1749 = vmul.f32 %v1685, %v853
        %v1750 = vmul.f32 %v1686, %v854
        %v1751 = vmul.f32 %v1687, %v855
        %v1752 = vmul.f32 %v1688, %v856
        %v1753 = vmul.f32 %v1689, %v857
        %v1754 = vmul.f32 %v1690, %v858
        %v1755 = vmul.f32 %v1691, %v859
        %v1756 = vmul.f32 %v1692, %v860
        %v1757 = vmul.f32 %v1693, %v861
        %v1758 = vmul.f32 %v1694, %v862
        %v1759 = vmul.f32 %v1695, %v863
        %v1760 = vmul.f32 %v1696, %v864
        %v1761 = vmul.f32 %v1697, %v865
        %v1762 = vmul.f32 %v1698, %v866
        %v1763 = vmul.f32 %v1699, %v867
        %v1764 = vmul.f32 %v1700, %v868
        %v1765 = vmul.f32 %v1701, %v869
        %v1766 = vmul.f32 %v1702, %v870
        %v1767 = vmul.f32 %v1703, %v871
        %v1768 = vmul.f32 %v1704, %v872
        %v1769 = vmul.f32 %v1705, %v873
        %v1770 = vmul.f32 %v1706, %v874
        %v1771 = vmul.f32 %v1707, %v875
        %v1772 = vmul.f32 %v1708, %v876
        %v1773 = vmul.f32 %v1709, %v877
        %v1774 = vmul.f32 %v1710, %v878
        %v1775 = vmul.f32 %v1711, %v879
        %v1776 = vmul.f32 %v1712, %v880
        %v1777 = vmul.f32 %v1713, %v881
        %v1778 = vmul.f32 %v1714, %v882
        %v1779 = vmul.f32 %v1715, %v883
        %v1780 = vmul.f32 %v1716, %v884
        %v1781 = vmul.f32 %v1717, %v885
        %v1782 = vmul.f32 %v1718, %v886
        %v1783 = vmul.f32 %v1719, %v887
        %v1784 = vmul.f32 %v1720, %v888
        %v1785 = vmul.f32 %v1721, %v889
        %v1786 = vmul.f32 %v1722, %v890
        %v1787 = vmul.f32 %v1723, %v891
        %v1788 = vmul.f32 %v1724, %v892
        %v1789 = vmul.f32 %v1725, %v893
        %v1790 = vmul.f32 %v1726, %v894
        %v1791 = vmul.f32 %v1727, %v895
        %v1792 = vmul.f32 %v1728, %v896
        %v1793 = vmul.f32 %v1729, %v897
        %v1794 = vmul.f32 %v1730, 1.442695
        %v1795 = vpow.pop %v1794
        %v1796 = vmul.f32 %v1731, 1.442695
        %v1797 = vpow.pop %v1796
        %v1798 = vmul.f32 %v1732, 1.442695
        %v1799 = vpow.pop %v1798
        %v1800 = vmul.f32 %v1733, 1.442695
        %v1801 = vpow.pop %v1800
        %v1802 = vmul.f32 %v1734, 1.442695
        %v1803 = vpow.pop %v1802
        %v1804 = vmul.f32 %v1735, 1.442695
        %v1805 = vpow.pop %v1804
        %v1806 = vmul.f32 %v1736, 1.442695
        %v1807 = vpow.pop %v1806
        %v1808 = vmul.f32 %v1737, 1.442695
        %v1809 = vpow.pop %v1808
        %v1810 = vmul.f32 %v1738, 1.442695
        %v1811 = vpow.pop %v1810
        %v1812 = vmul.f32 %v1739, 1.442695
        %v1813 = vpow.pop %v1812
        %v1814 = vmul.f32 %v1740, 1.442695
        %v1815 = vpow.pop %v1814
        %v1816 = vmul.f32 %v1741, 1.442695
        %v1817 = vpow.pop %v1816
        %v1818 = vmul.f32 %v1742, 1.442695
        %v1819 = vpow.pop %v1818
        %v1820 = vmul.f32 %v1743, 1.442695
        %v1821 = vpow.pop %v1820
        %v1822 = vmul.f32 %v1744, 1.442695
        %v1823 = vpow.pop %v1822
        %v1824 = vmul.f32 %v1745, 1.442695
        %v1825 = vpow.pop %v1824
        %v1826 = vmul.f32 %v1746, 1.442695
        %v1827 = vpow.pop %v1826
        %v1828 = vmul.f32 %v1747, 1.442695
        %v1829 = vpow.pop %v1828
        %v1830 = vmul.f32 %v1748, 1.442695
        %v1831 = vpow.pop %v1830
        %v1832 = vmul.f32 %v1749, 1.442695
        %v1833 = vpow.pop %v1832
        %v1834 = vmul.f32 %v1750, 1.442695
        %v1835 = vpow.pop %v1834
        %v1836 = vmul.f32 %v1751, 1.442695
        %v1837 = vpow.pop %v1836
        %v1838 = vmul.f32 %v1752, 1.442695
        %v1839 = vpow.pop %v1838
        %v1840 = vmul.f32 %v1753, 1.442695
        %v1841 = vpow.pop %v1840
        %v1842 = vmul.f32 %v1754, 1.442695
        %v1843 = vpow.pop %v1842
        %v1844 = vmul.f32 %v1755, 1.442695
        %v1845 = vpow.pop %v1844
        %v1846 = vmul.f32 %v1756, 1.442695
        %v1847 = vpow.pop %v1846
        %v1848 = vmul.f32 %v1757, 1.442695
        %v1849 = vpow.pop %v1848
        %v1850 = vmul.f32 %v1758, 1.442695
        %v1851 = vpow.pop %v1850
        %v1852 = vmul.f32 %v1759, 1.442695
        %v1853 = vpow.pop %v1852
        %v1854 = vmul.f32 %v1760, 1.442695
        %v1855 = vpow.pop %v1854
        %v1856 = vmul.f32 %v1761, 1.442695
        %v1857 = vpow.pop %v1856
        %v1858 = vmul.f32 %v1762, 1.442695
        %v1859 = vpow.pop %v1858
        %v1860 = vmul.f32 %v1763, 1.442695
        %v1861 = vpow.pop %v1860
        %v1862 = vmul.f32 %v1764, 1.442695
        %v1863 = vpow.pop %v1862
        %v1864 = vmul.f32 %v1765, 1.442695
        %v1865 = vpow.pop %v1864
        %v1866 = vmul.f32 %v1766, 1.442695
        %v1867 = vpow.pop %v1866
        %v1868 = vmul.f32 %v1767, 1.442695
        %v1869 = vpow.pop %v1868
        %v1870 = vmul.f32 %v1768, 1.442695
        %v1871 = vpow.pop %v1870
        %v1872 = vmul.f32 %v1769, 1.442695
        %v1873 = vpow.pop %v1872
        %v1874 = vmul.f32 %v1770, 1.442695
        %v1875 = vpow.pop %v1874
        %v1876 = vmul.f32 %v1771, 1.442695
        %v1877 = vpow.pop %v1876
        %v1878 = vmul.f32 %v1772, 1.442695
        %v1879 = vpow.pop %v1878
        %v1880 = vmul.f32 %v1773, 1.442695
        %v1881 = vpow.pop %v1880
        %v1882 = vmul.f32 %v1774, 1.442695
        %v1883 = vpow.pop %v1882
        %v1884 = vmul.f32 %v1775, 1.442695
        %v1885 = vpow.pop %v1884
        %v1886 = vmul.f32 %v1776, 1.442695
        %v1887 = vpow.pop %v1886
        %v1888 = vmul.f32 %v1777, 1.442695
        %v1889 = vpow.pop %v1888
        %v1890 = vmul.f32 %v1778, 1.442695
        %v1891 = vpow.pop %v1890
        %v1892 = vmul.f32 %v1779, 1.442695
        %v1893 = vpow.pop %v1892
        %v1894 = vmul.f32 %v1780, 1.442695
        %v1895 = vpow.pop %v1894
        %v1896 = vmul.f32 %v1781, 1.442695
        %v1897 = vpow.pop %v1896
        %v1898 = vmul.f32 %v1782, 1.442695
        %v1899 = vpow.pop %v1898
        %v1900 = vmul.f32 %v1783, 1.442695
        %v1901 = vpow.pop %v1900
        %v1902 = vmul.f32 %v1784, 1.442695
        %v1903 = vpow.pop %v1902
        %v1904 = vmul.f32 %v1785, 1.442695
        %v1905 = vpow.pop %v1904
        %v1906 = vmul.f32 %v1786, 1.442695
        %v1907 = vpow.pop %v1906
        %v1908 = vmul.f32 %v1787, 1.442695
        %v1909 = vpow.pop %v1908
        %v1910 = vmul.f32 %v1788, 1.442695
        %v1911 = vpow.pop %v1910
        %v1912 = vmul.f32 %v1789, 1.442695
        %v1913 = vpow.pop %v1912
        %v1914 = vmul.f32 %v1790, 1.442695
        %v1915 = vpow.pop %v1914
        %v1916 = vmul.f32 %v1791, 1.442695
        %v1917 = vpow.pop %v1916
        %v1918 = vmul.f32 %v1792, 1.442695
        %v1919 = vpow.pop %v1918
        %v1920 = vmul.f32 %v1793, 1.442695
        %v1921 = vpow.pop %v1920
        %v1922 = vmul.f32 %v1602, %v1795
        %v1923 = vmul.f32 %v1603, %v1797
        %v1924 = vmul.f32 %v1604, %v1799
        %v1925 = vmul.f32 %v1605, %v1801
        %v1926 = vmul.f32 %v1606, %v1803
        %v1927 = vmul.f32 %v1607, %v1805
        %v1928 = vmul.f32 %v1608, %v1807
        %v1929 = vmul.f32 %v1609, %v1809
        %v1930 = vmul.f32 %v1610, %v1811
        %v1931 = vmul.f32 %v1611, %v1813
        %v1932 = vmul.f32 %v1612, %v1815
        %v1933 = vmul.f32 %v1613, %v1817
        %v1934 = vmul.f32 %v1614, %v1819
        %v1935 = vmul.f32 %v1615, %v1821
        %v1936 = vmul.f32 %v1616, %v1823
        %v1937 = vmul.f32 %v1617, %v1825
        %v1938 = vmul.f32 %v1618, %v1827
        %v1939 = vmul.f32 %v1619, %v1829
        %v1940 = vmul.f32 %v1620, %v1831
        %v1941 = vmul.f32 %v1621, %v1833
        %v1942 = vmul.f32 %v1622, %v1835
        %v1943 = vmul.f32 %v1623, %v1837
        %v1944 = vmul.f32 %v1624, %v1839
        %v1945 = vmul.f32 %v1625, %v1841
        %v1946 = vmul.f32 %v1626, %v1843
        %v1947 = vmul.f32 %v1627, %v1845
        %v1948 = vmul.f32 %v1628, %v1847
        %v1949 = vmul.f32 %v1629, %v1849
        %v1950 = vmul.f32 %v1630, %v1851
        %v1951 = vmul.f32 %v1631, %v1853
        %v1952 = vmul.f32 %v1632, %v1855
        %v1953 = vmul.f32 %v1633, %v1857
        %v1954 = vmul.f32 %v1634, %v1859
        %v1955 = vmul.f32 %v1635, %v1861
        %v1956 = vmul.f32 %v1636, %v1863
        %v1957 = vmul.f32 %v1637, %v1865
        %v1958 = vmul.f32 %v1638, %v1867
        %v1959 = vmul.f32 %v1639, %v1869
        %v1960 = vmul.f32 %v1640, %v1871
        %v1961 = vmul.f32 %v1641, %v1873
        %v1962 = vmul.f32 %v1642, %v1875
        %v1963 = vmul.f32 %v1643, %v1877
        %v1964 = vmul.f32 %v1644, %v1879
        %v1965 = vmul.f32 %v1645, %v1881
        %v1966 = vmul.f32 %v1646, %v1883
        %v1967 = vmul.f32 %v1647, %v1885
        %v1968 = vmul.f32 %v1648, %v1887
        %v1969 = vmul.f32 %v1649, %v1889
        %v1970 = vmul.f32 %v1650, %v1891
        %v1971 = vmul.f32 %v1651, %v1893
        %v1972 = vmul.f32 %v1652, %v1895
        %v1973 = vmul.f32 %v1653, %v1897
        %v1974 = vmul.f32 %v1654, %v1899
        %v1975 = vmul.f32 %v1655, %v1901
        %v1976 = vmul.f32 %v1656, %v1903
        %v1977 = vmul.f32 %v1657, %v1905
        %v1978 = vmul.f32 %v1658, %v1907
        %v1979 = vmul.f32 %v1659, %v1909
        %v1980 = vmul.f32 %v1660, %v1911
        %v1981 = vmul.f32 %v1661, %v1913
        %v1982 = vmul.f32 %v1662, %v1915
        %v1983 = vmul.f32 %v1663, %v1917
        %v1984 = vmul.f32 %v1664, %v1919
        %v1985 = vmul.f32 %v1665, %v1921
        %v1986 = vsub.f32 1.0, %v1922
        %v1987 = vsub.f32 1.0, %v1923
        %v1988 = vsub.f32 1.0, %v1924
        %v1989 = vsub.f32 1.0, %v1925
        %v1990 = vsub.f32 1.0, %v1926
        %v1991 = vsub.f32 1.0, %v1927
        %v1992 = vsub.f32 1.0, %v1928
        %v1993 = vsub.f32 1.0, %v1929
        %v1994 = vsub.f32 1.0, %v1930
        %v1995 = vsub.f32 1.0, %v1931
        %v1996 = vsub.f32 1.0, %v1932
        %v1997 = vsub.f32 1.0, %v1933
        %v1998 = vsub.f32 1.0, %v1934
        %v1999 = vsub.f32 1.0, %v1935
        %v2000 = vsub.f32 1.0, %v1936
        %v2001 = vsub.f32 1.0, %v1937
        %v2002 = vsub.f32 1.0, %v1938
        %v2003 = vsub.f32 1.0, %v1939
        %v2004 = vsub.f32 1.0, %v1940
        %v2005 = vsub.f32 1.0, %v1941
        %v2006 = vsub.f32 1.0, %v1942
        %v2007 = vsub.f32 1.0, %v1943
        %v2008 = vsub.f32 1.0, %v1944
        %v2009 = vsub.f32 1.0, %v1945
        %v2010 = vsub.f32 1.0, %v1946
        %v2011 = vsub.f32 1.0, %v1947
        %v2012 = vsub.f32 1.0, %v1948
        %v2013 = vsub.f32 1.0, %v1949
        %v2014 = vsub.f32 1.0, %v1950
        %v2015 = vsub.f32 1.0, %v1951
        %v2016 = vsub.f32 1.0, %v1952
        %v2017 = vsub.f32 1.0, %v1953
        %v2018 = vsub.f32 1.0, %v1954
        %v2019 = vsub.f32 1.0, %v1955
        %v2020 = vsub.f32 1.0, %v1956
        %v2021 = vsub.f32 1.0, %v1957
        %v2022 = vsub.f32 1.0, %v1958
        %v2023 = vsub.f32 1.0, %v1959
        %v2024 = vsub.f32 1.0, %v1960
        %v2025 = vsub.f32 1.0, %v1961
        %v2026 = vsub.f32 1.0, %v1962
        %v2027 = vsub.f32 1.0, %v1963
        %v2028 = vsub.f32 1.0, %v1964
        %v2029 = vsub.f32 1.0, %v1965
        %v2030 = vsub.f32 1.0, %v1966
        %v2031 = vsub.f32 1.0, %v1967
        %v2032 = vsub.f32 1.0, %v1968
        %v2033 = vsub.f32 1.0, %v1969
        %v2034 = vsub.f32 1.0, %v1970
        %v2035 = vsub.f32 1.0, %v1971
        %v2036 = vsub.f32 1.0, %v1972
        %v2037 = vsub.f32 1.0, %v1973
        %v2038 = vsub.f32 1.0, %v1974
        %v2039 = vsub.f32 1.0, %v1975
        %v2040 = vsub.f32 1.0, %v1976
        %v2041 = vsub.f32 1.0, %v1977
        %v2042 = vsub.f32 1.0, %v1978
        %v2043 = vsub.f32 1.0, %v1979
        %v2044 = vsub.f32 1.0, %v1980
        %v2045 = vsub.f32 1.0, %v1981
        %v2046 = vsub.f32 1.0, %v1982
        %v2047 = vsub.f32 1.0, %v1983
        %v2048 = vsub.f32 1.0, %v1984
        %v2049 = vsub.f32 1.0, %v1985
        %vm2050 = vcmp.ge.f32.partialorder %v770, 0.0
        %vm2051 = vcmp.ge.f32.partialorder %v771, 0.0
        %vm2052 = vcmp.ge.f32.partialorder %v772, 0.0
        %vm2053 = vcmp.ge.f32.partialorder %v773, 0.0
        %vm2054 = vcmp.ge.f32.partialorder %v774, 0.0
        %vm2055 = vcmp.ge.f32.partialorder %v775, 0.0
        %vm2056 = vcmp.ge.f32.partialorder %v776, 0.0
        %vm2057 = vcmp.ge.f32.partialorder %v777, 0.0
        %vm2058 = vcmp.ge.f32.partialorder %v778, 0.0
        %vm2059 = vcmp.ge.f32.partialorder %v779, 0.0
        %vm2060 = vcmp.ge.f32.partialorder %v780, 0.0
        %vm2061 = vcmp.ge.f32.partialorder %v781, 0.0
        %vm2062 = vcmp.ge.f32.partialorder %v782, 0.0
        %vm2063 = vcmp.ge.f32.partialorder %v783, 0.0
        %vm2064 = vcmp.ge.f32.partialorder %v784, 0.0
        %vm2065 = vcmp.ge.f32.partialorder %v785, 0.0
        %vm2066 = vcmp.ge.f32.partialorder %v786, 0.0
        %vm2067 = vcmp.ge.f32.partialorder %v787, 0.0
        %vm2068 = vcmp.ge.f32.partialorder %v788, 0.0
        %vm2069 = vcmp.ge.f32.partialorder %v789, 0.0
        %vm2070 = vcmp.ge.f32.partialorder %v790, 0.0
        %vm2071 = vcmp.ge.f32.partialorder %v791, 0.0
        %vm2072 = vcmp.ge.f32.partialorder %v792, 0.0
        %vm2073 = vcmp.ge.f32.partialorder %v793, 0.0
        %vm2074 = vcmp.ge.f32.partialorder %v794, 0.0
        %vm2075 = vcmp.ge.f32.partialorder %v795, 0.0
        %vm2076 = vcmp.ge.f32.partialorder %v796, 0.0
        %vm2077 = vcmp.ge.f32.partialorder %v797, 0.0
        %vm2078 = vcmp.ge.f32.partialorder %v798, 0.0
        %vm2079 = vcmp.ge.f32.partialorder %v799, 0.0
        %vm2080 = vcmp.ge.f32.partialorder %v800, 0.0
        %vm2081 = vcmp.ge.f32.partialorder %v801, 0.0
        %vm2082 = vcmp.ge.f32.partialorder %v802, 0.0
        %vm2083 = vcmp.ge.f32.partialorder %v803, 0.0
        %vm2084 = vcmp.ge.f32.partialorder %v804, 0.0
        %vm2085 = vcmp.ge.f32.partialorder %v805, 0.0
        %vm2086 = vcmp.ge.f32.partialorder %v806, 0.0
        %vm2087 = vcmp.ge.f32.partialorder %v807, 0.0
        %vm2088 = vcmp.ge.f32.partialorder %v808, 0.0
        %vm2089 = vcmp.ge.f32.partialorder %v809, 0.0
        %vm2090 = vcmp.ge.f32.partialorder %v810, 0.0
        %vm2091 = vcmp.ge.f32.partialorder %v811, 0.0
        %vm2092 = vcmp.ge.f32.partialorder %v812, 0.0
        %vm2093 = vcmp.ge.f32.partialorder %v813, 0.0
        %vm2094 = vcmp.ge.f32.partialorder %v814, 0.0
        %vm2095 = vcmp.ge.f32.partialorder %v815, 0.0
        %vm2096 = vcmp.ge.f32.partialorder %v816, 0.0
        %vm2097 = vcmp.ge.f32.partialorder %v817, 0.0
        %vm2098 = vcmp.ge.f32.partialorder %v818, 0.0
        %vm2099 = vcmp.ge.f32.partialorder %v819, 0.0
        %vm2100 = vcmp.ge.f32.partialorder %v820, 0.0
        %vm2101 = vcmp.ge.f32.partialorder %v821, 0.0
        %vm2102 = vcmp.ge.f32.partialorder %v822, 0.0
        %vm2103 = vcmp.ge.f32.partialorder %v823, 0.0
        %vm2104 = vcmp.ge.f32.partialorder %v824, 0.0
        %vm2105 = vcmp.ge.f32.partialorder %v825, 0.0
        %vm2106 = vcmp.ge.f32.partialorder %v826, 0.0
        %vm2107 = vcmp.ge.f32.partialorder %v827, 0.0
        %vm2108 = vcmp.ge.f32.partialorder %v828, 0.0
        %vm2109 = vcmp.ge.f32.partialorder %v829, 0.0
        %vm2110 = vcmp.ge.f32.partialorder %v830, 0.0
        %vm2111 = vcmp.ge.f32.partialorder %v831, 0.0
        %vm2112 = vcmp.ge.f32.partialorder %v832, 0.0
        %vm2113 = vcmp.ge.f32.partialorder %v833, 0.0
        %v2114 = vsub.f32 0.0, %v1986
        %v2115 = vsub.f32 0.0, %v1987
        %v2116 = vsub.f32 0.0, %v1988
        %v2117 = vsub.f32 0.0, %v1989
        %v2118 = vsub.f32 0.0, %v1990
        %v2119 = vsub.f32 0.0, %v1991
        %v2120 = vsub.f32 0.0, %v1992
        %v2121 = vsub.f32 0.0, %v1993
        %v2122 = vsub.f32 0.0, %v1994
        %v2123 = vsub.f32 0.0, %v1995
        %v2124 = vsub.f32 0.0, %v1996
        %v2125 = vsub.f32 0.0, %v1997
        %v2126 = vsub.f32 0.0, %v1998
        %v2127 = vsub.f32 0.0, %v1999
        %v2128 = vsub.f32 0.0, %v2000
        %v2129 = vsub.f32 0.0, %v2001
        %v2130 = vsub.f32 0.0, %v2002
        %v2131 = vsub.f32 0.0, %v2003
        %v2132 = vsub.f32 0.0, %v2004
        %v2133 = vsub.f32 0.0, %v2005
        %v2134 = vsub.f32 0.0, %v2006
        %v2135 = vsub.f32 0.0, %v2007
        %v2136 = vsub.f32 0.0, %v2008
        %v2137 = vsub.f32 0.0, %v2009
        %v2138 = vsub.f32 0.0, %v2010
        %v2139 = vsub.f32 0.0, %v2011
        %v2140 = vsub.f32 0.0, %v2012
        %v2141 = vsub.f32 0.0, %v2013
        %v2142 = vsub.f32 0.0, %v2014
        %v2143 = vsub.f32 0.0, %v2015
        %v2144 = vsub.f32 0.0, %v2016
        %v2145 = vsub.f32 0.0, %v2017
        %v2146 = vsub.f32 0.0, %v2018
        %v2147 = vsub.f32 0.0, %v2019
        %v2148 = vsub.f32 0.0, %v2020
        %v2149 = vsub.f32 0.0, %v2021
        %v2150 = vsub.f32 0.0, %v2022
        %v2151 = vsub.f32 0.0, %v2023
        %v2152 = vsub.f32 0.0, %v2024
        %v2153 = vsub.f32 0.0, %v2025
        %v2154 = vsub.f32 0.0, %v2026
        %v2155 = vsub.f32 0.0, %v2027
        %v2156 = vsub.f32 0.0, %v2028
        %v2157 = vsub.f32 0.0, %v2029
        %v2158 = vsub.f32 0.0, %v2030
        %v2159 = vsub.f32 0.0, %v2031
        %v2160 = vsub.f32 0.0, %v2032
        %v2161 = vsub.f32 0.0, %v2033
        %v2162 = vsub.f32 0.0, %v2034
        %v2163 = vsub.f32 0.0, %v2035
        %v2164 = vsub.f32 0.0, %v2036
        %v2165 = vsub.f32 0.0, %v2037
        %v2166 = vsub.f32 0.0, %v2038
        %v2167 = vsub.f32 0.0, %v2039
        %v2168 = vsub.f32 0.0, %v2040
        %v2169 = vsub.f32 0.0, %v2041
        %v2170 = vsub.f32 0.0, %v2042
        %v2171 = vsub.f32 0.0, %v2043
        %v2172 = vsub.f32 0.0, %v2044
        %v2173 = vsub.f32 0.0, %v2045
        %v2174 = vsub.f32 0.0, %v2046
        %v2175 = vsub.f32 0.0, %v2047
        %v2176 = vsub.f32 0.0, %v2048
        %v2177 = vsub.f32 0.0, %v2049
        %v2178 = vsel %vm2050, %v1986, %v2114
        %v2179 = vsel %vm2051, %v1987, %v2115
        %v2180 = vsel %vm2052, %v1988, %v2116
        %v2181 = vsel %vm2053, %v1989, %v2117
        %v2182 = vsel %vm2054, %v1990, %v2118
        %v2183 = vsel %vm2055, %v1991, %v2119
        %v2184 = vsel %vm2056, %v1992, %v2120
        %v2185 = vsel %vm2057, %v1993, %v2121
        %v2186 = vsel %vm2058, %v1994, %v2122
        %v2187 = vsel %vm2059, %v1995, %v2123
        %v2188 = vsel %vm2060, %v1996, %v2124
        %v2189 = vsel %vm2061, %v1997, %v2125
        %v2190 = vsel %vm2062, %v1998, %v2126
        %v2191 = vsel %vm2063, %v1999, %v2127
        %v2192 = vsel %vm2064, %v2000, %v2128
        %v2193 = vsel %vm2065, %v2001, %v2129
        %v2194 = vsel %vm2066, %v2002, %v2130
        %v2195 = vsel %vm2067, %v2003, %v2131
        %v2196 = vsel %vm2068, %v2004, %v2132
        %v2197 = vsel %vm2069, %v2005, %v2133
        %v2198 = vsel %vm2070, %v2006, %v2134
        %v2199 = vsel %vm2071, %v2007, %v2135
        %v2200 = vsel %vm2072, %v2008, %v2136
        %v2201 = vsel %vm2073, %v2009, %v2137
        %v2202 = vsel %vm2074, %v2010, %v2138
        %v2203 = vsel %vm2075, %v2011, %v2139
        %v2204 = vsel %vm2076, %v2012, %v2140
        %v2205 = vsel %vm2077, %v2013, %v2141
        %v2206 = vsel %vm2078, %v2014, %v2142
        %v2207 = vsel %vm2079, %v2015, %v2143
        %v2208 = vsel %vm2080, %v2016, %v2144
        %v2209 = vsel %vm2081, %v2017, %v2145
        %v2210 = vsel %vm2082, %v2018, %v2146
        %v2211 = vsel %vm2083, %v2019, %v2147
        %v2212 = vsel %vm2084, %v2020, %v2148
        %v2213 = vsel %vm2085, %v2021, %v2149
        %v2214 = vsel %vm2086, %v2022, %v2150
        %v2215 = vsel %vm2087, %v2023, %v2151
        %v2216 = vsel %vm2088, %v2024, %v2152
        %v2217 = vsel %vm2089, %v2025, %v2153
        %v2218 = vsel %vm2090, %v2026, %v2154
        %v2219 = vsel %vm2091, %v2027, %v2155
        %v2220 = vsel %vm2092, %v2028, %v2156
        %v2221 = vsel %vm2093, %v2029, %v2157
        %v2222 = vsel %vm2094, %v2030, %v2158
        %v2223 = vsel %vm2095, %v2031, %v2159
        %v2224 = vsel %vm2096, %v2032, %v2160
        %v2225 = vsel %vm2097, %v2033, %v2161
        %v2226 = vsel %vm2098, %v2034, %v2162
        %v2227 = vsel %vm2099, %v2035, %v2163
        %v2228 = vsel %vm2100, %v2036, %v2164
        %v2229 = vsel %vm2101, %v2037, %v2165
        %v2230 = vsel %vm2102, %v2038, %v2166
        %v2231 = vsel %vm2103, %v2039, %v2167
        %v2232 = vsel %vm2104, %v2040, %v2168
        %v2233 = vsel %vm2105, %v2041, %v2169
        %v2234 = vsel %vm2106, %v2042, %v2170
        %v2235 = vsel %vm2107, %v2043, %v2171
        %v2236 = vsel %vm2108, %v2044, %v2172
        %v2237 = vsel %vm2109, %v2045, %v2173
        %v2238 = vsel %vm2110, %v2046, %v2174
        %v2239 = vsel %vm2111, %v2047, %v2175
        %v2240 = vsel %vm2112, %v2048, %v2176
        %v2241 = vsel %vm2113, %v2049, %v2177
        %v2242 = vadd.f32 %v2178, 1.0
        %v2243 = vadd.f32 %v2179, 1.0
        %v2244 = vadd.f32 %v2180, 1.0
        %v2245 = vadd.f32 %v2181, 1.0
        %v2246 = vadd.f32 %v2182, 1.0
        %v2247 = vadd.f32 %v2183, 1.0
        %v2248 = vadd.f32 %v2184, 1.0
        %v2249 = vadd.f32 %v2185, 1.0
        %v2250 = vadd.f32 %v2186, 1.0
        %v2251 = vadd.f32 %v2187, 1.0
        %v2252 = vadd.f32 %v2188, 1.0
        %v2253 = vadd.f32 %v2189, 1.0
        %v2254 = vadd.f32 %v2190, 1.0
        %v2255 = vadd.f32 %v2191, 1.0
        %v2256 = vadd.f32 %v2192, 1.0
        %v2257 = vadd.f32 %v2193, 1.0
        %v2258 = vadd.f32 %v2194, 1.0
        %v2259 = vadd.f32 %v2195, 1.0
        %v2260 = vadd.f32 %v2196, 1.0
        %v2261 = vadd.f32 %v2197, 1.0
        %v2262 = vadd.f32 %v2198, 1.0
        %v2263 = vadd.f32 %v2199, 1.0
        %v2264 = vadd.f32 %v2200, 1.0
        %v2265 = vadd.f32 %v2201, 1.0
        %v2266 = vadd.f32 %v2202, 1.0
        %v2267 = vadd.f32 %v2203, 1.0
        %v2268 = vadd.f32 %v2204, 1.0
        %v2269 = vadd.f32 %v2205, 1.0
        %v2270 = vadd.f32 %v2206, 1.0
        %v2271 = vadd.f32 %v2207, 1.0
        %v2272 = vadd.f32 %v2208, 1.0
        %v2273 = vadd.f32 %v2209, 1.0
        %v2274 = vadd.f32 %v2210, 1.0
        %v2275 = vadd.f32 %v2211, 1.0
        %v2276 = vadd.f32 %v2212, 1.0
        %v2277 = vadd.f32 %v2213, 1.0
        %v2278 = vadd.f32 %v2214, 1.0
        %v2279 = vadd.f32 %v2215, 1.0
        %v2280 = vadd.f32 %v2216, 1.0
        %v2281 = vadd.f32 %v2217, 1.0
        %v2282 = vadd.f32 %v2218, 1.0
        %v2283 = vadd.f32 %v2219, 1.0
        %v2284 = vadd.f32 %v2220, 1.0
        %v2285 = vadd.f32 %v2221, 1.0
        %v2286 = vadd.f32 %v2222, 1.0
        %v2287 = vadd.f32 %v2223, 1.0
        %v2288 = vadd.f32 %v2224, 1.0
        %v2289 = vadd.f32 %v2225, 1.0
        %v2290 = vadd.f32 %v2226, 1.0
        %v2291 = vadd.f32 %v2227, 1.0
        %v2292 = vadd.f32 %v2228, 1.0
        %v2293 = vadd.f32 %v2229, 1.0
        %v2294 = vadd.f32 %v2230, 1.0
        %v2295 = vadd.f32 %v2231, 1.0
        %v2296 = vadd.f32 %v2232, 1.0
        %v2297 = vadd.f32 %v2233, 1.0
        %v2298 = vadd.f32 %v2234, 1.0
        %v2299 = vadd.f32 %v2235, 1.0
        %v2300 = vadd.f32 %v2236, 1.0
        %v2301 = vadd.f32 %v2237, 1.0
        %v2302 = vadd.f32 %v2238, 1.0
        %v2303 = vadd.f32 %v2239, 1.0
        %v2304 = vadd.f32 %v2240, 1.0
        %v2305 = vadd.f32 %v2241, 1.0
        %v2306 = vmul.f32 %v706, %v2242
        %v2307 = vmul.f32 %v707, %v2243
        %v2308 = vmul.f32 %v708, %v2244
        %v2309 = vmul.f32 %v709, %v2245
        %v2310 = vmul.f32 %v710, %v2246
        %v2311 = vmul.f32 %v711, %v2247
        %v2312 = vmul.f32 %v712, %v2248
        %v2313 = vmul.f32 %v713, %v2249
        %v2314 = vmul.f32 %v714, %v2250
        %v2315 = vmul.f32 %v715, %v2251
        %v2316 = vmul.f32 %v716, %v2252
        %v2317 = vmul.f32 %v717, %v2253
        %v2318 = vmul.f32 %v718, %v2254
        %v2319 = vmul.f32 %v719, %v2255
        %v2320 = vmul.f32 %v720, %v2256
        %v2321 = vmul.f32 %v721, %v2257
        %v2322 = vmul.f32 %v722, %v2258
        %v2323 = vmul.f32 %v723, %v2259
        %v2324 = vmul.f32 %v724, %v2260
        %v2325 = vmul.f32 %v725, %v2261
        %v2326 = vmul.f32 %v726, %v2262
        %v2327 = vmul.f32 %v727, %v2263
        %v2328 = vmul.f32 %v728, %v2264
        %v2329 = vmul.f32 %v729, %v2265
        %v2330 = vmul.f32 %v730, %v2266
        %v2331 = vmul.f32 %v731, %v2267
        %v2332 = vmul.f32 %v732, %v2268
        %v2333 = vmul.f32 %v733, %v2269
        %v2334 = vmul.f32 %v734, %v2270
        %v2335 = vmul.f32 %v735, %v2271
        %v2336 = vmul.f32 %v736, %v2272
        %v2337 = vmul.f32 %v737, %v2273
        %v2338 = vmul.f32 %v738, %v2274
        %v2339 = vmul.f32 %v739, %v2275
        %v2340 = vmul.f32 %v740, %v2276
        %v2341 = vmul.f32 %v741, %v2277
        %v2342 = vmul.f32 %v742, %v2278
        %v2343 = vmul.f32 %v743, %v2279
        %v2344 = vmul.f32 %v744, %v2280
        %v2345 = vmul.f32 %v745, %v2281
        %v2346 = vmul.f32 %v746, %v2282
        %v2347 = vmul.f32 %v747, %v2283
        %v2348 = vmul.f32 %v748, %v2284
        %v2349 = vmul.f32 %v749, %v2285
        %v2350 = vmul.f32 %v750, %v2286
        %v2351 = vmul.f32 %v751, %v2287
        %v2352 = vmul.f32 %v752, %v2288
        %v2353 = vmul.f32 %v753, %v2289
        %v2354 = vmul.f32 %v754, %v2290
        %v2355 = vmul.f32 %v755, %v2291
        %v2356 = vmul.f32 %v756, %v2292
        %v2357 = vmul.f32 %v757, %v2293
        %v2358 = vmul.f32 %v758, %v2294
        %v2359 = vmul.f32 %v759, %v2295
        %v2360 = vmul.f32 %v760, %v2296
        %v2361 = vmul.f32 %v761, %v2297
        %v2362 = vmul.f32 %v762, %v2298
        %v2363 = vmul.f32 %v763, %v2299
        %v2364 = vmul.f32 %v764, %v2300
        %v2365 = vmul.f32 %v765, %v2301
        %v2366 = vmul.f32 %v766, %v2302
        %v2367 = vmul.f32 %v767, %v2303
        %v2368 = vmul.f32 %v768, %v2304
        %v2369 = vmul.f32 %v769, %v2305
        %v2370 = vld [vmem:[#allocation2] sm:$0xff]
        %v2371 = vld [vmem:[#allocation2 + $0x8] sm:$0xff]
        %v2372 = vld [vmem:[#allocation2 + $0x10] sm:$0xff]
        %v2373 = vld [vmem:[#allocation2 + $0x18] sm:$0xff]
        %v2374 = vld [vmem:[#allocation2 + $0x20] sm:$0xff]
        %v2375 = vld [vmem:[#allocation2 + $0x28] sm:$0xff]
        %v2376 = vld [vmem:[#allocation2 + $0x30] sm:$0xff]
        %v2377 = vld [vmem:[#allocation2 + $0x38] sm:$0xff]
        %v2378 = vld [vmem:[#allocation2 + $0x40] sm:$0xff]
        %v2379 = vld [vmem:[#allocation2 + $0x48] sm:$0xff]
        %v2380 = vld [vmem:[#allocation2 + $0x50] sm:$0xff]
        %v2381 = vld [vmem:[#allocation2 + $0x58] sm:$0xff]
        %v2382 = vld [vmem:[#allocation2 + $0x60] sm:$0xff]
        %v2383 = vld [vmem:[#allocation2 + $0x68] sm:$0xff]
        %v2384 = vld [vmem:[#allocation2 + $0x70] sm:$0xff]
        %v2385 = vld [vmem:[#allocation2 + $0x78] sm:$0xff]
        %v2386 = vld [vmem:[#allocation2 + $0x80] sm:$0xff]
        %v2387 = vld [vmem:[#allocation2 + $0x88] sm:$0xff]
        %v2388 = vld [vmem:[#allocation2 + $0x90] sm:$0xff]
        %v2389 = vld [vmem:[#allocation2 + $0x98] sm:$0xff]
        %v2390 = vld [vmem:[#allocation2 + $0xa0] sm:$0xff]
        %v2391 = vld [vmem:[#allocation2 + $0xa8] sm:$0xff]
        %v2392 = vld [vmem:[#allocation2 + $0xb0] sm:$0xff]
        %v2393 = vld [vmem:[#allocation2 + $0xb8] sm:$0xff]
        %v2394 = vld [vmem:[#allocation2 + $0xc0] sm:$0xff]
        %v2395 = vld [vmem:[#allocation2 + $0xc8] sm:$0xff]
        %v2396 = vld [vmem:[#allocation2 + $0xd0] sm:$0xff]
        %v2397 = vld [vmem:[#allocation2 + $0xd8] sm:$0xff]
        %v2398 = vld [vmem:[#allocation2 + $0xe0] sm:$0xff]
        %v2399 = vld [vmem:[#allocation2 + $0xe8] sm:$0xff]
        %v2400 = vld [vmem:[#allocation2 + $0xf0] sm:$0xff]
        %v2401 = vld [vmem:[#allocation2 + $0xf8] sm:$0xff]
        %v2402 = vld [vmem:[#allocation8] sm:$0xff]
        %v2403 = vld [vmem:[#allocation8 + $0x8] sm:$0xff]
        %v2404 = vld [vmem:[#allocation8 + $0x10] sm:$0xff]
        %v2405 = vld [vmem:[#allocation8 + $0x18] sm:$0xff]
        %v2406 = vld [vmem:[#allocation8 + $0x20] sm:$0xff]
        %v2407 = vld [vmem:[#allocation8 + $0x28] sm:$0xff]
        %v2408 = vld [vmem:[#allocation8 + $0x30] sm:$0xff]
        %v2409 = vld [vmem:[#allocation8 + $0x38] sm:$0xff]
        %v2410 = vld [vmem:[#allocation8 + $0x40] sm:$0xff]
        %v2411 = vld [vmem:[#allocation8 + $0x48] sm:$0xff]
        %v2412 = vld [vmem:[#allocation8 + $0x50] sm:$0xff]
        %v2413 = vld [vmem:[#allocation8 + $0x58] sm:$0xff]
        %v2414 = vld [vmem:[#allocation8 + $0x60] sm:$0xff]
        %v2415 = vld [vmem:[#allocation8 + $0x68] sm:$0xff]
        %v2416 = vld [vmem:[#allocation8 + $0x70] sm:$0xff]
        %v2417 = vld [vmem:[#allocation8 + $0x78] sm:$0xff]
        %v2418 = vld [vmem:[#allocation8 + $0x80] sm:$0xff]
        %v2419 = vld [vmem:[#allocation8 + $0x88] sm:$0xff]
        %v2420 = vld [vmem:[#allocation8 + $0x90] sm:$0xff]
        %v2421 = vld [vmem:[#allocation8 + $0x98] sm:$0xff]
        %v2422 = vld [vmem:[#allocation8 + $0xa0] sm:$0xff]
        %v2423 = vld [vmem:[#allocation8 + $0xa8] sm:$0xff]
        %v2424 = vld [vmem:[#allocation8 + $0xb0] sm:$0xff]
        %v2425 = vld [vmem:[#allocation8 + $0xb8] sm:$0xff]
        %v2426 = vld [vmem:[#allocation8 + $0xc0] sm:$0xff]
        %v2427 = vld [vmem:[#allocation8 + $0xc8] sm:$0xff]
        %v2428 = vld [vmem:[#allocation8 + $0xd0] sm:$0xff]
        %v2429 = vld [vmem:[#allocation8 + $0xd8] sm:$0xff]
        %v2430 = vld [vmem:[#allocation8 + $0xe0] sm:$0xff]
        %v2431 = vld [vmem:[#allocation8 + $0xe8] sm:$0xff]
        %v2432 = vld [vmem:[#allocation8 + $0xf0] sm:$0xff]
        %v2433 = vld [vmem:[#allocation8 + $0xf8] sm:$0xff]
        %2434 = vmatprep.subr.mxu0 0.0
        %2435 = vmatpush1.msra.mxu0 %v2402
        %2436 = vmatprep.subr.mxu0 0.0
        %2437 = vmatpush1.msra.mxu0 %v2403
        %2438 = vmatprep.subr.mxu0 0.0
        %2439 = vmatpush1.msra.mxu0 %v2404
        %2440 = vmatprep.subr.mxu0 0.0
        %2441 = vmatpush1.msra.mxu0 %v2405
        %2442 = vmatprep.subr.mxu0 0.0
        %2443 = vmatpush1.msra.mxu0 %v2406
        %2444 = vmatprep.subr.mxu0 0.0
        %2445 = vmatpush1.msra.mxu0 %v2407
        %2446 = vmatprep.subr.mxu0 0.0
        %2447 = vmatpush1.msra.mxu0 %v2408
        %2448 = vmatprep.subr.mxu0 0.0
        %2449 = vmatpush1.msra.mxu0 %v2409
        %2450 = vmatprep.subr.mxu0 0.0
        %2451 = vmatpush1.msra.mxu0 %v2410
        %2452 = vmatprep.subr.mxu0 0.0
        %2453 = vmatpush1.msra.mxu0 %v2411
        %2454 = vmatprep.subr.mxu0 0.0
        %2455 = vmatpush1.msra.mxu0 %v2412
        %2456 = vmatprep.subr.mxu0 0.0
        %2457 = vmatpush1.msra.mxu0 %v2413
        %2458 = vmatprep.subr.mxu0 0.0
        %2459 = vmatpush1.msra.mxu0 %v2414
        %2460 = vmatprep.subr.mxu0 0.0
        %2461 = vmatpush1.msra.mxu0 %v2415
        %2462 = vmatprep.subr.mxu0 0.0
        %2463 = vmatpush1.msra.mxu0 %v2416
        %2464 = vmatprep.subr.mxu0 0.0
        %2465 = vmatpush1.msra.mxu0 %v2417
        %2466 = vmatprep.subr.mxu0 0.0
        %2467 = vmatpush1.msra.mxu0 %v2418
        %2468 = vmatprep.subr.mxu0 0.0
        %2469 = vmatpush1.msra.mxu0 %v2419
        %2470 = vmatprep.subr.mxu0 0.0
        %2471 = vmatpush1.msra.mxu0 %v2420
        %2472 = vmatprep.subr.mxu0 0.0
        %2473 = vmatpush1.msra.mxu0 %v2421
        %2474 = vmatprep.subr.mxu0 0.0
        %2475 = vmatpush1.msra.mxu0 %v2422
        %2476 = vmatprep.subr.mxu0 0.0
        %2477 = vmatpush1.msra.mxu0 %v2423
        %2478 = vmatprep.subr.mxu0 0.0
        %2479 = vmatpush1.msra.mxu0 %v2424
        %2480 = vmatprep.subr.mxu0 0.0
        %2481 = vmatpush1.msra.mxu0 %v2425
        %2482 = vmatprep.subr.mxu0 0.0
        %2483 = vmatpush1.msra.mxu0 %v2426
        %2484 = vmatprep.subr.mxu0 0.0
        %2485 = vmatpush1.msra.mxu0 %v2427
        %2486 = vmatprep.subr.mxu0 0.0
        %2487 = vmatpush1.msra.mxu0 %v2428
        %2488 = vmatprep.subr.mxu0 0.0
        %2489 = vmatpush1.msra.mxu0 %v2429
        %2490 = vmatprep.subr.mxu0 0.0
        %2491 = vmatpush1.msra.mxu0 %v2430
        %2492 = vmatprep.subr.mxu0 0.0
        %2493 = vmatpush1.msra.mxu0 %v2431
        %2494 = vmatprep.subr.mxu0 0.0
        %2495 = vmatpush1.msra.mxu0 %v2432
        %2496 = vmatprep.subr.mxu0 0.0
        %2497 = vmatpush1.msra.mxu0 %v2433
        %2498 = vmatprep.mubr.f32.mxu0 %v2307
        %2499 = vmatmul.mubr.f32.gmra.mrb[0].mxu0 %v2306
        %v2500 = vpop.f32.mrb[0].mxu0
        %v2501 = vadd.f32 0.0, %v2500
        %v2502 = vpop.f32.mrb[0].mxu0
        %2503 = vmatprep.mubr.f32.mxu0 %v2309
        %2504 = vmatmul.mubr.f32.gmra.mrb[0].mxu0 %v2308
        %v2505 = vpop.f32.mrb[0].mxu0
        %v2506 = vadd.f32 0.0, %v2505
        %v2507 = vpop.f32.mrb[0].mxu0
        %2508 = vmatprep.mubr.f32.mxu0 %v2311
        %2509 = vmatmul.mubr.f32.gmra.mrb[0].mxu0 %v2310
        %v2510 = vpop.f32.mrb[0].mxu0
        %v2511 = vadd.f32 0.0, %v2510
        %v2512 = vpop.f32.mrb[0].mxu0
        %2513 = vmatprep.mubr.f32.mxu0 %v2313
        %2514 = vmatmul.mubr.f32.gmra.mrb[0].mxu0 %v2312
        %v2515 = vpop.f32.mrb[0].mxu0
        %v2516 = vadd.f32 0.0, %v2515
        %v2517 = vpop.f32.mrb[0].mxu0
        %2518 = vmatprep.mubr.f32.mxu0 %v2315
        %2519 = vmatmul.mubr.f32.gmra.mrb[0].mxu0 %v2314
        %v2520 = vpop.f32.mrb[0].mxu0
        %v2521 = vadd.f32 0.0, %v2520
        %v2522 = vpop.f32.mrb[0].mxu0
        %2523 = vmatprep.mubr.f32.mxu0 %v2317
        %2524 = vmatmul.mubr.f32.gmra.mrb[0].mxu0 %v2316
        %v2525 = vpop.f32.mrb[0].mxu0
        %v2526 = vadd.f32 0.0, %v2525
        %v2527 = vpop.f32.mrb[0].mxu0
        %2528 = vmatprep.mubr.f32.mxu0 %v2319
        %2529 = vmatmul.mubr.f32.gmra.mrb[0].mxu0 %v2318
        %v2530 = vpop.f32.mrb[0].mxu0
        %v2531 = vadd.f32 0.0, %v2530
        %v2532 = vpop.f32.mrb[0].mxu0
        %2533 = vmatprep.mubr.f32.mxu0 %v2321
        %2534 = vmatmul.mubr.f32.gmra.mrb[0].mxu0 %v2320
        %v2535 = vpop.f32.mrb[0].mxu0
        %v2536 = vadd.f32 0.0, %v2535
        %v2537 = vpop.f32.mrb[0].mxu0
        %2538 = vmatprep.mubr.f32.mxu0 %v2323
        %2539 = vmatmul.mubr.f32.gmra.mrb[0].mxu0 %v2322
        %v2540 = vpop.f32.mrb[0].mxu0
        %v2541 = vadd.f32 0.0, %v2540
        %v2542 = vpop.f32.mrb[0].mxu0
        %2543 = vmatprep.mubr.f32.mxu0 %v2325
        %2544 = vmatmul.mubr.f32.gmra.mrb[0].mxu0 %v2324
        %v2545 = vpop.f32.mrb[0].mxu0
        %v2546 = vadd.f32 0.0, %v2545
        %v2547 = vpop.f32.mrb[0].mxu0
        %2548 = vmatprep.mubr.f32.mxu0 %v2327
        %2549 = vmatmul.mubr.f32.gmra.mrb[0].mxu0 %v2326
        %v2550 = vpop.f32.mrb[0].mxu0
        %v2551 = vadd.f32 0.0, %v2550
        %v2552 = vpop.f32.mrb[0].mxu0
        %2553 = vmatprep.mubr.f32.mxu0 %v2329
        %2554 = vmatmul.mubr.f32.gmra.mrb[0].mxu0 %v2328
        %v2555 = vpop.f32.mrb[0].mxu0
        %v2556 = vadd.f32 0.0, %v2555
        %v2557 = vpop.f32.mrb[0].mxu0
        %2558 = vmatprep.mubr.f32.mxu0 %v2331
        %2559 = vmatmul.mubr.f32.gmra.mrb[0].mxu0 %v2330
        %v2560 = vpop.f32.mrb[0].mxu0
        %v2561 = vadd.f32 0.0, %v2560
        %v2562 = vpop.f32.mrb[0].mxu0
        %2563 = vmatprep.mubr.f32.mxu0 %v2333
        %2564 = vmatmul.mubr.f32.gmra.mrb[0].mxu0 %v2332
        %v2565 = vpop.f32.mrb[0].mxu0
        %v2566 = vadd.f32 0.0, %v2565
        %v2567 = vpop.f32.mrb[0].mxu0
        %2568 = vmatprep.mubr.f32.mxu0 %v2335
        %2569 = vmatmul.mubr.f32.gmra.mrb[0].mxu0 %v2334
        %v2570 = vpop.f32.mrb[0].mxu0
        %v2571 = vadd.f32 0.0, %v2570
        %v2572 = vpop.f32.mrb[0].mxu0
        %2573 = vmatprep.mubr.f32.mxu0 %v2337
        %2574 = vmatmul.mubr.f32.gmra.mrb[0].mxu0 %v2336
        %v2575 = vpop.f32.mrb[0].mxu0
        %v2576 = vadd.f32 0.0, %v2575
        %v2577 = vpop.f32.mrb[0].mxu0
        %2578 = vmatprep.mubr.f32.mxu0 %v2339
        %2579 = vmatmul.mubr.f32.gmra.mrb[0].mxu0 %v2338
        %v2580 = vpop.f32.mrb[0].mxu0
        %v2581 = vadd.f32 0.0, %v2580
        %v2582 = vpop.f32.mrb[0].mxu0
        %2583 = vmatprep.mubr.f32.mxu0 %v2341
        %2584 = vmatmul.mubr.f32.gmra.mrb[0].mxu0 %v2340
        %v2585 = vpop.f32.mrb[0].mxu0
        %v2586 = vadd.f32 0.0, %v2585
        %v2587 = vpop.f32.mrb[0].mxu0
        %2588 = vmatprep.mubr.f32.mxu0 %v2343
        %2589 = vmatmul.mubr.f32.gmra.mrb[0].mxu0 %v2342
        %v2590 = vpop.f32.mrb[0].mxu0
        %v2591 = vadd.f32 0.0, %v2590
        %v2592 = vpop.f32.mrb[0].mxu0
        %2593 = vmatprep.mubr.f32.mxu0 %v2345
        %2594 = vmatmul.mubr.f32.gmra.mrb[0].mxu0 %v2344
        %v2595 = vpop.f32.mrb[0].mxu0
        %v2596 = vadd.f32 0.0, %v2595
        %v2597 = vpop.f32.mrb[0].mxu0
        %2598 = vmatprep.mubr.f32.mxu0 %v2347
        %2599 = vmatmul.mubr.f32.gmra.mrb[0].mxu0 %v2346
        %v2600 = vpop.f32.mrb[0].mxu0
        %v2601 = vadd.f32 0.0, %v2600
        %v2602 = vpop.f32.mrb[0].mxu0
        %2603 = vmatprep.mubr.f32.mxu0 %v2349
        %2604 = vmatmul.mubr.f32.gmra.mrb[0].mxu0 %v2348
        %v2605 = vpop.f32.mrb[0].mxu0
        %v2606 = vadd.f32 0.0, %v2605
        %v2607 = vpop.f32.mrb[0].mxu0
        %2608 = vmatprep.mubr.f32.mxu0 %v2351
        %2609 = vmatmul.mubr.f32.gmra.mrb[0].mxu0 %v2350
        %v2610 = vpop.f32.mrb[0].mxu0
        %v2611 = vadd.f32 0.0, %v2610
        %v2612 = vpop.f32.mrb[0].mxu0
        %2613 = vmatprep.mubr.f32.mxu0 %v2353
        %2614 = vmatmul.mubr.f32.gmra.mrb[0].mxu0 %v2352
        %v2615 = vpop.f32.mrb[0].mxu0
        %v2616 = vadd.f32 0.0, %v2615
        %v2617 = vpop.f32.mrb[0].mxu0
        %2618 = vmatprep.mubr.f32.mxu0 %v2355
        %2619 = vmatmul.mubr.f32.gmra.mrb[0].mxu0 %v2354
        %v2620 = vpop.f32.mrb[0].mxu0
        %v2621 = vadd.f32 0.0, %v2620
        %v2622 = vpop.f32.mrb[0].mxu0
        %2623 = vmatprep.mubr.f32.mxu0 %v2357
        %2624 = vmatmul.mubr.f32.gmra.mrb[0].mxu0 %v2356
        %v2625 = vpop.f32.mrb[0].mxu0
        %v2626 = vadd.f32 0.0, %v2625
        %v2627 = vpop.f32.mrb[0].mxu0
        %2628 = vmatprep.mubr.f32.mxu0 %v2359
        %2629 = vmatmul.mubr.f32.gmra.mrb[0].mxu0 %v2358
        %v2630 = vpop.f32.mrb[0].mxu0
        %v2631 = vadd.f32 0.0, %v2630
        %v2632 = vpop.f32.mrb[0].mxu0
        %2633 = vmatprep.mubr.f32.mxu0 %v2361
        %2634 = vmatmul.mubr.f32.gmra.mrb[0].mxu0 %v2360
        %v2635 = vpop.f32.mrb[0].mxu0
        %v2636 = vadd.f32 0.0, %v2635
        %v2637 = vpop.f32.mrb[0].mxu0
        %2638 = vmatprep.mubr.f32.mxu0 %v2363
        %2639 = vmatmul.mubr.f32.gmra.mrb[0].mxu0 %v2362
        %v2640 = vpop.f32.mrb[0].mxu0
        %v2641 = vadd.f32 0.0, %v2640
        %v2642 = vpop.f32.mrb[0].mxu0
        %2643 = vmatprep.mubr.f32.mxu0 %v2365
        %2644 = vmatmul.mubr.f32.gmra.mrb[0].mxu0 %v2364
        %v2645 = vpop.f32.mrb[0].mxu0
        %v2646 = vadd.f32 0.0, %v2645
        %v2647 = vpop.f32.mrb[0].mxu0
        %2648 = vmatprep.mubr.f32.mxu0 %v2367
        %2649 = vmatmul.mubr.f32.gmra.mrb[0].mxu0 %v2366
        %v2650 = vpop.f32.mrb[0].mxu0
        %v2651 = vadd.f32 0.0, %v2650
        %v2652 = vpop.f32.mrb[0].mxu0
        %2653 = vmatprep.mubr.f32.mxu0 %v2369
        %2654 = vmatmul.mubr.f32.gmra.mrb[0].mxu0 %v2368
        %v2655 = vpop.f32.mrb[0].mxu0
        %v2656 = vadd.f32 0.0, %v2655
        %v2657 = vpop.f32.mrb[0].mxu0
        %2658 = vdwg.mxu0
        %v2659 = vadd.f32 %v2370, %v2501
        %v2660 = vadd.f32 %v2371, %v2506
        %v2661 = vadd.f32 %v2372, %v2511
        %v2662 = vadd.f32 %v2373, %v2516
        %v2663 = vadd.f32 %v2374, %v2521
        %v2664 = vadd.f32 %v2375, %v2526
        %v2665 = vadd.f32 %v2376, %v2531
        %v2666 = vadd.f32 %v2377, %v2536
        %v2667 = vadd.f32 %v2378, %v2541
        %v2668 = vadd.f32 %v2379, %v2546
        %v2669 = vadd.f32 %v2380, %v2551
        %v2670 = vadd.f32 %v2381, %v2556
        %v2671 = vadd.f32 %v2382, %v2561
        %v2672 = vadd.f32 %v2383, %v2566
        %v2673 = vadd.f32 %v2384, %v2571
        %v2674 = vadd.f32 %v2385, %v2576
        %v2675 = vadd.f32 %v2386, %v2581
        %v2676 = vadd.f32 %v2387, %v2586
        %v2677 = vadd.f32 %v2388, %v2591
        %v2678 = vadd.f32 %v2389, %v2596
        %v2679 = vadd.f32 %v2390, %v2601
        %v2680 = vadd.f32 %v2391, %v2606
        %v2681 = vadd.f32 %v2392, %v2611
        %v2682 = vadd.f32 %v2393, %v2616
        %v2683 = vadd.f32 %v2394, %v2621
        %v2684 = vadd.f32 %v2395, %v2626
        %v2685 = vadd.f32 %v2396, %v2631
        %v2686 = vadd.f32 %v2397, %v2636
        %v2687 = vadd.f32 %v2398, %v2641
        %v2688 = vadd.f32 %v2399, %v2646
        %v2689 = vadd.f32 %v2400, %v2651
        %v2690 = vadd.f32 %v2401, %v2656
        %2691 = vst [vmem:[#allocation2] sm:$0xff] %v2659
        %2692 = vst [vmem:[#allocation2 + $0x8] sm:$0xff] %v2660
        %2693 = vst [vmem:[#allocation2 + $0x10] sm:$0xff] %v2661
        %2694 = vst [vmem:[#allocation2 + $0x18] sm:$0xff] %v2662
        %2695 = vst [vmem:[#allocation2 + $0x20] sm:$0xff] %v2663
        %2696 = vst [vmem:[#allocation2 + $0x28] sm:$0xff] %v2664
        %2697 = vst [vmem:[#allocation2 + $0x30] sm:$0xff] %v2665
        %2698 = vst [vmem:[#allocation2 + $0x38] sm:$0xff] %v2666
        %2699 = vst [vmem:[#allocation2 + $0x40] sm:$0xff] %v2667
        %2700 = vst [vmem:[#allocation2 + $0x48] sm:$0xff] %v2668
        %2701 = vst [vmem:[#allocation2 + $0x50] sm:$0xff] %v2669
        %2702 = vst [vmem:[#allocation2 + $0x58] sm:$0xff] %v2670
        %2703 = vst [vmem:[#allocation2 + $0x60] sm:$0xff] %v2671
        %2704 = vst [vmem:[#allocation2 + $0x68] sm:$0xff] %v2672
        %2705 = vst [vmem:[#allocation2 + $0x70] sm:$0xff] %v2673
        %2706 = vst [vmem:[#allocation2 + $0x78] sm:$0xff] %v2674
        %2707 = vst [vmem:[#allocation2 + $0x80] sm:$0xff] %v2675
        %2708 = vst [vmem:[#allocation2 + $0x88] sm:$0xff] %v2676
        %2709 = vst [vmem:[#allocation2 + $0x90] sm:$0xff] %v2677
        %2710 = vst [vmem:[#allocation2 + $0x98] sm:$0xff] %v2678
        %2711 = vst [vmem:[#allocation2 + $0xa0] sm:$0xff] %v2679
        %2712 = vst [vmem:[#allocation2 + $0xa8] sm:$0xff] %v2680
        %2713 = vst [vmem:[#allocation2 + $0xb0] sm:$0xff] %v2681
        %2714 = vst [vmem:[#allocation2 + $0xb8] sm:$0xff] %v2682
        %2715 = vst [vmem:[#allocation2 + $0xc0] sm:$0xff] %v2683
        %2716 = vst [vmem:[#allocation2 + $0xc8] sm:$0xff] %v2684
        %2717 = vst [vmem:[#allocation2 + $0xd0] sm:$0xff] %v2685
        %2718 = vst [vmem:[#allocation2 + $0xd8] sm:$0xff] %v2686
        %2719 = vst [vmem:[#allocation2 + $0xe0] sm:$0xff] %v2687
        %2720 = vst [vmem:[#allocation2 + $0xe8] sm:$0xff] %v2688
        %2721 = vst [vmem:[#allocation2 + $0xf0] sm:$0xff] %v2689
        %2722 = vst [vmem:[#allocation2 + $0xf8] sm:$0xff] %v2690
        // Predicated region
        $region57: #{mlp3d_forward.1} parent=39 // pred_check
          %p2723 = pneg %p337
        $region58: #{mlp3d_forward.1} parent=39 // pred_check_branch
          %2725 = sbr.rel (%p2723) target = $region60
        $region59: #{mlp3d_forward.1} parent=39 // pred_region
          %v2726 = vld [vmem:[#allocation2] sm:$0xff]
          %v2727 = vld [vmem:[#allocation2 + $0x8] sm:$0xff]
          %v2728 = vld [vmem:[#allocation2 + $0x10] sm:$0xff]
          %v2729 = vld [vmem:[#allocation2 + $0x18] sm:$0xff]
          %v2730 = vld [vmem:[#allocation2 + $0x20] sm:$0xff]
          %v2731 = vld [vmem:[#allocation2 + $0x28] sm:$0xff]
          %v2732 = vld [vmem:[#allocation2 + $0x30] sm:$0xff]
          %v2733 = vld [vmem:[#allocation2 + $0x38] sm:$0xff]
          %v2734 = vld [vmem:[#allocation2 + $0x40] sm:$0xff]
          %v2735 = vld [vmem:[#allocation2 + $0x48] sm:$0xff]
          %v2736 = vld [vmem:[#allocation2 + $0x50] sm:$0xff]
          %v2737 = vld [vmem:[#allocation2 + $0x58] sm:$0xff]
          %v2738 = vld [vmem:[#allocation2 + $0x60] sm:$0xff]
          %v2739 = vld [vmem:[#allocation2 + $0x68] sm:$0xff]
          %v2740 = vld [vmem:[#allocation2 + $0x70] sm:$0xff]
          %v2741 = vld [vmem:[#allocation2 + $0x78] sm:$0xff]
          %v2742 = vld [vmem:[#allocation2 + $0x80] sm:$0xff]
          %v2743 = vld [vmem:[#allocation2 + $0x88] sm:$0xff]
          %v2744 = vld [vmem:[#allocation2 + $0x90] sm:$0xff]
          %v2745 = vld [vmem:[#allocation2 + $0x98] sm:$0xff]
          %v2746 = vld [vmem:[#allocation2 + $0xa0] sm:$0xff]
          %v2747 = vld [vmem:[#allocation2 + $0xa8] sm:$0xff]
          %v2748 = vld [vmem:[#allocation2 + $0xb0] sm:$0xff]
          %v2749 = vld [vmem:[#allocation2 + $0xb8] sm:$0xff]
          %v2750 = vld [vmem:[#allocation2 + $0xc0] sm:$0xff]
          %v2751 = vld [vmem:[#allocation2 + $0xc8] sm:$0xff]
          %v2752 = vld [vmem:[#allocation2 + $0xd0] sm:$0xff]
          %v2753 = vld [vmem:[#allocation2 + $0xd8] sm:$0xff]
          %v2754 = vld [vmem:[#allocation2 + $0xe0] sm:$0xff]
          %v2755 = vld [vmem:[#allocation2 + $0xe8] sm:$0xff]
          %v2756 = vld [vmem:[#allocation2 + $0xf0] sm:$0xff]
          %v2757 = vld [vmem:[#allocation2 + $0xf8] sm:$0xff]
          %v2758 = vld [vmem:[%s4] sm:$0x1]
          %v2760 = vlaneseq
          %v2761 = vshrl.u32 %v2760, 7
          %v2762 = vsub.s32 0, %v2761
          %v2763 = vrot.slane %v2758, %v2762
          %v2765 = vadd.f32 %v2726, %v2763
          %v2766 = vadd.f32 %v2727, %v2763
          %v2767 = vadd.f32 %v2728, %v2763
          %v2768 = vadd.f32 %v2729, %v2763
          %v2769 = vadd.f32 %v2730, %v2763
          %v2770 = vadd.f32 %v2731, %v2763
          %v2771 = vadd.f32 %v2732, %v2763
          %v2772 = vadd.f32 %v2733, %v2763
          %v2773 = vadd.f32 %v2734, %v2763
          %v2774 = vadd.f32 %v2735, %v2763
          %v2775 = vadd.f32 %v2736, %v2763
          %v2776 = vadd.f32 %v2737, %v2763
          %v2777 = vadd.f32 %v2738, %v2763
          %v2778 = vadd.f32 %v2739, %v2763
          %v2779 = vadd.f32 %v2740, %v2763
          %v2780 = vadd.f32 %v2741, %v2763
          %v2781 = vadd.f32 %v2742, %v2763
          %v2782 = vadd.f32 %v2743, %v2763
          %v2783 = vadd.f32 %v2744, %v2763
          %v2784 = vadd.f32 %v2745, %v2763
          %v2785 = vadd.f32 %v2746, %v2763
          %v2786 = vadd.f32 %v2747, %v2763
          %v2787 = vadd.f32 %v2748, %v2763
          %v2788 = vadd.f32 %v2749, %v2763
          %v2789 = vadd.f32 %v2750, %v2763
          %v2790 = vadd.f32 %v2751, %v2763
          %v2791 = vadd.f32 %v2752, %v2763
          %v2792 = vadd.f32 %v2753, %v2763
          %v2793 = vadd.f32 %v2754, %v2763
          %v2794 = vadd.f32 %v2755, %v2763
          %v2795 = vadd.f32 %v2756, %v2763
          %v2796 = vadd.f32 %v2757, %v2763
          %2797 = vst [vmem:[%s319] sm:$0xff] %v2765
          %2798 = vst [vmem:[%s319 + $0x8] sm:$0xff] %v2766
          %2799 = vst [vmem:[%s319 + $0x10] sm:$0xff] %v2767
          %2800 = vst [vmem:[%s319 + $0x18] sm:$0xff] %v2768
          %2801 = vst [vmem:[%s319 + $0x20] sm:$0xff] %v2769
          %2802 = vst [vmem:[%s319 + $0x28] sm:$0xff] %v2770
          %2803 = vst [vmem:[%s319 + $0x30] sm:$0xff] %v2771
          %2804 = vst [vmem:[%s319 + $0x38] sm:$0xff] %v2772
          %2805 = vst [vmem:[%s319 + $0x40] sm:$0xff] %v2773
          %2806 = vst [vmem:[%s319 + $0x48] sm:$0xff] %v2774
          %2807 = vst [vmem:[%s319 + $0x50] sm:$0xff] %v2775
          %2808 = vst [vmem:[%s319 + $0x58] sm:$0xff] %v2776
          %2809 = vst [vmem:[%s319 + $0x60] sm:$0xff] %v2777
          %2810 = vst [vmem:[%s319 + $0x68] sm:$0xff] %v2778
          %2811 = vst [vmem:[%s319 + $0x70] sm:$0xff] %v2779
          %2812 = vst [vmem:[%s319 + $0x78] sm:$0xff] %v2780
          %2813 = vst [vmem:[%s319 + $0x80] sm:$0xff] %v2781
          %2814 = vst [vmem:[%s319 + $0x88] sm:$0xff] %v2782
          %2815 = vst [vmem:[%s319 + $0x90] sm:$0xff] %v2783
          %2816 = vst [vmem:[%s319 + $0x98] sm:$0xff] %v2784
          %2817 = vst [vmem:[%s319 + $0xa0] sm:$0xff] %v2785
          %2818 = vst [vmem:[%s319 + $0xa8] sm:$0xff] %v2786
          %2819 = vst [vmem:[%s319 + $0xb0] sm:$0xff] %v2787
          %2820 = vst [vmem:[%s319 + $0xb8] sm:$0xff] %v2788
          %2821 = vst [vmem:[%s319 + $0xc0] sm:$0xff] %v2789
          %2822 = vst [vmem:[%s319 + $0xc8] sm:$0xff] %v2790
          %2823 = vst [vmem:[%s319 + $0xd0] sm:$0xff] %v2791
          %2824 = vst [vmem:[%s319 + $0xd8] sm:$0xff] %v2792
          %2825 = vst [vmem:[%s319 + $0xe0] sm:$0xff] %v2793
          %2826 = vst [vmem:[%s319 + $0xe8] sm:$0xff] %v2794
          %2827 = vst [vmem:[%s319 + $0xf0] sm:$0xff] %v2795
          %2828 = vst [vmem:[%s319 + $0xf8] sm:$0xff] %v2796
        $region60: #{mlp3d_forward.1} parent=39 // pred_fallthru
          _
        %s2829 = sand.u32 %s168, 1
        %s2830 = scalar_lea.sflag [#allocation5], %s2829
        %s2831 = sand.u32 %s168, 1
        %s2832 = smul.addr %s2831, 256
        %s2833 = scalar_lea.vmem [#allocation9], %s2832
        // Predicated region
        $region61: #{mlp3d_forward.1} parent=39 // pred_check
          %p2834 = pneg %p178
        $region62: #{mlp3d_forward.1} parent=39 // pred_check_branch
          %2836 = sbr.rel (%p2834) target = $region64
        $region63: #{mlp3d_forward.1} parent=39 // pred_region
          %s2837 = smul.u32 32, %s27
          %s2838 = ssub.s32 112, %s2837
          %p2839 = scmp.lt.s32.totalorder %s2838, 32
          %s2840 = scalar_select %p2839, %s2838, 32
          %s2841 = smul.u32 128, %s2840
          %s2843 = ssub.s32 4096, %s2841
          %2844 = vsyncadd %s2830, %s2843
          %p2845 = scmp.ne.s32.totalorder 0, %s2841
          %s2846 = smul.addr %s2837, 128
          %s2847 = scalar_lea.hbm %s5, %s2846
          %s2848 = smul.u32 8, %s2840
          %s2849 = sshll.u32 %s2833, 4
          %s2850 = int_to_ptr.vmem [resolvable:$true] %s2849
          %s2851 = sshll.u32 %s2848, 4
          %2855 = dma.vmem_to_hbm [thread:$0]  (%p2845), %s2850, %s2851, %s2847, %s2830, 128, 128, 8
        $region64: #{mlp3d_forward.1} parent=39 // pred_fallthru
          _
      $region40: #{mlp3d_forward.1} parent=5 // pred_fallthru
        _
      %p2856 = scmp.le.s32.totalorder 2, %s18
      // Predicated region
      $region65: #{mlp3d_forward.1} parent=5 // pred_check
        %p2857 = pneg %p2856
      $region66: #{mlp3d_forward.1} parent=5 // pred_check_branch
        %2859 = sbr.rel (%p2857) target = $region68
      $region67: #{mlp3d_forward.1} parent=5 // pred_region
        %s2860 = ssub.s32 %s18, 2
        // Predicated region
        $region69: #{mlp3d_forward.1} parent=67 // pred_check
          %p2861 = pneg %p184
        $region70: #{mlp3d_forward.1} parent=67 // pred_check_branch
          %2863 = sbr.rel (%p2861) target = $region72
        $region71: #{mlp3d_forward.1} parent=67 // pred_region
          %s2864 = sand.u32 %s169, 1
          %s2865 = scalar_lea.sflag [#allocation5], %s2864
          %s2866 = sand.u32 %s169, 1
          %s2867 = smul.addr %s2866, 256
          %s2868 = scalar_lea.vmem [#allocation9], %s2867
          %2869 = dma.done %s2865, 4096
        $region72: #{mlp3d_forward.1} parent=67 // pred_fallthru
          _
      $region68: #{mlp3d_forward.1} parent=5 // pred_fallthru
        _
    $region6: #{mlp3d_forward.1} parent=1 // loop_footer
      %s22 = sadd.s32 1, %s18
    $region7: #{mlp3d_forward.1} parent=1 // loop_footer_branch
      %17 = sbr.rel target = $region3
    $region8: #{mlp3d_forward.1} parent=1 // loop_exit
      _
    %2870 = vsyncpa [#allocation4], 1
    %s2871 = scalar_lea.sflag [#allocation4], 1
    %2872 = vsyncpa %s2871, 1
    %2873 = vsyncpa [#allocation7], 1
    %2874 = vsyncpa [#allocation5], 1
    %s2875 = scalar_lea.sflag [#allocation5], 1
    %2876 = vsyncpa %s2875, 1

</llo_original>
